<compile_context>
chip_gen: v7x
topology: tpu7x:2x2x1
jax: 0.10.0
libtpu: 0.0.40
codegen_flags: <defaults>
</compile_context>

<pallas_src>
import jax
import jax.numpy as jnp
from jax import lax
from jax.experimental import pallas as pl
from jax.experimental.pallas import tpu as pltpu

# ----------------------- model hyper-parameters (small) ----------------------
VOCAB_SIZE = 64
N_EMBD     = 32
N_HEADS    = 4
BLOCK_SIZE = 8      # max sequence length (block_size)
N_BLOCKS   = 2
HEAD_SIZE  = N_EMBD // N_HEADS
LN_EPS     = 1e-5
LM_HEAD_PAD = 128   # lm_head output padded to a full 128-lane width


def _layer_norm(v, g, b):
    # v: (..., C); g, b: (1, C)
    mu = jnp.mean(v, axis=-1, keepdims=True)
    var = jnp.mean((v - mu) ** 2, axis=-1, keepdims=True)
    return (v - mu) * lax.rsqrt(var + LN_EPS) * g + b


# ------------------------------ fused Pallas kernel ---------------------------
def fused_forward_kernel(am_ref, x_ref, ln_ref, wattn_ref, w1_ref, w2_ref,
                         bff_ref, wlm_ref, out_ref):
    """Full mini-GPT forward for the whole batch (batch folded into rows).

    am_ref    : (BT, BT)  additive mask (0 keep / -1e30 drop), block-diag causal
    x_ref     : (BT, C)   embedded input
    ln_ref    : (4L+2, C) [ln1_g, ln1_b, ln2_g, ln2_b] per block, then lnf_g, lnf_b
    wattn_ref : (4L, C, C) [wq*scale, wk, wv, wo] per block
    w1_ref    : (L, C, 4C); w2_ref: (L, 4C, C); bff_ref: (L, 2, 4C) [b1; pad(b2)]
    wlm_ref   : (C, 128)  zero-padded lm_head
    out_ref   : (BT, 128)
    """
    BT, C = x_ref.shape
    H, D = N_HEADS, HEAD_SIZE

    x = x_ref[...]            # (BT, C) f32, stays resident in vregs/VMEM
    am = am_ref[...]          # (BT, BT) additive mask, built once per call

    for i in range(N_BLOCKS):           # static unroll, static ref indices
        # ---- LayerNorm 1 + multi-head causal self-attention ------------------
        xn = _layer_norm(x, ln_ref[4 * i + 0:4 * i + 1], ln_ref[4 * i + 1:4 * i + 2])
        # Three lane-dense 2-D matmuls; D**-0.5 already folded into Wq.
        q = jnp.dot(xn, wattn_ref[4 * i + 0], preferred_element_type=jnp.float32)
        k = jnp.dot(xn, wattn_ref[4 * i + 1], preferred_element_type=jnp.float32)
        v = jnp.dot(xn, wattn_ref[4 * i + 2], preferred_element_type=jnp.float32)

        o_cols = []
        for h in range(H):                       # static head loop (D = 8 lanes)
            sl = slice(h * D, (h + 1) * D)
            # NT matmul: contract the last dim of both (no explicit k transpose).
            att = lax.dot_general(q[:, sl], k[:, sl],
                                  (((1,), (1,)), ((), ())),
                                  preferred_element_type=jnp.float32)   # (BT, BT)
            att = att + am
            att = att - jnp.max(att, axis=-1, keepdims=True)
            p = jnp.exp(att)
            p = p * pl.reciprocal(jnp.sum(p, axis=-1, keepdims=True), approx=True)
            o_cols.append(jnp.dot(p, v[:, sl], preferred_element_type=jnp.float32))
        o = jnp.concatenate(o_cols, axis=-1)                            # (BT, C)
        # Single (BT,C)@(C,C) output projection + residual.
        x = x + jnp.dot(o, wattn_ref[4 * i + 3], preferred_element_type=jnp.float32)

        # ---- LayerNorm 2 + feed-forward ---------------------------------------
        xn2 = _layer_norm(x, ln_ref[4 * i + 2:4 * i + 3], ln_ref[4 * i + 3:4 * i + 4])
        bff = bff_ref[i]                                                # (2, 4C)
        h1 = jnp.dot(xn2, w1_ref[i], preferred_element_type=jnp.float32) + bff[0:1, :]
        h1 = jnp.maximum(h1, 0.0)
        h2 = jnp.dot(h1, w2_ref[i], preferred_element_type=jnp.float32) + bff[1:2, :C]
        x = x + h2

    # ---- final LayerNorm + lm_head (lane-dense, 128-wide output) --------------
    xn = _layer_norm(x, ln_ref[4 * N_BLOCKS:4 * N_BLOCKS + 1],
                     ln_ref[4 * N_BLOCKS + 1:4 * N_BLOCKS + 2])
    out_ref[...] = jnp.dot(xn, wlm_ref[...], preferred_element_type=jnp.float32)


# ------------------------------- wrapper --------------------------------------
def _full_spec(shape):
    zeros = (0,) * len(shape)
    return pl.BlockSpec(shape, lambda zeros=zeros: zeros)


@jax.jit
def transformer_forward(ids, attention_mask, kp):
    """ids: (B, T) int32 tokens; attention_mask: (B, T) f32, 1.0 == padded/masked."""
    B, T = ids.shape
    C = N_EMBD
    BT = B * T

    # Embedding gathers stay in plain JAX (glue); fold batch into rows.
    x0 = (jnp.take(kp['tok_emb'], ids, axis=0)
          + kp['pos_emb'][:T][None, :, :]).reshape(BT, C)

    # Additive attention mask over the folded (B*T) key/query axes:
    # block-diagonal (no cross-batch attention) & causal & not-padded-key.
    idx = jnp.arange(BT)
    same_batch = (idx[:, None] // T) == (idx[None, :] // T)
    causal = (idx[:, None] % T) >= (idx[None, :] % T)
    not_pad = attention_mask.astype(jnp.float32).reshape(BT) <= 0.5
    keep = same_batch & causal & not_pad[None, :]
    am = jnp.where(keep, 0.0, -1e30).astype(jnp.float32)

    args = (am, x0, kp['ln_all'], kp['w_attn'], kp['w1'], kp['w2'],
            kp['b_ff'], kp['w_lm_pad'])

    logits_pad = pl.pallas_call(
        fused_forward_kernel,
        out_shape=jax.ShapeDtypeStruct((BT, LM_HEAD_PAD), jnp.float32),
        in_specs=[_full_spec(a.shape) for a in args],
        out_specs=_full_spec((BT, LM_HEAD_PAD)),
    )(*args)
    # drop lane padding + unfold batch (glue)
    return logits_pad.reshape(B, T, LM_HEAD_PAD)[:, :, :VOCAB_SIZE]


# ------------------------- pure-JAX reference (check) -------------------------
def reference_forward(ids, attention_mask, params):
    B, T = ids.shape
    x = jnp.take(params['tok_emb'], ids, axis=0) + params['pos_emb'][:T][None]
    causal = jnp.tril(jnp.ones((T, T), jnp.bool_))
    key_pad = attention_mask > 0.5
    keep = causal[None] & jnp.logical_not(key_pad)[:, None, :]
    for bp in params['blocks']:
        xn = _layer_norm(x, bp['ln1_g'], bp['ln1_b'])
        q, k, v = xn @ bp['wq'], xn @ bp['wk'], xn @ bp['wv']
        outs = []
        for h in range(N_HEADS):
            sl = slice(h * HEAD_SIZE, (h + 1) * HEAD_SIZE)
            att = jnp.einsum('btd,bsd->bts', q[..., sl], k[..., sl]) * HEAD_SIZE ** -0.5
            att = jnp.where(keep, att, -1e30)
            outs.append(jax.nn.softmax(att, axis=-1) @ v[..., sl])
        x = x + jnp.concatenate(outs, axis=-1) @ bp['wo']
        xn2 = _layer_norm(x, bp['ln2_g'], bp['ln2_b'])
        x = x + jnp.maximum(xn2 @ bp['w1'] + bp['b1'], 0.0) @ bp['w2'] + bp['b2']
    xn = _layer_norm(x, params['lnf_g'], params['lnf_b'])
    return xn @ params['w_lm']


# --------------------------- deterministic params -----------------------------
def init_params(key):
    def normal(k, shape, std=0.02):
        return (std * jax.random.normal(k, shape)).astype(jnp.float32)

    keys = jax.random.split(key, 3 + N_BLOCKS)
    params = {
        'tok_emb': normal(keys[0], (VOCAB_SIZE, N_EMBD)),
        'pos_emb': normal(keys[1], (BLOCK_SIZE, N_EMBD)),
        'lnf_g': jnp.ones((1, N_EMBD), jnp.float32),
        'lnf_b': jnp.zeros((1, N_EMBD), jnp.float32),
        'w_lm': normal(keys[2], (N_EMBD, VOCAB_SIZE)),
        'blocks': [],
    }
    for bi in range(N_BLOCKS):
        bk = jax.random.split(keys[3 + bi], 6)
        params['blocks'].append({
            'ln1_g': jnp.ones((1, N_EMBD), jnp.float32),
            'ln1_b': jnp.zeros((1, N_EMBD), jnp.float32),
            'wq': normal(bk[0], (N_EMBD, N_EMBD)),
            'wk': normal(bk[1], (N_EMBD, N_EMBD)),
            'wv': normal(bk[2], (N_EMBD, N_EMBD)),
            'wo': normal(bk[3], (N_EMBD, N_EMBD)),
            'ln2_g': jnp.ones((1, N_EMBD), jnp.float32),
            'ln2_b': jnp.zeros((1, N_EMBD), jnp.float32),
            'w1': normal(bk[4], (N_EMBD, 4 * N_EMBD)),
            'b1': jnp.zeros((1, 4 * N_EMBD), jnp.float32),
            'w2': normal(bk[5], (4 * N_EMBD, N_EMBD)),
            'b2': jnp.zeros((1, N_EMBD), jnp.float32),
        })
    return params


def pack_params(params):
    """Pack per-block weights into a handful of stacked slabs (8 kernel inputs)."""
    C = N_EMBD
    scale = jnp.float32(HEAD_SIZE ** -0.5)
    ln_rows, wattn, w1s, w2s, bffs = [], [], [], [], []
    for b in params['blocks']:
        ln_rows += [b['ln1_g'], b['ln1_b'], b['ln2_g'], b['ln2_b']]
        wattn += [b['wq'] * scale, b['wk'], b['wv'], b['wo']]   # scale folded into Wq
        w1s.append(b['w1'])
        w2s.append(b['w2'])
        bffs.append(jnp.concatenate(
            [b['b1'], jnp.pad(b['b2'], ((0, 0), (0, 4 * C - C)))], axis=0))  # (2, 4C)
    ln_rows += [params['lnf_g'], params['lnf_b']]

    return {
        'tok_emb': params['tok_emb'],
        'pos_emb': params['pos_emb'],
        'ln_all': jnp.concatenate(ln_rows, axis=0),   # (4L+2, C)
        'w_attn': jnp.stack(wattn, axis=0),           # (4L, C, C)
        'w1': jnp.stack(w1s, axis=0),                 # (L, C, 4C)
        'w2': jnp.stack(w2s, axis=0),                 # (L, 4C, C)
        'b_ff': jnp.stack(bffs, axis=0),              # (L, 2, 4C)
        # zero-pad lm_head columns 64 -> 128 for lane-dense stores
        'w_lm_pad': jnp.pad(params['w_lm'],
                            ((0, 0), (0, LM_HEAD_PAD - VOCAB_SIZE))),
    }


if __name__ == "__main__":
    key = jax.random.PRNGKey(0)
    pkey, ikey = jax.random.split(key)
    params = init_params(pkey)
    kparams = pack_params(params)

    B, T = 2, BLOCK_SIZE
    ids = jax.random.randint(ikey, (B, T), 0, VOCAB_SIZE).astype(jnp.int32)
    # padding mask: 1.0 == masked key position; keep at least position 0 unmasked
    attention_mask = jnp.zeros((B, T), jnp.float32).at[1, T - 2:].set(1.0)

    logits = transformer_forward(ids, attention_mask, kparams)
    logits = jax.block_until_ready(logits)

    ref = reference_forward(ids, attention_mask, params)
    assert logits.shape == (B, T, VOCAB_SIZE)
    assert jnp.allclose(logits, ref, atol=2e-3, rtol=2e-3), "mismatch vs reference"

    print("KERNEL_OK")
</pallas_src>

<mosaic_0001>
module attributes {stable_mosaic.version = 11 : i64} {
  func.func @fused_forward_kernel(%arg0: memref<16x16xf32, #tpu.memory_space<vmem>>, %arg1: memref<16x32xf32, #tpu.memory_space<vmem>>, %arg2: memref<10x32xf32, #tpu.memory_space<vmem>>, %arg3: memref<8x32x32xf32, #tpu.memory_space<vmem>>, %arg4: memref<2x32x128xf32, #tpu.memory_space<vmem>>, %arg5: memref<2x128x32xf32, #tpu.memory_space<vmem>>, %arg6: memref<2x2x128xf32, #tpu.memory_space<vmem>>, %arg7: memref<32x128xf32, #tpu.memory_space<vmem>>, %arg8: memref<16x128xf32, #tpu.memory_space<vmem>>) attributes {dimension_semantics = [], scalar_prefetch = 0 : i64, scratch_operands = 0 : i64, tpu.core_type = #tpu.core_type<tc>} {
    %c0 = arith.constant 0 : index
    %c0_0 = arith.constant 0 : index
    %0 = vector.load %arg1[%c0, %c0_0] : memref<16x32xf32, #tpu.memory_space<vmem>>, vector<16x32xf32>
    %c0_1 = arith.constant 0 : index
    %c0_2 = arith.constant 0 : index
    %1 = vector.load %arg0[%c0_1, %c0_2] : memref<16x16xf32, #tpu.memory_space<vmem>>, vector<16x16xf32>
    %c0_3 = arith.constant 0 : index
    %c0_4 = arith.constant 0 : index
    %2 = vector.load %arg2[%c0_3, %c0_4] : memref<10x32xf32, #tpu.memory_space<vmem>>, vector<1x32xf32>
    %c1 = arith.constant 1 : index
    %c0_5 = arith.constant 0 : index
    %3 = vector.load %arg2[%c1, %c0_5] : memref<10x32xf32, #tpu.memory_space<vmem>>, vector<1x32xf32>
    %cst = arith.constant dense<0.000000e+00> : vector<16xf32>
    %4 = vector.multi_reduction <add>, %0, %cst [1] : vector<16x32xf32> to vector<16xf32>
    %5 = vector.shape_cast %4 : vector<16xf32> to vector<16x1xf32>
    %cst_6 = arith.constant 3.200000e+01 : f32
    %6 = vector.broadcast %cst_6 : f32 to vector<16x1xf32>
    %7 = arith.divf %5, %6 : vector<16x1xf32>
    %8 = vector.broadcast %7 : vector<16x1xf32> to vector<16x32xf32>
    %9 = arith.subf %0, %8 : vector<16x32xf32>
    %10 = arith.mulf %9, %9 : vector<16x32xf32>
    %cst_7 = arith.constant dense<0.000000e+00> : vector<16xf32>
    %11 = vector.multi_reduction <add>, %10, %cst_7 [1] : vector<16x32xf32> to vector<16xf32>
    %12 = vector.shape_cast %11 : vector<16xf32> to vector<16x1xf32>
    %cst_8 = arith.constant 3.200000e+01 : f32
    %13 = vector.broadcast %cst_8 : f32 to vector<16x1xf32>
    %14 = arith.divf %12, %13 : vector<16x1xf32>
    %15 = vector.broadcast %7 : vector<16x1xf32> to vector<16x32xf32>
    %16 = arith.subf %0, %15 : vector<16x32xf32>
    %cst_9 = arith.constant 9.99999974E-6 : f32
    %17 = vector.broadcast %cst_9 : f32 to vector<16x1xf32>
    %18 = arith.addf %14, %17 : vector<16x1xf32>
    %19 = math.rsqrt %18 : vector<16x1xf32>
    %20 = vector.broadcast %19 : vector<16x1xf32> to vector<16x32xf32>
    %21 = arith.mulf %16, %20 : vector<16x32xf32>
    %22 = vector.broadcast %2 : vector<1x32xf32> to vector<16x32xf32>
    %23 = arith.mulf %21, %22 : vector<16x32xf32>
    %24 = vector.broadcast %3 : vector<1x32xf32> to vector<16x32xf32>
    %25 = arith.addf %23, %24 : vector<16x32xf32>
    %c0_10 = arith.constant 0 : index
    %c0_11 = arith.constant 0 : index
    %c0_12 = arith.constant 0 : index
    %26 = vector.load %arg3[%c0_10, %c0_11, %c0_12] : memref<8x32x32xf32, #tpu.memory_space<vmem>>, vector<1x32x32xf32>
    %27 = vector.shape_cast %26 : vector<1x32x32xf32> to vector<32x32xf32>
    %cst_13 = arith.constant dense<0.000000e+00> : vector<16x32xf32>
    %28 = tpu.matmul %25, %27, %cst_13 {dimension_numbers = #tpu.dot_dimension_numbers<[1], [0], [0], [1], [0, 0, 1, 1], [], []>} : vector<16x32xf32>, vector<32x32xf32>, vector<16x32xf32> -> vector<16x32xf32>
    %c1_14 = arith.constant 1 : index
    %c0_15 = arith.constant 0 : index
    %c0_16 = arith.constant 0 : index
    %29 = vector.load %arg3[%c1_14, %c0_15, %c0_16] : memref<8x32x32xf32, #tpu.memory_space<vmem>>, vector<1x32x32xf32>
    %30 = vector.shape_cast %29 : vector<1x32x32xf32> to vector<32x32xf32>
    %cst_17 = arith.constant dense<0.000000e+00> : vector<16x32xf32>
    %31 = tpu.matmul %25, %30, %cst_17 {dimension_numbers = #tpu.dot_dimension_numbers<[1], [0], [0], [1], [0, 0, 1, 1], [], []>} : vector<16x32xf32>, vector<32x32xf32>, vector<16x32xf32> -> vector<16x32xf32>
    %c2 = arith.constant 2 : index
    %c0_18 = arith.constant 0 : index
    %c0_19 = arith.constant 0 : index
    %32 = vector.load %arg3[%c2, %c0_18, %c0_19] : memref<8x32x32xf32, #tpu.memory_space<vmem>>, vector<1x32x32xf32>
    %33 = vector.shape_cast %32 : vector<1x32x32xf32> to vector<32x32xf32>
    %cst_20 = arith.constant dense<0.000000e+00> : vector<16x32xf32>
    %34 = tpu.matmul %25, %33, %cst_20 {dimension_numbers = #tpu.dot_dimension_numbers<[1], [0], [0], [1], [0, 0, 1, 1], [], []>} : vector<16x32xf32>, vector<32x32xf32>, vector<16x32xf32> -> vector<16x32xf32>
    %35 = vector.extract_strided_slice %28 {offsets = [0, 0], sizes = [16, 8], strides = [1, 1]} : vector<16x32xf32> to vector<16x8xf32>
    %36 = vector.extract_strided_slice %31 {offsets = [0, 0], sizes = [16, 8], strides = [1, 1]} : vector<16x32xf32> to vector<16x8xf32>
    %cst_21 = arith.constant dense<0.000000e+00> : vector<16x16xf32>
    %37 = tpu.matmul %35, %36, %cst_21 {dimension_numbers = #tpu.dot_dimension_numbers<[1], [1], [0], [0], [0, 0, 1, 0], [], []>} : vector<16x8xf32>, vector<16x8xf32>, vector<16x16xf32> -> vector<16x16xf32>
    %38 = arith.addf %37, %1 : vector<16x16xf32>
    %cst_22 = arith.constant dense<0xFF800000> : vector<16xf32>
    %39 = vector.multi_reduction <maximumf>, %38, %cst_22 [1] : vector<16x16xf32> to vector<16xf32>
    %40 = vector.shape_cast %39 : vector<16xf32> to vector<16x1xf32>
    %41 = vector.broadcast %40 : vector<16x1xf32> to vector<16x16xf32>
    %42 = arith.subf %38, %41 : vector<16x16xf32>
    %43 = math.exp %42 : vector<16x16xf32>
    %cst_23 = arith.constant dense<0.000000e+00> : vector<16xf32>
    %44 = vector.multi_reduction <add>, %43, %cst_23 [1] : vector<16x16xf32> to vector<16xf32>
    %45 = vector.shape_cast %44 : vector<16xf32> to vector<16x1xf32>
    %46 = tpu.reciprocal %45 {approx = true} : vector<16x1xf32> -> vector<16x1xf32>
    %47 = vector.broadcast %46 : vector<16x1xf32> to vector<16x16xf32>
    %48 = arith.mulf %43, %47 : vector<16x16xf32>
    %49 = vector.extract_strided_slice %34 {offsets = [0, 0], sizes = [16, 8], strides = [1, 1]} : vector<16x32xf32> to vector<16x8xf32>
    %cst_24 = arith.constant dense<0.000000e+00> : vector<16x8xf32>
    %50 = tpu.matmul %48, %49, %cst_24 {dimension_numbers = #tpu.dot_dimension_numbers<[1], [0], [0], [1], [0, 0, 1, 1], [], []>} : vector<16x16xf32>, vector<16x8xf32>, vector<16x8xf32> -> vector<16x8xf32>
    %51 = vector.extract_strided_slice %28 {offsets = [0, 8], sizes = [16, 8], strides = [1, 1]} : vector<16x32xf32> to vector<16x8xf32>
    %52 = vector.extract_strided_slice %31 {offsets = [0, 8], sizes = [16, 8], strides = [1, 1]} : vector<16x32xf32> to vector<16x8xf32>
    %cst_25 = arith.constant dense<0.000000e+00> : vector<16x16xf32>
    %53 = tpu.matmul %51, %52, %cst_25 {dimension_numbers = #tpu.dot_dimension_numbers<[1], [1], [0], [0], [0, 0, 1, 0], [], []>} : vector<16x8xf32>, vector<16x8xf32>, vector<16x16xf32> -> vector<16x16xf32>
    %54 = arith.addf %53, %1 : vector<16x16xf32>
    %cst_26 = arith.constant dense<0xFF800000> : vector<16xf32>
    %55 = vector.multi_reduction <maximumf>, %54, %cst_26 [1] : vector<16x16xf32> to vector<16xf32>
    %56 = vector.shape_cast %55 : vector<16xf32> to vector<16x1xf32>
    %57 = vector.broadcast %56 : vector<16x1xf32> to vector<16x16xf32>
    %58 = arith.subf %54, %57 : vector<16x16xf32>
    %59 = math.exp %58 : vector<16x16xf32>
    %cst_27 = arith.constant dense<0.000000e+00> : vector<16xf32>
    %60 = vector.multi_reduction <add>, %59, %cst_27 [1] : vector<16x16xf32> to vector<16xf32>
    %61 = vector.shape_cast %60 : vector<16xf32> to vector<16x1xf32>
    %62 = tpu.reciprocal %61 {approx = true} : vector<16x1xf32> -> vector<16x1xf32>
    %63 = vector.broadcast %62 : vector<16x1xf32> to vector<16x16xf32>
    %64 = arith.mulf %59, %63 : vector<16x16xf32>
    %65 = vector.extract_strided_slice %34 {offsets = [0, 8], sizes = [16, 8], strides = [1, 1]} : vector<16x32xf32> to vector<16x8xf32>
    %cst_28 = arith.constant dense<0.000000e+00> : vector<16x8xf32>
    %66 = tpu.matmul %64, %65, %cst_28 {dimension_numbers = #tpu.dot_dimension_numbers<[1], [0], [0], [1], [0, 0, 1, 1], [], []>} : vector<16x16xf32>, vector<16x8xf32>, vector<16x8xf32> -> vector<16x8xf32>
    %67 = vector.extract_strided_slice %28 {offsets = [0, 16], sizes = [16, 8], strides = [1, 1]} : vector<16x32xf32> to vector<16x8xf32>
    %68 = vector.extract_strided_slice %31 {offsets = [0, 16], sizes = [16, 8], strides = [1, 1]} : vector<16x32xf32> to vector<16x8xf32>
    %cst_29 = arith.constant dense<0.000000e+00> : vector<16x16xf32>
    %69 = tpu.matmul %67, %68, %cst_29 {dimension_numbers = #tpu.dot_dimension_numbers<[1], [1], [0], [0], [0, 0, 1, 0], [], []>} : vector<16x8xf32>, vector<16x8xf32>, vector<16x16xf32> -> vector<16x16xf32>
    %70 = arith.addf %69, %1 : vector<16x16xf32>
    %cst_30 = arith.constant dense<0xFF800000> : vector<16xf32>
    %71 = vector.multi_reduction <maximumf>, %70, %cst_30 [1] : vector<16x16xf32> to vector<16xf32>
    %72 = vector.shape_cast %71 : vector<16xf32> to vector<16x1xf32>
    %73 = vector.broadcast %72 : vector<16x1xf32> to vector<16x16xf32>
    %74 = arith.subf %70, %73 : vector<16x16xf32>
    %75 = math.exp %74 : vector<16x16xf32>
    %cst_31 = arith.constant dense<0.000000e+00> : vector<16xf32>
    %76 = vector.multi_reduction <add>, %75, %cst_31 [1] : vector<16x16xf32> to vector<16xf32>
    %77 = vector.shape_cast %76 : vector<16xf32> to vector<16x1xf32>
    %78 = tpu.reciprocal %77 {approx = true} : vector<16x1xf32> -> vector<16x1xf32>
    %79 = vector.broadcast %78 : vector<16x1xf32> to vector<16x16xf32>
    %80 = arith.mulf %75, %79 : vector<16x16xf32>
    %81 = vector.extract_strided_slice %34 {offsets = [0, 16], sizes = [16, 8], strides = [1, 1]} : vector<16x32xf32> to vector<16x8xf32>
    %cst_32 = arith.constant dense<0.000000e+00> : vector<16x8xf32>
    %82 = tpu.matmul %80, %81, %cst_32 {dimension_numbers = #tpu.dot_dimension_numbers<[1], [0], [0], [1], [0, 0, 1, 1], [], []>} : vector<16x16xf32>, vector<16x8xf32>, vector<16x8xf32> -> vector<16x8xf32>
    %83 = vector.extract_strided_slice %28 {offsets = [0, 24], sizes = [16, 8], strides = [1, 1]} : vector<16x32xf32> to vector<16x8xf32>
    %84 = vector.extract_strided_slice %31 {offsets = [0, 24], sizes = [16, 8], strides = [1, 1]} : vector<16x32xf32> to vector<16x8xf32>
    %cst_33 = arith.constant dense<0.000000e+00> : vector<16x16xf32>
    %85 = tpu.matmul %83, %84, %cst_33 {dimension_numbers = #tpu.dot_dimension_numbers<[1], [1], [0], [0], [0, 0, 1, 0], [], []>} : vector<16x8xf32>, vector<16x8xf32>, vector<16x16xf32> -> vector<16x16xf32>
    %86 = arith.addf %85, %1 : vector<16x16xf32>
    %cst_34 = arith.constant dense<0xFF800000> : vector<16xf32>
    %87 = vector.multi_reduction <maximumf>, %86, %cst_34 [1] : vector<16x16xf32> to vector<16xf32>
    %88 = vector.shape_cast %87 : vector<16xf32> to vector<16x1xf32>
    %89 = vector.broadcast %88 : vector<16x1xf32> to vector<16x16xf32>
    %90 = arith.subf %86, %89 : vector<16x16xf32>
    %91 = math.exp %90 : vector<16x16xf32>
    %cst_35 = arith.constant dense<0.000000e+00> : vector<16xf32>
    %92 = vector.multi_reduction <add>, %91, %cst_35 [1] : vector<16x16xf32> to vector<16xf32>
    %93 = vector.shape_cast %92 : vector<16xf32> to vector<16x1xf32>
    %94 = tpu.reciprocal %93 {approx = true} : vector<16x1xf32> -> vector<16x1xf32>
    %95 = vector.broadcast %94 : vector<16x1xf32> to vector<16x16xf32>
    %96 = arith.mulf %91, %95 : vector<16x16xf32>
    %97 = vector.extract_strided_slice %34 {offsets = [0, 24], sizes = [16, 8], strides = [1, 1]} : vector<16x32xf32> to vector<16x8xf32>
    %cst_36 = arith.constant dense<0.000000e+00> : vector<16x8xf32>
    %98 = tpu.matmul %96, %97, %cst_36 {dimension_numbers = #tpu.dot_dimension_numbers<[1], [0], [0], [1], [0, 0, 1, 1], [], []>} : vector<16x16xf32>, vector<16x8xf32>, vector<16x8xf32> -> vector<16x8xf32>
    %99 = tpu.concatenate %50, %66, %82, %98 in 1 : vector<16x8xf32>, vector<16x8xf32>, vector<16x8xf32>, vector<16x8xf32> -> vector<16x32xf32>
    %c3 = arith.constant 3 : index
    %c0_37 = arith.constant 0 : index
    %c0_38 = arith.constant 0 : index
    %100 = vector.load %arg3[%c3, %c0_37, %c0_38] : memref<8x32x32xf32, #tpu.memory_space<vmem>>, vector<1x32x32xf32>
    %101 = vector.shape_cast %100 : vector<1x32x32xf32> to vector<32x32xf32>
    %cst_39 = arith.constant dense<0.000000e+00> : vector<16x32xf32>
    %102 = tpu.matmul %99, %101, %cst_39 {dimension_numbers = #tpu.dot_dimension_numbers<[1], [0], [0], [1], [0, 0, 1, 1], [], []>} : vector<16x32xf32>, vector<32x32xf32>, vector<16x32xf32> -> vector<16x32xf32>
    %103 = arith.addf %0, %102 : vector<16x32xf32>
    %c2_40 = arith.constant 2 : index
    %c0_41 = arith.constant 0 : index
    %104 = vector.load %arg2[%c2_40, %c0_41] : memref<10x32xf32, #tpu.memory_space<vmem>>, vector<1x32xf32>
    %c3_42 = arith.constant 3 : index
    %c0_43 = arith.constant 0 : index
    %105 = vector.load %arg2[%c3_42, %c0_43] : memref<10x32xf32, #tpu.memory_space<vmem>>, vector<1x32xf32>
    %cst_44 = arith.constant dense<0.000000e+00> : vector<16xf32>
    %106 = vector.multi_reduction <add>, %103, %cst_44 [1] : vector<16x32xf32> to vector<16xf32>
    %107 = vector.shape_cast %106 : vector<16xf32> to vector<16x1xf32>
    %cst_45 = arith.constant 3.200000e+01 : f32
    %108 = vector.broadcast %cst_45 : f32 to vector<16x1xf32>
    %109 = arith.divf %107, %108 : vector<16x1xf32>
    %110 = vector.broadcast %109 : vector<16x1xf32> to vector<16x32xf32>
    %111 = arith.subf %103, %110 : vector<16x32xf32>
    %112 = arith.mulf %111, %111 : vector<16x32xf32>
    %cst_46 = arith.constant dense<0.000000e+00> : vector<16xf32>
    %113 = vector.multi_reduction <add>, %112, %cst_46 [1] : vector<16x32xf32> to vector<16xf32>
    %114 = vector.shape_cast %113 : vector<16xf32> to vector<16x1xf32>
    %cst_47 = arith.constant 3.200000e+01 : f32
    %115 = vector.broadcast %cst_47 : f32 to vector<16x1xf32>
    %116 = arith.divf %114, %115 : vector<16x1xf32>
    %117 = vector.broadcast %109 : vector<16x1xf32> to vector<16x32xf32>
    %118 = arith.subf %103, %117 : vector<16x32xf32>
    %cst_48 = arith.constant 9.99999974E-6 : f32
    %119 = vector.broadcast %cst_48 : f32 to vector<16x1xf32>
    %120 = arith.addf %116, %119 : vector<16x1xf32>
    %121 = math.rsqrt %120 : vector<16x1xf32>
    %122 = vector.broadcast %121 : vector<16x1xf32> to vector<16x32xf32>
    %123 = arith.mulf %118, %122 : vector<16x32xf32>
    %124 = vector.broadcast %104 : vector<1x32xf32> to vector<16x32xf32>
    %125 = arith.mulf %123, %124 : vector<16x32xf32>
    %126 = vector.broadcast %105 : vector<1x32xf32> to vector<16x32xf32>
    %127 = arith.addf %125, %126 : vector<16x32xf32>
    %c0_49 = arith.constant 0 : index
    %c0_50 = arith.constant 0 : index
    %c0_51 = arith.constant 0 : index
    %128 = vector.load %arg6[%c0_49, %c0_50, %c0_51] : memref<2x2x128xf32, #tpu.memory_space<vmem>>, vector<1x2x128xf32>
    %129 = vector.shape_cast %128 : vector<1x2x128xf32> to vector<2x128xf32>
    %c0_52 = arith.constant 0 : index
    %c0_53 = arith.constant 0 : index
    %c0_54 = arith.constant 0 : index
    %130 = vector.load %arg4[%c0_52, %c0_53, %c0_54] : memref<2x32x128xf32, #tpu.memory_space<vmem>>, vector<1x32x128xf32>
    %131 = vector.shape_cast %130 : vector<1x32x128xf32> to vector<32x128xf32>
    %cst_55 = arith.constant dense<0.000000e+00> : vector<16x128xf32>
    %132 = tpu.matmul %127, %131, %cst_55 {dimension_numbers = #tpu.dot_dimension_numbers<[1], [0], [0], [1], [0, 0, 1, 1], [], []>} : vector<16x32xf32>, vector<32x128xf32>, vector<16x128xf32> -> vector<16x128xf32>
    %133 = vector.extract_strided_slice %129 {offsets = [0, 0], sizes = [1, 128], strides = [1, 1]} : vector<2x128xf32> to vector<1x128xf32>
    %134 = vector.broadcast %133 : vector<1x128xf32> to vector<16x128xf32>
    %135 = arith.addf %132, %134 : vector<16x128xf32>
    %cst_56 = arith.constant 0.000000e+00 : f32
    %136 = vector.broadcast %cst_56 : f32 to vector<16x128xf32>
    %137 = arith.maximumf %135, %136 : vector<16x128xf32>
    %c0_57 = arith.constant 0 : index
    %c0_58 = arith.constant 0 : index
    %c0_59 = arith.constant 0 : index
    %138 = vector.load %arg5[%c0_57, %c0_58, %c0_59] : memref<2x128x32xf32, #tpu.memory_space<vmem>>, vector<1x128x32xf32>
    %139 = vector.shape_cast %138 : vector<1x128x32xf32> to vector<128x32xf32>
    %cst_60 = arith.constant dense<0.000000e+00> : vector<16x32xf32>
    %140 = tpu.matmul %137, %139, %cst_60 {dimension_numbers = #tpu.dot_dimension_numbers<[1], [0], [0], [1], [0, 0, 1, 1], [], []>} : vector<16x128xf32>, vector<128x32xf32>, vector<16x32xf32> -> vector<16x32xf32>
    %141 = vector.extract_strided_slice %129 {offsets = [1, 0], sizes = [1, 32], strides = [1, 1]} : vector<2x128xf32> to vector<1x32xf32>
    %142 = vector.broadcast %141 : vector<1x32xf32> to vector<16x32xf32>
    %143 = arith.addf %140, %142 : vector<16x32xf32>
    %144 = arith.addf %103, %143 : vector<16x32xf32>
    %c4 = arith.constant 4 : index
    %c0_61 = arith.constant 0 : index
    %145 = vector.load %arg2[%c4, %c0_61] : memref<10x32xf32, #tpu.memory_space<vmem>>, vector<1x32xf32>
    %c5 = arith.constant 5 : index
    %c0_62 = arith.constant 0 : index
    %146 = vector.load %arg2[%c5, %c0_62] : memref<10x32xf32, #tpu.memory_space<vmem>>, vector<1x32xf32>
    %cst_63 = arith.constant dense<0.000000e+00> : vector<16xf32>
    %147 = vector.multi_reduction <add>, %144, %cst_63 [1] : vector<16x32xf32> to vector<16xf32>
    %148 = vector.shape_cast %147 : vector<16xf32> to vector<16x1xf32>
    %cst_64 = arith.constant 3.200000e+01 : f32
    %149 = vector.broadcast %cst_64 : f32 to vector<16x1xf32>
    %150 = arith.divf %148, %149 : vector<16x1xf32>
    %151 = vector.broadcast %150 : vector<16x1xf32> to vector<16x32xf32>
    %152 = arith.subf %144, %151 : vector<16x32xf32>
    %153 = arith.mulf %152, %152 : vector<16x32xf32>
    %cst_65 = arith.constant dense<0.000000e+00> : vector<16xf32>
    %154 = vector.multi_reduction <add>, %153, %cst_65 [1] : vector<16x32xf32> to vector<16xf32>
    %155 = vector.shape_cast %154 : vector<16xf32> to vector<16x1xf32>
    %cst_66 = arith.constant 3.200000e+01 : f32
    %156 = vector.broadcast %cst_66 : f32 to vector<16x1xf32>
    %157 = arith.divf %155, %156 : vector<16x1xf32>
    %158 = vector.broadcast %150 : vector<16x1xf32> to vector<16x32xf32>
    %159 = arith.subf %144, %158 : vector<16x32xf32>
    %cst_67 = arith.constant 9.99999974E-6 : f32
    %160 = vector.broadcast %cst_67 : f32 to vector<16x1xf32>
    %161 = arith.addf %157, %160 : vector<16x1xf32>
    %162 = math.rsqrt %161 : vector<16x1xf32>
    %163 = vector.broadcast %162 : vector<16x1xf32> to vector<16x32xf32>
    %164 = arith.mulf %159, %163 : vector<16x32xf32>
    %165 = vector.broadcast %145 : vector<1x32xf32> to vector<16x32xf32>
    %166 = arith.mulf %164, %165 : vector<16x32xf32>
    %167 = vector.broadcast %146 : vector<1x32xf32> to vector<16x32xf32>
    %168 = arith.addf %166, %167 : vector<16x32xf32>
    %c4_68 = arith.constant 4 : index
    %c0_69 = arith.constant 0 : index
    %c0_70 = arith.constant 0 : index
    %169 = vector.load %arg3[%c4_68, %c0_69, %c0_70] : memref<8x32x32xf32, #tpu.memory_space<vmem>>, vector<1x32x32xf32>
    %170 = vector.shape_cast %169 : vector<1x32x32xf32> to vector<32x32xf32>
    %cst_71 = arith.constant dense<0.000000e+00> : vector<16x32xf32>
    %171 = tpu.matmul %168, %170, %cst_71 {dimension_numbers = #tpu.dot_dimension_numbers<[1], [0], [0], [1], [0, 0, 1, 1], [], []>} : vector<16x32xf32>, vector<32x32xf32>, vector<16x32xf32> -> vector<16x32xf32>
    %c5_72 = arith.constant 5 : index
    %c0_73 = arith.constant 0 : index
    %c0_74 = arith.constant 0 : index
    %172 = vector.load %arg3[%c5_72, %c0_73, %c0_74] : memref<8x32x32xf32, #tpu.memory_space<vmem>>, vector<1x32x32xf32>
    %173 = vector.shape_cast %172 : vector<1x32x32xf32> to vector<32x32xf32>
    %cst_75 = arith.constant dense<0.000000e+00> : vector<16x32xf32>
    %174 = tpu.matmul %168, %173, %cst_75 {dimension_numbers = #tpu.dot_dimension_numbers<[1], [0], [0], [1], [0, 0, 1, 1], [], []>} : vector<16x32xf32>, vector<32x32xf32>, vector<16x32xf32> -> vector<16x32xf32>
    %c6 = arith.constant 6 : index
    %c0_76 = arith.constant 0 : index
    %c0_77 = arith.constant 0 : index
    %175 = vector.load %arg3[%c6, %c0_76, %c0_77] : memref<8x32x32xf32, #tpu.memory_space<vmem>>, vector<1x32x32xf32>
    %176 = vector.shape_cast %175 : vector<1x32x32xf32> to vector<32x32xf32>
    %cst_78 = arith.constant dense<0.000000e+00> : vector<16x32xf32>
    %177 = tpu.matmul %168, %176, %cst_78 {dimension_numbers = #tpu.dot_dimension_numbers<[1], [0], [0], [1], [0, 0, 1, 1], [], []>} : vector<16x32xf32>, vector<32x32xf32>, vector<16x32xf32> -> vector<16x32xf32>
    %178 = vector.extract_strided_slice %171 {offsets = [0, 0], sizes = [16, 8], strides = [1, 1]} : vector<16x32xf32> to vector<16x8xf32>
    %179 = vector.extract_strided_slice %174 {offsets = [0, 0], sizes = [16, 8], strides = [1, 1]} : vector<16x32xf32> to vector<16x8xf32>
    %cst_79 = arith.constant dense<0.000000e+00> : vector<16x16xf32>
    %180 = tpu.matmul %178, %179, %cst_79 {dimension_numbers = #tpu.dot_dimension_numbers<[1], [1], [0], [0], [0, 0, 1, 0], [], []>} : vector<16x8xf32>, vector<16x8xf32>, vector<16x16xf32> -> vector<16x16xf32>
    %181 = arith.addf %180, %1 : vector<16x16xf32>
    %cst_80 = arith.constant dense<0xFF800000> : vector<16xf32>
    %182 = vector.multi_reduction <maximumf>, %181, %cst_80 [1] : vector<16x16xf32> to vector<16xf32>
    %183 = vector.shape_cast %182 : vector<16xf32> to vector<16x1xf32>
    %184 = vector.broadcast %183 : vector<16x1xf32> to vector<16x16xf32>
    %185 = arith.subf %181, %184 : vector<16x16xf32>
    %186 = math.exp %185 : vector<16x16xf32>
    %cst_81 = arith.constant dense<0.000000e+00> : vector<16xf32>
    %187 = vector.multi_reduction <add>, %186, %cst_81 [1] : vector<16x16xf32> to vector<16xf32>
    %188 = vector.shape_cast %187 : vector<16xf32> to vector<16x1xf32>
    %189 = tpu.reciprocal %188 {approx = true} : vector<16x1xf32> -> vector<16x1xf32>
    %190 = vector.broadcast %189 : vector<16x1xf32> to vector<16x16xf32>
    %191 = arith.mulf %186, %190 : vector<16x16xf32>
    %192 = vector.extract_strided_slice %177 {offsets = [0, 0], sizes = [16, 8], strides = [1, 1]} : vector<16x32xf32> to vector<16x8xf32>
    %cst_82 = arith.constant dense<0.000000e+00> : vector<16x8xf32>
    %193 = tpu.matmul %191, %192, %cst_82 {dimension_numbers = #tpu.dot_dimension_numbers<[1], [0], [0], [1], [0, 0, 1, 1], [], []>} : vector<16x16xf32>, vector<16x8xf32>, vector<16x8xf32> -> vector<16x8xf32>
    %194 = vector.extract_strided_slice %171 {offsets = [0, 8], sizes = [16, 8], strides = [1, 1]} : vector<16x32xf32> to vector<16x8xf32>
    %195 = vector.extract_strided_slice %174 {offsets = [0, 8], sizes = [16, 8], strides = [1, 1]} : vector<16x32xf32> to vector<16x8xf32>
    %cst_83 = arith.constant dense<0.000000e+00> : vector<16x16xf32>
    %196 = tpu.matmul %194, %195, %cst_83 {dimension_numbers = #tpu.dot_dimension_numbers<[1], [1], [0], [0], [0, 0, 1, 0], [], []>} : vector<16x8xf32>, vector<16x8xf32>, vector<16x16xf32> -> vector<16x16xf32>
    %197 = arith.addf %196, %1 : vector<16x16xf32>
    %cst_84 = arith.constant dense<0xFF800000> : vector<16xf32>
    %198 = vector.multi_reduction <maximumf>, %197, %cst_84 [1] : vector<16x16xf32> to vector<16xf32>
    %199 = vector.shape_cast %198 : vector<16xf32> to vector<16x1xf32>
    %200 = vector.broadcast %199 : vector<16x1xf32> to vector<16x16xf32>
    %201 = arith.subf %197, %200 : vector<16x16xf32>
    %202 = math.exp %201 : vector<16x16xf32>
    %cst_85 = arith.constant dense<0.000000e+00> : vector<16xf32>
    %203 = vector.multi_reduction <add>, %202, %cst_85 [1] : vector<16x16xf32> to vector<16xf32>
    %204 = vector.shape_cast %203 : vector<16xf32> to vector<16x1xf32>
    %205 = tpu.reciprocal %204 {approx = true} : vector<16x1xf32> -> vector<16x1xf32>
    %206 = vector.broadcast %205 : vector<16x1xf32> to vector<16x16xf32>
    %207 = arith.mulf %202, %206 : vector<16x16xf32>
    %208 = vector.extract_strided_slice %177 {offsets = [0, 8], sizes = [16, 8], strides = [1, 1]} : vector<16x32xf32> to vector<16x8xf32>
    %cst_86 = arith.constant dense<0.000000e+00> : vector<16x8xf32>
    %209 = tpu.matmul %207, %208, %cst_86 {dimension_numbers = #tpu.dot_dimension_numbers<[1], [0], [0], [1], [0, 0, 1, 1], [], []>} : vector<16x16xf32>, vector<16x8xf32>, vector<16x8xf32> -> vector<16x8xf32>
    %210 = vector.extract_strided_slice %171 {offsets = [0, 16], sizes = [16, 8], strides = [1, 1]} : vector<16x32xf32> to vector<16x8xf32>
    %211 = vector.extract_strided_slice %174 {offsets = [0, 16], sizes = [16, 8], strides = [1, 1]} : vector<16x32xf32> to vector<16x8xf32>
    %cst_87 = arith.constant dense<0.000000e+00> : vector<16x16xf32>
    %212 = tpu.matmul %210, %211, %cst_87 {dimension_numbers = #tpu.dot_dimension_numbers<[1], [1], [0], [0], [0, 0, 1, 0], [], []>} : vector<16x8xf32>, vector<16x8xf32>, vector<16x16xf32> -> vector<16x16xf32>
    %213 = arith.addf %212, %1 : vector<16x16xf32>
    %cst_88 = arith.constant dense<0xFF800000> : vector<16xf32>
    %214 = vector.multi_reduction <maximumf>, %213, %cst_88 [1] : vector<16x16xf32> to vector<16xf32>
    %215 = vector.shape_cast %214 : vector<16xf32> to vector<16x1xf32>
    %216 = vector.broadcast %215 : vector<16x1xf32> to vector<16x16xf32>
    %217 = arith.subf %213, %216 : vector<16x16xf32>
    %218 = math.exp %217 : vector<16x16xf32>
    %cst_89 = arith.constant dense<0.000000e+00> : vector<16xf32>
    %219 = vector.multi_reduction <add>, %218, %cst_89 [1] : vector<16x16xf32> to vector<16xf32>
    %220 = vector.shape_cast %219 : vector<16xf32> to vector<16x1xf32>
    %221 = tpu.reciprocal %220 {approx = true} : vector<16x1xf32> -> vector<16x1xf32>
    %222 = vector.broadcast %221 : vector<16x1xf32> to vector<16x16xf32>
    %223 = arith.mulf %218, %222 : vector<16x16xf32>
    %224 = vector.extract_strided_slice %177 {offsets = [0, 16], sizes = [16, 8], strides = [1, 1]} : vector<16x32xf32> to vector<16x8xf32>
    %cst_90 = arith.constant dense<0.000000e+00> : vector<16x8xf32>
    %225 = tpu.matmul %223, %224, %cst_90 {dimension_numbers = #tpu.dot_dimension_numbers<[1], [0], [0], [1], [0, 0, 1, 1], [], []>} : vector<16x16xf32>, vector<16x8xf32>, vector<16x8xf32> -> vector<16x8xf32>
    %226 = vector.extract_strided_slice %171 {offsets = [0, 24], sizes = [16, 8], strides = [1, 1]} : vector<16x32xf32> to vector<16x8xf32>
    %227 = vector.extract_strided_slice %174 {offsets = [0, 24], sizes = [16, 8], strides = [1, 1]} : vector<16x32xf32> to vector<16x8xf32>
    %cst_91 = arith.constant dense<0.000000e+00> : vector<16x16xf32>
    %228 = tpu.matmul %226, %227, %cst_91 {dimension_numbers = #tpu.dot_dimension_numbers<[1], [1], [0], [0], [0, 0, 1, 0], [], []>} : vector<16x8xf32>, vector<16x8xf32>, vector<16x16xf32> -> vector<16x16xf32>
    %229 = arith.addf %228, %1 : vector<16x16xf32>
    %cst_92 = arith.constant dense<0xFF800000> : vector<16xf32>
    %230 = vector.multi_reduction <maximumf>, %229, %cst_92 [1] : vector<16x16xf32> to vector<16xf32>
    %231 = vector.shape_cast %230 : vector<16xf32> to vector<16x1xf32>
    %232 = vector.broadcast %231 : vector<16x1xf32> to vector<16x16xf32>
    %233 = arith.subf %229, %232 : vector<16x16xf32>
    %234 = math.exp %233 : vector<16x16xf32>
    %cst_93 = arith.constant dense<0.000000e+00> : vector<16xf32>
    %235 = vector.multi_reduction <add>, %234, %cst_93 [1] : vector<16x16xf32> to vector<16xf32>
    %236 = vector.shape_cast %235 : vector<16xf32> to vector<16x1xf32>
    %237 = tpu.reciprocal %236 {approx = true} : vector<16x1xf32> -> vector<16x1xf32>
    %238 = vector.broadcast %237 : vector<16x1xf32> to vector<16x16xf32>
    %239 = arith.mulf %234, %238 : vector<16x16xf32>
    %240 = vector.extract_strided_slice %177 {offsets = [0, 24], sizes = [16, 8], strides = [1, 1]} : vector<16x32xf32> to vector<16x8xf32>
    %cst_94 = arith.constant dense<0.000000e+00> : vector<16x8xf32>
    %241 = tpu.matmul %239, %240, %cst_94 {dimension_numbers = #tpu.dot_dimension_numbers<[1], [0], [0], [1], [0, 0, 1, 1], [], []>} : vector<16x16xf32>, vector<16x8xf32>, vector<16x8xf32> -> vector<16x8xf32>
    %242 = tpu.concatenate %193, %209, %225, %241 in 1 : vector<16x8xf32>, vector<16x8xf32>, vector<16x8xf32>, vector<16x8xf32> -> vector<16x32xf32>
    %c7 = arith.constant 7 : index
    %c0_95 = arith.constant 0 : index
    %c0_96 = arith.constant 0 : index
    %243 = vector.load %arg3[%c7, %c0_95, %c0_96] : memref<8x32x32xf32, #tpu.memory_space<vmem>>, vector<1x32x32xf32>
    %244 = vector.shape_cast %243 : vector<1x32x32xf32> to vector<32x32xf32>
    %cst_97 = arith.constant dense<0.000000e+00> : vector<16x32xf32>
    %245 = tpu.matmul %242, %244, %cst_97 {dimension_numbers = #tpu.dot_dimension_numbers<[1], [0], [0], [1], [0, 0, 1, 1], [], []>} : vector<16x32xf32>, vector<32x32xf32>, vector<16x32xf32> -> vector<16x32xf32>
    %246 = arith.addf %144, %245 : vector<16x32xf32>
    %c6_98 = arith.constant 6 : index
    %c0_99 = arith.constant 0 : index
    %247 = vector.load %arg2[%c6_98, %c0_99] : memref<10x32xf32, #tpu.memory_space<vmem>>, vector<1x32xf32>
    %c7_100 = arith.constant 7 : index
    %c0_101 = arith.constant 0 : index
    %248 = vector.load %arg2[%c7_100, %c0_101] : memref<10x32xf32, #tpu.memory_space<vmem>>, vector<1x32xf32>
    %cst_102 = arith.constant dense<0.000000e+00> : vector<16xf32>
    %249 = vector.multi_reduction <add>, %246, %cst_102 [1] : vector<16x32xf32> to vector<16xf32>
    %250 = vector.shape_cast %249 : vector<16xf32> to vector<16x1xf32>
    %cst_103 = arith.constant 3.200000e+01 : f32
    %251 = vector.broadcast %cst_103 : f32 to vector<16x1xf32>
    %252 = arith.divf %250, %251 : vector<16x1xf32>
    %253 = vector.broadcast %252 : vector<16x1xf32> to vector<16x32xf32>
    %254 = arith.subf %246, %253 : vector<16x32xf32>
    %255 = arith.mulf %254, %254 : vector<16x32xf32>
    %cst_104 = arith.constant dense<0.000000e+00> : vector<16xf32>
    %256 = vector.multi_reduction <add>, %255, %cst_104 [1] : vector<16x32xf32> to vector<16xf32>
    %257 = vector.shape_cast %256 : vector<16xf32> to vector<16x1xf32>
    %cst_105 = arith.constant 3.200000e+01 : f32
    %258 = vector.broadcast %cst_105 : f32 to vector<16x1xf32>
    %259 = arith.divf %257, %258 : vector<16x1xf32>
    %260 = vector.broadcast %252 : vector<16x1xf32> to vector<16x32xf32>
    %261 = arith.subf %246, %260 : vector<16x32xf32>
    %cst_106 = arith.constant 9.99999974E-6 : f32
    %262 = vector.broadcast %cst_106 : f32 to vector<16x1xf32>
    %263 = arith.addf %259, %262 : vector<16x1xf32>
    %264 = math.rsqrt %263 : vector<16x1xf32>
    %265 = vector.broadcast %264 : vector<16x1xf32> to vector<16x32xf32>
    %266 = arith.mulf %261, %265 : vector<16x32xf32>
    %267 = vector.broadcast %247 : vector<1x32xf32> to vector<16x32xf32>
    %268 = arith.mulf %266, %267 : vector<16x32xf32>
    %269 = vector.broadcast %248 : vector<1x32xf32> to vector<16x32xf32>
    %270 = arith.addf %268, %269 : vector<16x32xf32>
    %c1_107 = arith.constant 1 : index
    %c0_108 = arith.constant 0 : index
    %c0_109 = arith.constant 0 : index
    %271 = vector.load %arg6[%c1_107, %c0_108, %c0_109] : memref<2x2x128xf32, #tpu.memory_space<vmem>>, vector<1x2x128xf32>
    %272 = vector.shape_cast %271 : vector<1x2x128xf32> to vector<2x128xf32>
    %c1_110 = arith.constant 1 : index
    %c0_111 = arith.constant 0 : index
    %c0_112 = arith.constant 0 : index
    %273 = vector.load %arg4[%c1_110, %c0_111, %c0_112] : memref<2x32x128xf32, #tpu.memory_space<vmem>>, vector<1x32x128xf32>
    %274 = vector.shape_cast %273 : vector<1x32x128xf32> to vector<32x128xf32>
    %cst_113 = arith.constant dense<0.000000e+00> : vector<16x128xf32>
    %275 = tpu.matmul %270, %274, %cst_113 {dimension_numbers = #tpu.dot_dimension_numbers<[1], [0], [0], [1], [0, 0, 1, 1], [], []>} : vector<16x32xf32>, vector<32x128xf32>, vector<16x128xf32> -> vector<16x128xf32>
    %276 = vector.extract_strided_slice %272 {offsets = [0, 0], sizes = [1, 128], strides = [1, 1]} : vector<2x128xf32> to vector<1x128xf32>
    %277 = vector.broadcast %276 : vector<1x128xf32> to vector<16x128xf32>
    %278 = arith.addf %275, %277 : vector<16x128xf32>
    %cst_114 = arith.constant 0.000000e+00 : f32
    %279 = vector.broadcast %cst_114 : f32 to vector<16x128xf32>
    %280 = arith.maximumf %278, %279 : vector<16x128xf32>
    %c1_115 = arith.constant 1 : index
    %c0_116 = arith.constant 0 : index
    %c0_117 = arith.constant 0 : index
    %281 = vector.load %arg5[%c1_115, %c0_116, %c0_117] : memref<2x128x32xf32, #tpu.memory_space<vmem>>, vector<1x128x32xf32>
    %282 = vector.shape_cast %281 : vector<1x128x32xf32> to vector<128x32xf32>
    %cst_118 = arith.constant dense<0.000000e+00> : vector<16x32xf32>
    %283 = tpu.matmul %280, %282, %cst_118 {dimension_numbers = #tpu.dot_dimension_numbers<[1], [0], [0], [1], [0, 0, 1, 1], [], []>} : vector<16x128xf32>, vector<128x32xf32>, vector<16x32xf32> -> vector<16x32xf32>
    %284 = vector.extract_strided_slice %272 {offsets = [1, 0], sizes = [1, 32], strides = [1, 1]} : vector<2x128xf32> to vector<1x32xf32>
    %285 = vector.broadcast %284 : vector<1x32xf32> to vector<16x32xf32>
    %286 = arith.addf %283, %285 : vector<16x32xf32>
    %287 = arith.addf %246, %286 : vector<16x32xf32>
    %c8 = arith.constant 8 : index
    %c0_119 = arith.constant 0 : index
    %288 = vector.load %arg2[%c8, %c0_119] : memref<10x32xf32, #tpu.memory_space<vmem>>, vector<1x32xf32>
    %c9 = arith.constant 9 : index
    %c0_120 = arith.constant 0 : index
    %289 = vector.load %arg2[%c9, %c0_120] : memref<10x32xf32, #tpu.memory_space<vmem>>, vector<1x32xf32>
    %cst_121 = arith.constant dense<0.000000e+00> : vector<16xf32>
    %290 = vector.multi_reduction <add>, %287, %cst_121 [1] : vector<16x32xf32> to vector<16xf32>
    %291 = vector.shape_cast %290 : vector<16xf32> to vector<16x1xf32>
    %cst_122 = arith.constant 3.200000e+01 : f32
    %292 = vector.broadcast %cst_122 : f32 to vector<16x1xf32>
    %293 = arith.divf %291, %292 : vector<16x1xf32>
    %294 = vector.broadcast %293 : vector<16x1xf32> to vector<16x32xf32>
    %295 = arith.subf %287, %294 : vector<16x32xf32>
    %296 = arith.mulf %295, %295 : vector<16x32xf32>
    %cst_123 = arith.constant dense<0.000000e+00> : vector<16xf32>
    %297 = vector.multi_reduction <add>, %296, %cst_123 [1] : vector<16x32xf32> to vector<16xf32>
    %298 = vector.shape_cast %297 : vector<16xf32> to vector<16x1xf32>
    %cst_124 = arith.constant 3.200000e+01 : f32
    %299 = vector.broadcast %cst_124 : f32 to vector<16x1xf32>
    %300 = arith.divf %298, %299 : vector<16x1xf32>
    %301 = vector.broadcast %293 : vector<16x1xf32> to vector<16x32xf32>
    %302 = arith.subf %287, %301 : vector<16x32xf32>
    %cst_125 = arith.constant 9.99999974E-6 : f32
    %303 = vector.broadcast %cst_125 : f32 to vector<16x1xf32>
    %304 = arith.addf %300, %303 : vector<16x1xf32>
    %305 = math.rsqrt %304 : vector<16x1xf32>
    %306 = vector.broadcast %305 : vector<16x1xf32> to vector<16x32xf32>
    %307 = arith.mulf %302, %306 : vector<16x32xf32>
    %308 = vector.broadcast %288 : vector<1x32xf32> to vector<16x32xf32>
    %309 = arith.mulf %307, %308 : vector<16x32xf32>
    %310 = vector.broadcast %289 : vector<1x32xf32> to vector<16x32xf32>
    %311 = arith.addf %309, %310 : vector<16x32xf32>
    %c0_126 = arith.constant 0 : index
    %c0_127 = arith.constant 0 : index
    %312 = vector.load %arg7[%c0_126, %c0_127] : memref<32x128xf32, #tpu.memory_space<vmem>>, vector<32x128xf32>
    %cst_128 = arith.constant dense<0.000000e+00> : vector<16x128xf32>
    %313 = tpu.matmul %311, %312, %cst_128 {dimension_numbers = #tpu.dot_dimension_numbers<[1], [0], [0], [1], [0, 0, 1, 1], [], []>} : vector<16x32xf32>, vector<32x128xf32>, vector<16x128xf32> -> vector<16x128xf32>
    %c0_129 = arith.constant 0 : index
    %c0_130 = arith.constant 0 : index
    %314 = vector.load %arg8[%c0_129, %c0_130] : memref<16x128xf32, #tpu.memory_space<vmem>>, vector<16x128xf32>
    tpu.vector_store %arg8[%c0_129, %c0_130], %313 {strides = array<i32>} : memref<16x128xf32, #tpu.memory_space<vmem>>, vector<16x128xf32>,
    return
  }
}

</mosaic_0001>

<llo_original>
// kernel: transformer_forward.1
$region0: #{transformer_forward.1}
  #allocation0 [shape = 'u32[]', space=smem, size = 0x4, offset = 0x4, fixed_abs, tag = 'smem constant byte address 0x4 - core index']
  #allocation1 [shape = 'u32[144,128]{1,0:T(1,128)}', space=vmem, size = 0x12000, scoped, tag = 'internal scratch']
  %s0 = inlined_call_operand.vmem [shape: f32[16,16], index: 0, kind: input, shape index: {}]
  %s1 = inlined_call_operand.vmem [shape: f32[16,32], index: 1, kind: input, shape index: {}]
  %s2 = inlined_call_operand.vmem [shape: f32[10,32], index: 2, kind: input, shape index: {}]
  %s3 = inlined_call_operand.vmem [shape: f32[8,32,32], index: 3, kind: input, shape index: {}]
  %s4 = inlined_call_operand.vmem [shape: f32[2,32,128], index: 4, kind: input, shape index: {}]
  %s5 = inlined_call_operand.vmem [shape: f32[2,128,32], index: 5, kind: input, shape index: {}]
  %s6 = inlined_call_operand.vmem [shape: f32[2,2,128], index: 6, kind: input, shape index: {}]
  %s7 = inlined_call_operand.vmem [shape: f32[32,128], index: 7, kind: input, shape index: {}]
  %s8 = inlined_call_operand.hbm [shape: f32[16,128], index: 8, kind: output, shape index: {}]
  %s9 = sld [smem:[#allocation0]]
  $region42: #{transformer_forward.1} parent=0
    _
  %s11 = ssub.s32 1, %s9
  %s12 = scalar_select 0, %s11, %s9
  $region1: #{transformer_forward.1} parent=0
    #allocation2 [shape = 'u8[8192]{0}', space=vmem, size = 0x2000, scoped, tag = 'output window, operand 0, single buffered']
    #allocation3 [shape = 's32[1]{0}', space=sflag, size = 0x4, scoped, tag = 'scoped memory for transformer_forward.1']
    %13 = vsyncpa [#allocation3], 0
    // Predicated region
    $region2: #{transformer_forward.1} parent=1 // pred_check
      _
    $region3: #{transformer_forward.1} parent=1 // pred_check_branch
      %15 = sbr.rel (0) target = $region5
    $region4: #{transformer_forward.1} parent=1 // pred_region
      _
    $region5: #{transformer_forward.1} parent=1 // pred_fallthru
      _
    // Predicated region
    $region6: #{transformer_forward.1} parent=1 // pred_check
      _
    $region7: #{transformer_forward.1} parent=1 // pred_check_branch
      %17 = sbr.rel (0) target = $region9
    $region8: #{transformer_forward.1} parent=1 // pred_region
      _
    $region9: #{transformer_forward.1} parent=1 // pred_fallthru
      _
    // Predicated region
    $region10: #{transformer_forward.1} parent=1 // pred_check
      _
    $region11: #{transformer_forward.1} parent=1 // pred_check_branch
      %19 = sbr.rel (0) target = $region13
    $region12: #{transformer_forward.1} parent=1 // pred_region
      _
    $region13: #{transformer_forward.1} parent=1 // pred_fallthru
      _
    // Predicated region
    $region14: #{transformer_forward.1} parent=1 // pred_check
      _
    $region15: #{transformer_forward.1} parent=1 // pred_check_branch
      %21 = sbr.rel (0) target = $region17
    $region16: #{transformer_forward.1} parent=1 // pred_region
      _
    $region17: #{transformer_forward.1} parent=1 // pred_fallthru
      _
    // Predicated region
    $region18: #{transformer_forward.1} parent=1 // pred_check
      _
    $region19: #{transformer_forward.1} parent=1 // pred_check_branch
      %23 = sbr.rel (0) target = $region21
    $region20: #{transformer_forward.1} parent=1 // pred_region
      _
    $region21: #{transformer_forward.1} parent=1 // pred_fallthru
      _
    // Predicated region
    $region22: #{transformer_forward.1} parent=1 // pred_check
      _
    $region23: #{transformer_forward.1} parent=1 // pred_check_branch
      %25 = sbr.rel (0) target = $region25
    $region24: #{transformer_forward.1} parent=1 // pred_region
      _
    $region25: #{transformer_forward.1} parent=1 // pred_fallthru
      _
    // Predicated region
    $region26: #{transformer_forward.1} parent=1 // pred_check
      _
    $region27: #{transformer_forward.1} parent=1 // pred_check_branch
      %27 = sbr.rel (0) target = $region29
    $region28: #{transformer_forward.1} parent=1 // pred_region
      _
    $region29: #{transformer_forward.1} parent=1 // pred_fallthru
      _
    // Predicated region
    $region30: #{transformer_forward.1} parent=1 // pred_check
      _
    $region31: #{transformer_forward.1} parent=1 // pred_check_branch
      %29 = sbr.rel (0) target = $region33
    $region32: #{transformer_forward.1} parent=1 // pred_region
      _
    $region33: #{transformer_forward.1} parent=1 // pred_fallthru
      _
    %v30 = vld [vmem:[%s1] sm:$0xff]
    %v31 = vld [vmem:[%s1 + $0x8] sm:$0xff]
    %v32 = vld [vmem:[%s0] sm:$0xff]
    %v33 = vld [vmem:[%s0 + $0x8] sm:$0xff]
    %v34 = vld [vmem:[%s2] sm:$0x1]
    %v35 = vld [vmem:[%s2 + $0x1] sm:$0x1]
    %vm36 = vcmask 261120
    %v37 = vsel %vm36, %v30, 0.0
    %38 = vadd.xlane.f32.xlu0 %v37
    %v39 = vpop.xlane.xlu0 %38
    %v40 = vsel %vm36, %v31, 0.0
    %41 = vadd.xlane.f32.xlu0 %v40
    %v42 = vpop.xlane.xlu0 %41
    %v43 = vrcp.pop 32.0
    %v44 = vmul.f32 %v39, %v43
    %v45 = vmul.f32 %v42, %v43
    %v46 = vsub.f32 %v30, %v44
    %v47 = vsub.f32 %v31, %v45
    %v48 = vmul.f32 %v46, %v46
    %v49 = vmul.f32 %v47, %v47
    %v50 = vsel %vm36, %v48, 0.0
    %51 = vadd.xlane.f32.xlu0 %v50
    %v52 = vpop.xlane.xlu0 %51
    %v53 = vsel %vm36, %v49, 0.0
    %54 = vadd.xlane.f32.xlu0 %v53
    %v55 = vpop.xlane.xlu0 %54
    %v56 = vmul.f32 %v52, %v43
    %v57 = vmul.f32 %v55, %v43
    %v58 = vadd.f32 %v56, 1e-05
    %v59 = vadd.f32 %v57, 1e-05
    %v60 = vrsqrt.pop %v58
    %v61 = vrsqrt.pop %v59
    %v62 = vmul.f32 %v46, %v60
    %v63 = vmul.f32 %v47, %v61
    %v64 = vlaneseq
    %v65 = vshrl.u32 %v64, 7
    %v66 = vsub.s32 0, %v65
    %v67 = vrot.slane %v34, %v66
    %v68 = vmul.f32 %v62, %v67
    %v69 = vmul.f32 %v63, %v67
    %v70 = vlaneseq
    %v71 = vshrl.u32 %v70, 7
    %v72 = vsub.s32 0, %v71
    %v73 = vrot.slane %v35, %v72
    %v74 = vadd.f32 %v68, %v73
    %v75 = vadd.f32 %v69, %v73
    %v76 = vld [vmem:[%s3] sm:$0xff]
    %v77 = vld [vmem:[%s3 + $0x8] sm:$0xff]
    %v78 = vld [vmem:[%s3 + $0x10] sm:$0xff]
    %v79 = vld [vmem:[%s3 + $0x18] sm:$0xff]
    %v81 = vsel %vm36, %v74, 0
    %v84 = vsel %vm36, %v75, 0
    %86 = vmatprep.subr.mxu0 0.0
    %87 = vmatpush1.msra.mxu0 %v76
    %88 = vmatprep.subr.mxu0 0.0
    %89 = vmatpush1.msra.mxu0 %v77
    %90 = vmatprep.subr.mxu0 0.0
    %91 = vmatpush1.msra.mxu0 %v78
    %92 = vmatprep.subr.mxu0 0.0
    %93 = vmatpush1.msra.mxu0 %v79
    %94 = vmatprep.subr.mxu0 0.0
    %95 = vmatpush1.msra.mxu0 0.0
    %96 = vmatprep.subr.mxu0 0.0
    %97 = vmatpush1.msra.mxu0 0.0
    %98 = vmatprep.subr.mxu0 0.0
    %99 = vmatpush1.msra.mxu0 0.0
    %100 = vmatprep.subr.mxu0 0.0
    %101 = vmatpush1.msra.mxu0 0.0
    %102 = vmatprep.subr.mxu0 0.0
    %103 = vmatpush1.msra.mxu0 0.0
    %104 = vmatprep.subr.mxu0 0.0
    %105 = vmatpush1.msra.mxu0 0.0
    %106 = vmatprep.subr.mxu0 0.0
    %107 = vmatpush1.msra.mxu0 0.0
    %108 = vmatprep.subr.mxu0 0.0
    %109 = vmatpush1.msra.mxu0 0.0
    %110 = vmatprep.subr.mxu0 0.0
    %111 = vmatpush1.msra.mxu0 0.0
    %112 = vmatprep.subr.mxu0 0.0
    %113 = vmatpush1.msra.mxu0 0.0
    %114 = vmatprep.subr.mxu0 0.0
    %115 = vmatpush1.msra.mxu0 0.0
    %116 = vmatprep.subr.mxu0 0.0
    %117 = vmatpush1.msra.mxu0 0.0
    %118 = vmatprep.subr.mxu0 0.0
    %119 = vmatpush1.msra.mxu0 0.0
    %120 = vmatprep.subr.mxu0 0.0
    %121 = vmatpush1.msra.mxu0 0.0
    %122 = vmatprep.subr.mxu0 0.0
    %123 = vmatpush1.msra.mxu0 0.0
    %124 = vmatprep.subr.mxu0 0.0
    %125 = vmatpush1.msra.mxu0 0.0
    %126 = vmatprep.subr.mxu0 0.0
    %127 = vmatpush1.msra.mxu0 0.0
    %128 = vmatprep.subr.mxu0 0.0
    %129 = vmatpush1.msra.mxu0 0.0
    %130 = vmatprep.subr.mxu0 0.0
    %131 = vmatpush1.msra.mxu0 0.0
    %132 = vmatprep.subr.mxu0 0.0
    %133 = vmatpush1.msra.mxu0 0.0
    %134 = vmatprep.subr.mxu0 0.0
    %135 = vmatpush1.msra.mxu0 0.0
    %136 = vmatprep.subr.mxu0 0.0
    %137 = vmatpush1.msra.mxu0 0.0
    %138 = vmatprep.subr.mxu0 0.0
    %139 = vmatpush1.msra.mxu0 0.0
    %140 = vmatprep.subr.mxu0 0.0
    %141 = vmatpush1.msra.mxu0 0.0
    %142 = vmatprep.subr.mxu0 0.0
    %143 = vmatpush1.msra.mxu0 0.0
    %144 = vmatprep.subr.mxu0 0.0
    %145 = vmatpush1.msra.mxu0 0.0
    %146 = vmatprep.subr.mxu0 0.0
    %147 = vmatpush1.msra.mxu0 0.0
    %148 = vmatprep.subr.mxu0 0.0
    %149 = vmatpush1.msra.mxu0 0.0
    %150 = vmatprep.mubr.f32.mxu0 0.0
    %151 = vmatmul.mubr.f32.gmra.mrb[0].mxu0 %v81
    %v152 = vpop.f32.mrb[0].mxu0
    %v153 = vadd.f32 0.0, %v152
    %v154 = vpop.f32.mrb[0].mxu0
    %155 = vmatprep.mubr.f32.mxu0 0.0
    %156 = vmatmul.mubr.f32.gmra.mrb[0].mxu0 %v84
    %v157 = vpop.f32.mrb[0].mxu0
    %v158 = vadd.f32 0.0, %v157
    %v159 = vpop.f32.mrb[0].mxu0
    %160 = vdwg.mxu0
    %s161 = scalar_lea.vmem %s3, 32
    %v162 = vld [vmem:[%s161] sm:$0xff]
    %v163 = vld [vmem:[%s161 + $0x8] sm:$0xff]
    %v164 = vld [vmem:[%s161 + $0x10] sm:$0xff]
    %v165 = vld [vmem:[%s161 + $0x18] sm:$0xff]
    %166 = vmatprep.subr.mxu0 0.0
    %167 = vmatpush1.msra.mxu0 %v162
    %168 = vmatprep.subr.mxu0 0.0
    %169 = vmatpush1.msra.mxu0 %v163
    %170 = vmatprep.subr.mxu0 0.0
    %171 = vmatpush1.msra.mxu0 %v164
    %172 = vmatprep.subr.mxu0 0.0
    %173 = vmatpush1.msra.mxu0 %v165
    %174 = vmatprep.subr.mxu0 0.0
    %175 = vmatpush1.msra.mxu0 0.0
    %176 = vmatprep.subr.mxu0 0.0
    %177 = vmatpush1.msra.mxu0 0.0
    %178 = vmatprep.subr.mxu0 0.0
    %179 = vmatpush1.msra.mxu0 0.0
    %180 = vmatprep.subr.mxu0 0.0
    %181 = vmatpush1.msra.mxu0 0.0
    %182 = vmatprep.subr.mxu0 0.0
    %183 = vmatpush1.msra.mxu0 0.0
    %184 = vmatprep.subr.mxu0 0.0
    %185 = vmatpush1.msra.mxu0 0.0
    %186 = vmatprep.subr.mxu0 0.0
    %187 = vmatpush1.msra.mxu0 0.0
    %188 = vmatprep.subr.mxu0 0.0
    %189 = vmatpush1.msra.mxu0 0.0
    %190 = vmatprep.subr.mxu0 0.0
    %191 = vmatpush1.msra.mxu0 0.0
    %192 = vmatprep.subr.mxu0 0.0
    %193 = vmatpush1.msra.mxu0 0.0
    %194 = vmatprep.subr.mxu0 0.0
    %195 = vmatpush1.msra.mxu0 0.0
    %196 = vmatprep.subr.mxu0 0.0
    %197 = vmatpush1.msra.mxu0 0.0
    %198 = vmatprep.subr.mxu0 0.0
    %199 = vmatpush1.msra.mxu0 0.0
    %200 = vmatprep.subr.mxu0 0.0
    %201 = vmatpush1.msra.mxu0 0.0
    %202 = vmatprep.subr.mxu0 0.0
    %203 = vmatpush1.msra.mxu0 0.0
    %204 = vmatprep.subr.mxu0 0.0
    %205 = vmatpush1.msra.mxu0 0.0
    %206 = vmatprep.subr.mxu0 0.0
    %207 = vmatpush1.msra.mxu0 0.0
    %208 = vmatprep.subr.mxu0 0.0
    %209 = vmatpush1.msra.mxu0 0.0
    %210 = vmatprep.subr.mxu0 0.0
    %211 = vmatpush1.msra.mxu0 0.0
    %212 = vmatprep.subr.mxu0 0.0
    %213 = vmatpush1.msra.mxu0 0.0
    %214 = vmatprep.subr.mxu0 0.0
    %215 = vmatpush1.msra.mxu0 0.0
    %216 = vmatprep.subr.mxu0 0.0
    %217 = vmatpush1.msra.mxu0 0.0
    %218 = vmatprep.subr.mxu0 0.0
    %219 = vmatpush1.msra.mxu0 0.0
    %220 = vmatprep.subr.mxu0 0.0
    %221 = vmatpush1.msra.mxu0 0.0
    %222 = vmatprep.subr.mxu0 0.0
    %223 = vmatpush1.msra.mxu0 0.0
    %224 = vmatprep.subr.mxu0 0.0
    %225 = vmatpush1.msra.mxu0 0.0
    %226 = vmatprep.subr.mxu0 0.0
    %227 = vmatpush1.msra.mxu0 0.0
    %228 = vmatprep.subr.mxu0 0.0
    %229 = vmatpush1.msra.mxu0 0.0
    %230 = vmatprep.mubr.f32.mxu0 0.0
    %231 = vmatmul.mubr.f32.gmra.mrb[0].mxu0 %v81
    %v232 = vpop.f32.mrb[0].mxu0
    %v233 = vadd.f32 0.0, %v232
    %v234 = vpop.f32.mrb[0].mxu0
    %235 = vmatprep.mubr.f32.mxu0 0.0
    %236 = vmatmul.mubr.f32.gmra.mrb[0].mxu0 %v84
    %v237 = vpop.f32.mrb[0].mxu0
    %v238 = vadd.f32 0.0, %v237
    %v239 = vpop.f32.mrb[0].mxu0
    %240 = vdwg.mxu0
    %s241 = scalar_lea.vmem %s3, 64
    %v242 = vld [vmem:[%s241] sm:$0xff]
    %v243 = vld [vmem:[%s241 + $0x8] sm:$0xff]
    %v244 = vld [vmem:[%s241 + $0x10] sm:$0xff]
    %v245 = vld [vmem:[%s241 + $0x18] sm:$0xff]
    %246 = vmatprep.subr.mxu0 0.0
    %247 = vmatpush1.msra.mxu0 %v242
    %248 = vmatprep.subr.mxu0 0.0
    %249 = vmatpush1.msra.mxu0 %v243
    %250 = vmatprep.subr.mxu0 0.0
    %251 = vmatpush1.msra.mxu0 %v244
    %252 = vmatprep.subr.mxu0 0.0
    %253 = vmatpush1.msra.mxu0 %v245
    %254 = vmatprep.subr.mxu0 0.0
    %255 = vmatpush1.msra.mxu0 0.0
    %256 = vmatprep.subr.mxu0 0.0
    %257 = vmatpush1.msra.mxu0 0.0
    %258 = vmatprep.subr.mxu0 0.0
    %259 = vmatpush1.msra.mxu0 0.0
    %260 = vmatprep.subr.mxu0 0.0
    %261 = vmatpush1.msra.mxu0 0.0
    %262 = vmatprep.subr.mxu0 0.0
    %263 = vmatpush1.msra.mxu0 0.0
    %264 = vmatprep.subr.mxu0 0.0
    %265 = vmatpush1.msra.mxu0 0.0
    %266 = vmatprep.subr.mxu0 0.0
    %267 = vmatpush1.msra.mxu0 0.0
    %268 = vmatprep.subr.mxu0 0.0
    %269 = vmatpush1.msra.mxu0 0.0
    %270 = vmatprep.subr.mxu0 0.0
    %271 = vmatpush1.msra.mxu0 0.0
    %272 = vmatprep.subr.mxu0 0.0
    %273 = vmatpush1.msra.mxu0 0.0
    %274 = vmatprep.subr.mxu0 0.0
    %275 = vmatpush1.msra.mxu0 0.0
    %276 = vmatprep.subr.mxu0 0.0
    %277 = vmatpush1.msra.mxu0 0.0
    %278 = vmatprep.subr.mxu0 0.0
    %279 = vmatpush1.msra.mxu0 0.0
    %280 = vmatprep.subr.mxu0 0.0
    %281 = vmatpush1.msra.mxu0 0.0
    %282 = vmatprep.subr.mxu0 0.0
    %283 = vmatpush1.msra.mxu0 0.0
    %284 = vmatprep.subr.mxu0 0.0
    %285 = vmatpush1.msra.mxu0 0.0
    %286 = vmatprep.subr.mxu0 0.0
    %287 = vmatpush1.msra.mxu0 0.0
    %288 = vmatprep.subr.mxu0 0.0
    %289 = vmatpush1.msra.mxu0 0.0
    %290 = vmatprep.subr.mxu0 0.0
    %291 = vmatpush1.msra.mxu0 0.0
    %292 = vmatprep.subr.mxu0 0.0
    %293 = vmatpush1.msra.mxu0 0.0
    %294 = vmatprep.subr.mxu0 0.0
    %295 = vmatpush1.msra.mxu0 0.0
    %296 = vmatprep.subr.mxu0 0.0
    %297 = vmatpush1.msra.mxu0 0.0
    %298 = vmatprep.subr.mxu0 0.0
    %299 = vmatpush1.msra.mxu0 0.0
    %300 = vmatprep.subr.mxu0 0.0
    %301 = vmatpush1.msra.mxu0 0.0
    %302 = vmatprep.subr.mxu0 0.0
    %303 = vmatpush1.msra.mxu0 0.0
    %304 = vmatprep.subr.mxu0 0.0
    %305 = vmatpush1.msra.mxu0 0.0
    %306 = vmatprep.subr.mxu0 0.0
    %307 = vmatpush1.msra.mxu0 0.0
    %308 = vmatprep.subr.mxu0 0.0
    %309 = vmatpush1.msra.mxu0 0.0
    %310 = vmatprep.mubr.f32.mxu0 0.0
    %311 = vmatmul.mubr.f32.gmra.mrb[0].mxu0 %v81
    %v312 = vpop.f32.mrb[0].mxu0
    %v313 = vadd.f32 0.0, %v312
    %v314 = vpop.f32.mrb[0].mxu0
    %315 = vmatprep.mubr.f32.mxu0 0.0
    %316 = vmatmul.mubr.f32.gmra.mrb[0].mxu0 %v84
    %v317 = vpop.f32.mrb[0].mxu0
    %v318 = vadd.f32 0.0, %v317
    %v319 = vpop.f32.mrb[0].mxu0
    %320 = vdwg.mxu0
    %vm321 = vcmask 64512
    %v323 = vsel %vm321, %v153, 0
    %v326 = vsel %vm321, %v158, 0
    %v329 = vsel %vm321, %v233, 0
    %v332 = vsel %vm321, %v238, 0
    %334 = vmatprep.subr.mxu0 0.0
    %335 = vmatpush1.xpose.msra.mxu0 %v329
    %336 = vmatprep.subr.mxu0 0.0
    %337 = vmatpush1.xpose.msra.mxu0 %v332
    %338 = vmatprep.subr.mxu0 0.0
    %339 = vmatpush1.xpose.msra.mxu0 0.0
    %340 = vmatprep.subr.mxu0 0.0
    %341 = vmatpush1.xpose.msra.mxu0 0.0
    %342 = vmatprep.subr.mxu0 0.0
    %343 = vmatpush1.xpose.msra.mxu0 0.0
    %344 = vmatprep.subr.mxu0 0.0
    %345 = vmatpush1.xpose.msra.mxu0 0.0
    %346 = vmatprep.subr.mxu0 0.0
    %347 = vmatpush1.xpose.msra.mxu0 0.0
    %348 = vmatprep.subr.mxu0 0.0
    %349 = vmatpush1.xpose.msra.mxu0 0.0
    %350 = vmatprep.subr.mxu0 0.0
    %351 = vmatpush1.xpose.msra.mxu0 0.0
    %352 = vmatprep.subr.mxu0 0.0
    %353 = vmatpush1.xpose.msra.mxu0 0.0
    %354 = vmatprep.subr.mxu0 0.0
    %355 = vmatpush1.xpose.msra.mxu0 0.0
    %356 = vmatprep.subr.mxu0 0.0
    %357 = vmatpush1.xpose.msra.mxu0 0.0
    %358 = vmatprep.subr.mxu0 0.0
    %359 = vmatpush1.xpose.msra.mxu0 0.0
    %360 = vmatprep.subr.mxu0 0.0
    %361 = vmatpush1.xpose.msra.mxu0 0.0
    %362 = vmatprep.subr.mxu0 0.0
    %363 = vmatpush1.xpose.msra.mxu0 0.0
    %364 = vmatprep.subr.mxu0 0.0
    %365 = vmatpush1.xpose.msra.mxu0 0.0
    %366 = vmatprep.subr.mxu0 0.0
    %367 = vmatpush1.xpose.msra.mxu0 0.0
    %368 = vmatprep.subr.mxu0 0.0
    %369 = vmatpush1.xpose.msra.mxu0 0.0
    %370 = vmatprep.subr.mxu0 0.0
    %371 = vmatpush1.xpose.msra.mxu0 0.0
    %372 = vmatprep.subr.mxu0 0.0
    %373 = vmatpush1.xpose.msra.mxu0 0.0
    %374 = vmatprep.subr.mxu0 0.0
    %375 = vmatpush1.xpose.msra.mxu0 0.0
    %376 = vmatprep.subr.mxu0 0.0
    %377 = vmatpush1.xpose.msra.mxu0 0.0
    %378 = vmatprep.subr.mxu0 0.0
    %379 = vmatpush1.xpose.msra.mxu0 0.0
    %380 = vmatprep.subr.mxu0 0.0
    %381 = vmatpush1.xpose.msra.mxu0 0.0
    %382 = vmatprep.subr.mxu0 0.0
    %383 = vmatpush1.xpose.msra.mxu0 0.0
    %384 = vmatprep.subr.mxu0 0.0
    %385 = vmatpush1.xpose.msra.mxu0 0.0
    %386 = vmatprep.subr.mxu0 0.0
    %387 = vmatpush1.xpose.msra.mxu0 0.0
    %388 = vmatprep.subr.mxu0 0.0
    %389 = vmatpush1.xpose.msra.mxu0 0.0
    %390 = vmatprep.subr.mxu0 0.0
    %391 = vmatpush1.xpose.msra.mxu0 0.0
    %392 = vmatprep.subr.mxu0 0.0
    %393 = vmatpush1.xpose.msra.mxu0 0.0
    %394 = vmatprep.subr.mxu0 0.0
    %395 = vmatpush1.xpose.msra.mxu0 0.0
    %396 = vmatprep.subr.mxu0 0.0
    %397 = vmatpush1.xpose.msra.mxu0 0.0
    %398 = vmatprep.mubr.f32.mxu0 0.0
    %399 = vmatmul.mubr.f32.gmra.mrb[0].mxu0 %v323
    %v400 = vpop.f32.mrb[0].mxu0
    %v401 = vadd.f32 %v32, %v400
    %v402 = vpop.f32.mrb[0].mxu0
    %403 = vmatprep.mubr.f32.mxu0 0.0
    %404 = vmatmul.mubr.f32.gmra.mrb[0].mxu0 %v326
    %v405 = vpop.f32.mrb[0].mxu0
    %v406 = vadd.f32 %v33, %v405
    %v407 = vpop.f32.mrb[0].mxu0
    %408 = vdwg.mxu0
    %vm409 = vcmask 130048
    %v410 = vsel %vm409, %v401, -inf
    %411 = vmax.xlane.f32.xlu0 %v410
    %v412 = vpop.xlane.xlu0 %411
    %v413 = vsel %vm409, %v406, -inf
    %414 = vmax.xlane.f32.xlu0 %v413
    %v415 = vpop.xlane.xlu0 %414
    %v416 = vsub.f32 %v401, %v412
    %v417 = vsub.f32 %v406, %v415
    %v418 = vmul.f32 %v416, 1.442695
    %v419 = vpow.pop %v418
    %v420 = vmul.f32 %v417, 1.442695
    %v421 = vpow.pop %v420
    %v422 = vsel %vm409, %v419, 0.0
    %423 = vadd.xlane.f32.xlu0 %v422
    %v424 = vpop.xlane.xlu0 %423
    %v425 = vsel %vm409, %v421, 0.0
    %426 = vadd.xlane.f32.xlu0 %v425
    %v427 = vpop.xlane.xlu0 %426
    %v428 = vrcp.pop %v424
    %v429 = vrcp.pop %v427
    %v430 = vmul.f32 %v419, %v428
    %v431 = vmul.f32 %v421, %v429
    %v433 = vsel %vm409, %v430, 0
    %v436 = vsel %vm409, %v431, 0
    %438 = vmatprep.subr.mxu0 0.0
    %439 = vmatpush1.msra.mxu0 %v313
    %440 = vmatprep.subr.mxu0 0.0
    %441 = vmatpush1.msra.mxu0 %v318
    %442 = vmatprep.subr.mxu0 0.0
    %443 = vmatpush1.msra.mxu0 0.0
    %444 = vmatprep.subr.mxu0 0.0
    %445 = vmatpush1.msra.mxu0 0.0
    %446 = vmatprep.subr.mxu0 0.0
    %447 = vmatpush1.msra.mxu0 0.0
    %448 = vmatprep.subr.mxu0 0.0
    %449 = vmatpush1.msra.mxu0 0.0
    %450 = vmatprep.subr.mxu0 0.0
    %451 = vmatpush1.msra.mxu0 0.0
    %452 = vmatprep.subr.mxu0 0.0
    %453 = vmatpush1.msra.mxu0 0.0
    %454 = vmatprep.subr.mxu0 0.0
    %455 = vmatpush1.msra.mxu0 0.0
    %456 = vmatprep.subr.mxu0 0.0
    %457 = vmatpush1.msra.mxu0 0.0
    %458 = vmatprep.subr.mxu0 0.0
    %459 = vmatpush1.msra.mxu0 0.0
    %460 = vmatprep.subr.mxu0 0.0
    %461 = vmatpush1.msra.mxu0 0.0
    %462 = vmatprep.subr.mxu0 0.0
    %463 = vmatpush1.msra.mxu0 0.0
    %464 = vmatprep.subr.mxu0 0.0
    %465 = vmatpush1.msra.mxu0 0.0
    %466 = vmatprep.subr.mxu0 0.0
    %467 = vmatpush1.msra.mxu0 0.0
    %468 = vmatprep.subr.mxu0 0.0
    %469 = vmatpush1.msra.mxu0 0.0
    %470 = vmatprep.subr.mxu0 0.0
    %471 = vmatpush1.msra.mxu0 0.0
    %472 = vmatprep.subr.mxu0 0.0
    %473 = vmatpush1.msra.mxu0 0.0
    %474 = vmatprep.subr.mxu0 0.0
    %475 = vmatpush1.msra.mxu0 0.0
    %476 = vmatprep.subr.mxu0 0.0
    %477 = vmatpush1.msra.mxu0 0.0
    %478 = vmatprep.subr.mxu0 0.0
    %479 = vmatpush1.msra.mxu0 0.0
    %480 = vmatprep.subr.mxu0 0.0
    %481 = vmatpush1.msra.mxu0 0.0
    %482 = vmatprep.subr.mxu0 0.0
    %483 = vmatpush1.msra.mxu0 0.0
    %484 = vmatprep.subr.mxu0 0.0
    %485 = vmatpush1.msra.mxu0 0.0
    %486 = vmatprep.subr.mxu0 0.0
    %487 = vmatpush1.msra.mxu0 0.0
    %488 = vmatprep.subr.mxu0 0.0
    %489 = vmatpush1.msra.mxu0 0.0
    %490 = vmatprep.subr.mxu0 0.0
    %491 = vmatpush1.msra.mxu0 0.0
    %492 = vmatprep.subr.mxu0 0.0
    %493 = vmatpush1.msra.mxu0 0.0
    %494 = vmatprep.subr.mxu0 0.0
    %495 = vmatpush1.msra.mxu0 0.0
    %496 = vmatprep.subr.mxu0 0.0
    %497 = vmatpush1.msra.mxu0 0.0
    %498 = vmatprep.subr.mxu0 0.0
    %499 = vmatpush1.msra.mxu0 0.0
    %500 = vmatprep.subr.mxu0 0.0
    %501 = vmatpush1.msra.mxu0 0.0
    %502 = vmatprep.mubr.f32.mxu0 0.0
    %503 = vmatmul.mubr.f32.gmra.mrb[0].mxu0 %v433
    %v504 = vpop.f32.mrb[0].mxu0
    %v505 = vadd.f32 0.0, %v504
    %v506 = vpop.f32.mrb[0].mxu0
    %507 = vmatprep.mubr.f32.mxu0 0.0
    %508 = vmatmul.mubr.f32.gmra.mrb[0].mxu0 %v436
    %v509 = vpop.f32.mrb[0].mxu0
    %v510 = vadd.f32 0.0, %v509
    %v511 = vpop.f32.mrb[0].mxu0
    %512 = vdwg.mxu0
    %513 = vrot.lane.b32.xlu0 %v153, 120
    %v514 = vpop.permute.xlu0 %513
    %515 = vrot.lane.b32.xlu0 %v158, 120
    %v516 = vpop.permute.xlu0 %515
    %517 = vrot.lane.b32.xlu0 %v233, 120
    %v518 = vpop.permute.xlu0 %517
    %519 = vrot.lane.b32.xlu0 %v238, 120
    %v520 = vpop.permute.xlu0 %519
    %v521 = vsel %vm321, %v514, 0
    %v523 = vsel %vm321, %v516, 0
    %v525 = vsel %vm321, %v518, 0
    %v527 = vsel %vm321, %v520, 0
    %529 = vmatprep.subr.mxu0 0.0
    %530 = vmatpush1.xpose.msra.mxu0 %v525
    %531 = vmatprep.subr.mxu0 0.0
    %532 = vmatpush1.xpose.msra.mxu0 %v527
    %533 = vmatprep.subr.mxu0 0.0
    %534 = vmatpush1.xpose.msra.mxu0 0.0
    %535 = vmatprep.subr.mxu0 0.0
    %536 = vmatpush1.xpose.msra.mxu0 0.0
    %537 = vmatprep.subr.mxu0 0.0
    %538 = vmatpush1.xpose.msra.mxu0 0.0
    %539 = vmatprep.subr.mxu0 0.0
    %540 = vmatpush1.xpose.msra.mxu0 0.0
    %541 = vmatprep.subr.mxu0 0.0
    %542 = vmatpush1.xpose.msra.mxu0 0.0
    %543 = vmatprep.subr.mxu0 0.0
    %544 = vmatpush1.xpose.msra.mxu0 0.0
    %545 = vmatprep.subr.mxu0 0.0
    %546 = vmatpush1.xpose.msra.mxu0 0.0
    %547 = vmatprep.subr.mxu0 0.0
    %548 = vmatpush1.xpose.msra.mxu0 0.0
    %549 = vmatprep.subr.mxu0 0.0
    %550 = vmatpush1.xpose.msra.mxu0 0.0
    %551 = vmatprep.subr.mxu0 0.0
    %552 = vmatpush1.xpose.msra.mxu0 0.0
    %553 = vmatprep.subr.mxu0 0.0
    %554 = vmatpush1.xpose.msra.mxu0 0.0
    %555 = vmatprep.subr.mxu0 0.0
    %556 = vmatpush1.xpose.msra.mxu0 0.0
    %557 = vmatprep.subr.mxu0 0.0
    %558 = vmatpush1.xpose.msra.mxu0 0.0
    %559 = vmatprep.subr.mxu0 0.0
    %560 = vmatpush1.xpose.msra.mxu0 0.0
    %561 = vmatprep.subr.mxu0 0.0
    %562 = vmatpush1.xpose.msra.mxu0 0.0
    %563 = vmatprep.subr.mxu0 0.0
    %564 = vmatpush1.xpose.msra.mxu0 0.0
    %565 = vmatprep.subr.mxu0 0.0
    %566 = vmatpush1.xpose.msra.mxu0 0.0
    %567 = vmatprep.subr.mxu0 0.0
    %568 = vmatpush1.xpose.msra.mxu0 0.0
    %569 = vmatprep.subr.mxu0 0.0
    %570 = vmatpush1.xpose.msra.mxu0 0.0
    %571 = vmatprep.subr.mxu0 0.0
    %572 = vmatpush1.xpose.msra.mxu0 0.0
    %573 = vmatprep.subr.mxu0 0.0
    %574 = vmatpush1.xpose.msra.mxu0 0.0
    %575 = vmatprep.subr.mxu0 0.0
    %576 = vmatpush1.xpose.msra.mxu0 0.0
    %577 = vmatprep.subr.mxu0 0.0
    %578 = vmatpush1.xpose.msra.mxu0 0.0
    %579 = vmatprep.subr.mxu0 0.0
    %580 = vmatpush1.xpose.msra.mxu0 0.0
    %581 = vmatprep.subr.mxu0 0.0
    %582 = vmatpush1.xpose.msra.mxu0 0.0
    %583 = vmatprep.subr.mxu0 0.0
    %584 = vmatpush1.xpose.msra.mxu0 0.0
    %585 = vmatprep.subr.mxu0 0.0
    %586 = vmatpush1.xpose.msra.mxu0 0.0
    %587 = vmatprep.subr.mxu0 0.0
    %588 = vmatpush1.xpose.msra.mxu0 0.0
    %589 = vmatprep.subr.mxu0 0.0
    %590 = vmatpush1.xpose.msra.mxu0 0.0
    %591 = vmatprep.subr.mxu0 0.0
    %592 = vmatpush1.xpose.msra.mxu0 0.0
    %593 = vmatprep.mubr.f32.mxu0 0.0
    %594 = vmatmul.mubr.f32.gmra.mrb[0].mxu0 %v521
    %v595 = vpop.f32.mrb[0].mxu0
    %v596 = vadd.f32 %v32, %v595
    %v597 = vpop.f32.mrb[0].mxu0
    %598 = vmatprep.mubr.f32.mxu0 0.0
    %599 = vmatmul.mubr.f32.gmra.mrb[0].mxu0 %v523
    %v600 = vpop.f32.mrb[0].mxu0
    %v601 = vadd.f32 %v33, %v600
    %v602 = vpop.f32.mrb[0].mxu0
    %603 = vdwg.mxu0
    %v604 = vsel %vm409, %v596, -inf
    %605 = vmax.xlane.f32.xlu0 %v604
    %v606 = vpop.xlane.xlu0 %605
    %v607 = vsel %vm409, %v601, -inf
    %608 = vmax.xlane.f32.xlu0 %v607
    %v609 = vpop.xlane.xlu0 %608
    %v610 = vsub.f32 %v596, %v606
    %v611 = vsub.f32 %v601, %v609
    %v612 = vmul.f32 %v610, 1.442695
    %v613 = vpow.pop %v612
    %v614 = vmul.f32 %v611, 1.442695
    %v615 = vpow.pop %v614
    %v616 = vsel %vm409, %v613, 0.0
    %617 = vadd.xlane.f32.xlu0 %v616
    %v618 = vpop.xlane.xlu0 %617
    %v619 = vsel %vm409, %v615, 0.0
    %620 = vadd.xlane.f32.xlu0 %v619
    %v621 = vpop.xlane.xlu0 %620
    %v622 = vrcp.pop %v618
    %v623 = vrcp.pop %v621
    %v624 = vmul.f32 %v613, %v622
    %v625 = vmul.f32 %v615, %v623
    %628 = vrot.lane.b32.xlu0 %v313, 120
    %v629 = vpop.permute.xlu0 %628
    %630 = vrot.lane.b32.xlu0 %v318, 120
    %v631 = vpop.permute.xlu0 %630
    %v635 = vsel %vm409, %v624, 0
    %v638 = vsel %vm409, %v625, 0
    %640 = vmatprep.subr.mxu0 0.0
    %641 = vmatpush1.msra.mxu0 %v629
    %642 = vmatprep.subr.mxu0 0.0
    %643 = vmatpush1.msra.mxu0 %v631
    %644 = vmatprep.subr.mxu0 0.0
    %645 = vmatpush1.msra.mxu0 0.0
    %646 = vmatprep.subr.mxu0 0.0
    %647 = vmatpush1.msra.mxu0 0.0
    %648 = vmatprep.subr.mxu0 0.0
    %649 = vmatpush1.msra.mxu0 0.0
    %650 = vmatprep.subr.mxu0 0.0
    %651 = vmatpush1.msra.mxu0 0.0
    %652 = vmatprep.subr.mxu0 0.0
    %653 = vmatpush1.msra.mxu0 0.0
    %654 = vmatprep.subr.mxu0 0.0
    %655 = vmatpush1.msra.mxu0 0.0
    %656 = vmatprep.subr.mxu0 0.0
    %657 = vmatpush1.msra.mxu0 0.0
    %658 = vmatprep.subr.mxu0 0.0
    %659 = vmatpush1.msra.mxu0 0.0
    %660 = vmatprep.subr.mxu0 0.0
    %661 = vmatpush1.msra.mxu0 0.0
    %662 = vmatprep.subr.mxu0 0.0
    %663 = vmatpush1.msra.mxu0 0.0
    %664 = vmatprep.subr.mxu0 0.0
    %665 = vmatpush1.msra.mxu0 0.0
    %666 = vmatprep.subr.mxu0 0.0
    %667 = vmatpush1.msra.mxu0 0.0
    %668 = vmatprep.subr.mxu0 0.0
    %669 = vmatpush1.msra.mxu0 0.0
    %670 = vmatprep.subr.mxu0 0.0
    %671 = vmatpush1.msra.mxu0 0.0
    %672 = vmatprep.subr.mxu0 0.0
    %673 = vmatpush1.msra.mxu0 0.0
    %674 = vmatprep.subr.mxu0 0.0
    %675 = vmatpush1.msra.mxu0 0.0
    %676 = vmatprep.subr.mxu0 0.0
    %677 = vmatpush1.msra.mxu0 0.0
    %678 = vmatprep.subr.mxu0 0.0
    %679 = vmatpush1.msra.mxu0 0.0
    %680 = vmatprep.subr.mxu0 0.0
    %681 = vmatpush1.msra.mxu0 0.0
    %682 = vmatprep.subr.mxu0 0.0
    %683 = vmatpush1.msra.mxu0 0.0
    %684 = vmatprep.subr.mxu0 0.0
    %685 = vmatpush1.msra.mxu0 0.0
    %686 = vmatprep.subr.mxu0 0.0
    %687 = vmatpush1.msra.mxu0 0.0
    %688 = vmatprep.subr.mxu0 0.0
    %689 = vmatpush1.msra.mxu0 0.0
    %690 = vmatprep.subr.mxu0 0.0
    %691 = vmatpush1.msra.mxu0 0.0
    %692 = vmatprep.subr.mxu0 0.0
    %693 = vmatpush1.msra.mxu0 0.0
    %694 = vmatprep.subr.mxu0 0.0
    %695 = vmatpush1.msra.mxu0 0.0
    %696 = vmatprep.subr.mxu0 0.0
    %697 = vmatpush1.msra.mxu0 0.0
    %698 = vmatprep.subr.mxu0 0.0
    %699 = vmatpush1.msra.mxu0 0.0
    %700 = vmatprep.subr.mxu0 0.0
    %701 = vmatpush1.msra.mxu0 0.0
    %702 = vmatprep.subr.mxu0 0.0
    %703 = vmatpush1.msra.mxu0 0.0
    %704 = vmatprep.mubr.f32.mxu0 0.0
    %705 = vmatmul.mubr.f32.gmra.mrb[0].mxu0 %v635
    %v706 = vpop.f32.mrb[0].mxu0
    %v707 = vadd.f32 0.0, %v706
    %v708 = vpop.f32.mrb[0].mxu0
    %709 = vmatprep.mubr.f32.mxu0 0.0
    %710 = vmatmul.mubr.f32.gmra.mrb[0].mxu0 %v638
    %v711 = vpop.f32.mrb[0].mxu0
    %v712 = vadd.f32 0.0, %v711
    %v713 = vpop.f32.mrb[0].mxu0
    %714 = vdwg.mxu0
    %715 = vrot.lane.b32.xlu0 %v153, 112
    %v716 = vpop.permute.xlu0 %715
    %717 = vrot.lane.b32.xlu0 %v158, 112
    %v718 = vpop.permute.xlu0 %717
    %719 = vrot.lane.b32.xlu0 %v233, 112
    %v720 = vpop.permute.xlu0 %719
    %721 = vrot.lane.b32.xlu0 %v238, 112
    %v722 = vpop.permute.xlu0 %721
    %v723 = vsel %vm321, %v716, 0
    %v725 = vsel %vm321, %v718, 0
    %v727 = vsel %vm321, %v720, 0
    %v729 = vsel %vm321, %v722, 0
    %731 = vmatprep.subr.mxu0 0.0
    %732 = vmatpush1.xpose.msra.mxu0 %v727
    %733 = vmatprep.subr.mxu0 0.0
    %734 = vmatpush1.xpose.msra.mxu0 %v729
    %735 = vmatprep.subr.mxu0 0.0
    %736 = vmatpush1.xpose.msra.mxu0 0.0
    %737 = vmatprep.subr.mxu0 0.0
    %738 = vmatpush1.xpose.msra.mxu0 0.0
    %739 = vmatprep.subr.mxu0 0.0
    %740 = vmatpush1.xpose.msra.mxu0 0.0
    %741 = vmatprep.subr.mxu0 0.0
    %742 = vmatpush1.xpose.msra.mxu0 0.0
    %743 = vmatprep.subr.mxu0 0.0
    %744 = vmatpush1.xpose.msra.mxu0 0.0
    %745 = vmatprep.subr.mxu0 0.0
    %746 = vmatpush1.xpose.msra.mxu0 0.0
    %747 = vmatprep.subr.mxu0 0.0
    %748 = vmatpush1.xpose.msra.mxu0 0.0
    %749 = vmatprep.subr.mxu0 0.0
    %750 = vmatpush1.xpose.msra.mxu0 0.0
    %751 = vmatprep.subr.mxu0 0.0
    %752 = vmatpush1.xpose.msra.mxu0 0.0
    %753 = vmatprep.subr.mxu0 0.0
    %754 = vmatpush1.xpose.msra.mxu0 0.0
    %755 = vmatprep.subr.mxu0 0.0
    %756 = vmatpush1.xpose.msra.mxu0 0.0
    %757 = vmatprep.subr.mxu0 0.0
    %758 = vmatpush1.xpose.msra.mxu0 0.0
    %759 = vmatprep.subr.mxu0 0.0
    %760 = vmatpush1.xpose.msra.mxu0 0.0
    %761 = vmatprep.subr.mxu0 0.0
    %762 = vmatpush1.xpose.msra.mxu0 0.0
    %763 = vmatprep.subr.mxu0 0.0
    %764 = vmatpush1.xpose.msra.mxu0 0.0
    %765 = vmatprep.subr.mxu0 0.0
    %766 = vmatpush1.xpose.msra.mxu0 0.0
    %767 = vmatprep.subr.mxu0 0.0
    %768 = vmatpush1.xpose.msra.mxu0 0.0
    %769 = vmatprep.subr.mxu0 0.0
    %770 = vmatpush1.xpose.msra.mxu0 0.0
    %771 = vmatprep.subr.mxu0 0.0
    %772 = vmatpush1.xpose.msra.mxu0 0.0
    %773 = vmatprep.subr.mxu0 0.0
    %774 = vmatpush1.xpose.msra.mxu0 0.0
    %775 = vmatprep.subr.mxu0 0.0
    %776 = vmatpush1.xpose.msra.mxu0 0.0
    %777 = vmatprep.subr.mxu0 0.0
    %778 = vmatpush1.xpose.msra.mxu0 0.0
    %779 = vmatprep.subr.mxu0 0.0
    %780 = vmatpush1.xpose.msra.mxu0 0.0
    %781 = vmatprep.subr.mxu0 0.0
    %782 = vmatpush1.xpose.msra.mxu0 0.0
    %783 = vmatprep.subr.mxu0 0.0
    %784 = vmatpush1.xpose.msra.mxu0 0.0
    %785 = vmatprep.subr.mxu0 0.0
    %786 = vmatpush1.xpose.msra.mxu0 0.0
    %787 = vmatprep.subr.mxu0 0.0
    %788 = vmatpush1.xpose.msra.mxu0 0.0
    %789 = vmatprep.subr.mxu0 0.0
    %790 = vmatpush1.xpose.msra.mxu0 0.0
    %791 = vmatprep.subr.mxu0 0.0
    %792 = vmatpush1.xpose.msra.mxu0 0.0
    %793 = vmatprep.subr.mxu0 0.0
    %794 = vmatpush1.xpose.msra.mxu0 0.0
    %795 = vmatprep.mubr.f32.mxu0 0.0
    %796 = vmatmul.mubr.f32.gmra.mrb[0].mxu0 %v723
    %v797 = vpop.f32.mrb[0].mxu0
    %v798 = vadd.f32 %v32, %v797
    %v799 = vpop.f32.mrb[0].mxu0
    %800 = vmatprep.mubr.f32.mxu0 0.0
    %801 = vmatmul.mubr.f32.gmra.mrb[0].mxu0 %v725
    %v802 = vpop.f32.mrb[0].mxu0
    %v803 = vadd.f32 %v33, %v802
    %v804 = vpop.f32.mrb[0].mxu0
    %805 = vdwg.mxu0
    %v806 = vsel %vm409, %v798, -inf
    %807 = vmax.xlane.f32.xlu0 %v806
    %v808 = vpop.xlane.xlu0 %807
    %v809 = vsel %vm409, %v803, -inf
    %810 = vmax.xlane.f32.xlu0 %v809
    %v811 = vpop.xlane.xlu0 %810
    %v812 = vsub.f32 %v798, %v808
    %v813 = vsub.f32 %v803, %v811
    %v814 = vmul.f32 %v812, 1.442695
    %v815 = vpow.pop %v814
    %v816 = vmul.f32 %v813, 1.442695
    %v817 = vpow.pop %v816
    %v818 = vsel %vm409, %v815, 0.0
    %819 = vadd.xlane.f32.xlu0 %v818
    %v820 = vpop.xlane.xlu0 %819
    %v821 = vsel %vm409, %v817, 0.0
    %822 = vadd.xlane.f32.xlu0 %v821
    %v823 = vpop.xlane.xlu0 %822
    %v824 = vrcp.pop %v820
    %v825 = vrcp.pop %v823
    %v826 = vmul.f32 %v815, %v824
    %v827 = vmul.f32 %v817, %v825
    %828 = vrot.lane.b32.xlu0 %v313, 112
    %v829 = vpop.permute.xlu0 %828
    %830 = vrot.lane.b32.xlu0 %v318, 112
    %v831 = vpop.permute.xlu0 %830
    %v835 = vsel %vm409, %v826, 0
    %v838 = vsel %vm409, %v827, 0
    %840 = vmatprep.subr.mxu0 0.0
    %841 = vmatpush1.msra.mxu0 %v829
    %842 = vmatprep.subr.mxu0 0.0
    %843 = vmatpush1.msra.mxu0 %v831
    %844 = vmatprep.subr.mxu0 0.0
    %845 = vmatpush1.msra.mxu0 0.0
    %846 = vmatprep.subr.mxu0 0.0
    %847 = vmatpush1.msra.mxu0 0.0
    %848 = vmatprep.subr.mxu0 0.0
    %849 = vmatpush1.msra.mxu0 0.0
    %850 = vmatprep.subr.mxu0 0.0
    %851 = vmatpush1.msra.mxu0 0.0
    %852 = vmatprep.subr.mxu0 0.0
    %853 = vmatpush1.msra.mxu0 0.0
    %854 = vmatprep.subr.mxu0 0.0
    %855 = vmatpush1.msra.mxu0 0.0
    %856 = vmatprep.subr.mxu0 0.0
    %857 = vmatpush1.msra.mxu0 0.0
    %858 = vmatprep.subr.mxu0 0.0
    %859 = vmatpush1.msra.mxu0 0.0
    %860 = vmatprep.subr.mxu0 0.0
    %861 = vmatpush1.msra.mxu0 0.0
    %862 = vmatprep.subr.mxu0 0.0
    %863 = vmatpush1.msra.mxu0 0.0
    %864 = vmatprep.subr.mxu0 0.0
    %865 = vmatpush1.msra.mxu0 0.0
    %866 = vmatprep.subr.mxu0 0.0
    %867 = vmatpush1.msra.mxu0 0.0
    %868 = vmatprep.subr.mxu0 0.0
    %869 = vmatpush1.msra.mxu0 0.0
    %870 = vmatprep.subr.mxu0 0.0
    %871 = vmatpush1.msra.mxu0 0.0
    %872 = vmatprep.subr.mxu0 0.0
    %873 = vmatpush1.msra.mxu0 0.0
    %874 = vmatprep.subr.mxu0 0.0
    %875 = vmatpush1.msra.mxu0 0.0
    %876 = vmatprep.subr.mxu0 0.0
    %877 = vmatpush1.msra.mxu0 0.0
    %878 = vmatprep.subr.mxu0 0.0
    %879 = vmatpush1.msra.mxu0 0.0
    %880 = vmatprep.subr.mxu0 0.0
    %881 = vmatpush1.msra.mxu0 0.0
    %882 = vmatprep.subr.mxu0 0.0
    %883 = vmatpush1.msra.mxu0 0.0
    %884 = vmatprep.subr.mxu0 0.0
    %885 = vmatpush1.msra.mxu0 0.0
    %886 = vmatprep.subr.mxu0 0.0
    %887 = vmatpush1.msra.mxu0 0.0
    %888 = vmatprep.subr.mxu0 0.0
    %889 = vmatpush1.msra.mxu0 0.0
    %890 = vmatprep.subr.mxu0 0.0
    %891 = vmatpush1.msra.mxu0 0.0
    %892 = vmatprep.subr.mxu0 0.0
    %893 = vmatpush1.msra.mxu0 0.0
    %894 = vmatprep.subr.mxu0 0.0
    %895 = vmatpush1.msra.mxu0 0.0
    %896 = vmatprep.subr.mxu0 0.0
    %897 = vmatpush1.msra.mxu0 0.0
    %898 = vmatprep.subr.mxu0 0.0
    %899 = vmatpush1.msra.mxu0 0.0
    %900 = vmatprep.subr.mxu0 0.0
    %901 = vmatpush1.msra.mxu0 0.0
    %902 = vmatprep.subr.mxu0 0.0
    %903 = vmatpush1.msra.mxu0 0.0
    %904 = vmatprep.mubr.f32.mxu0 0.0
    %905 = vmatmul.mubr.f32.gmra.mrb[0].mxu0 %v835
    %v906 = vpop.f32.mrb[0].mxu0
    %v907 = vadd.f32 0.0, %v906
    %v908 = vpop.f32.mrb[0].mxu0
    %909 = vmatprep.mubr.f32.mxu0 0.0
    %910 = vmatmul.mubr.f32.gmra.mrb[0].mxu0 %v838
    %v911 = vpop.f32.mrb[0].mxu0
    %v912 = vadd.f32 0.0, %v911
    %v913 = vpop.f32.mrb[0].mxu0
    %914 = vdwg.mxu0
    %915 = vrot.lane.b32.xlu0 %v153, 104
    %v916 = vpop.permute.xlu0 %915
    %917 = vrot.lane.b32.xlu0 %v158, 104
    %v918 = vpop.permute.xlu0 %917
    %919 = vrot.lane.b32.xlu0 %v233, 104
    %v920 = vpop.permute.xlu0 %919
    %921 = vrot.lane.b32.xlu0 %v238, 104
    %v922 = vpop.permute.xlu0 %921
    %v923 = vsel %vm321, %v916, 0
    %v925 = vsel %vm321, %v918, 0
    %v927 = vsel %vm321, %v920, 0
    %v929 = vsel %vm321, %v922, 0
    %931 = vmatprep.subr.mxu0 0.0
    %932 = vmatpush1.xpose.msra.mxu0 %v927
    %933 = vmatprep.subr.mxu0 0.0
    %934 = vmatpush1.xpose.msra.mxu0 %v929
    %935 = vmatprep.subr.mxu0 0.0
    %936 = vmatpush1.xpose.msra.mxu0 0.0
    %937 = vmatprep.subr.mxu0 0.0
    %938 = vmatpush1.xpose.msra.mxu0 0.0
    %939 = vmatprep.subr.mxu0 0.0
    %940 = vmatpush1.xpose.msra.mxu0 0.0
    %941 = vmatprep.subr.mxu0 0.0
    %942 = vmatpush1.xpose.msra.mxu0 0.0
    %943 = vmatprep.subr.mxu0 0.0
    %944 = vmatpush1.xpose.msra.mxu0 0.0
    %945 = vmatprep.subr.mxu0 0.0
    %946 = vmatpush1.xpose.msra.mxu0 0.0
    %947 = vmatprep.subr.mxu0 0.0
    %948 = vmatpush1.xpose.msra.mxu0 0.0
    %949 = vmatprep.subr.mxu0 0.0
    %950 = vmatpush1.xpose.msra.mxu0 0.0
    %951 = vmatprep.subr.mxu0 0.0
    %952 = vmatpush1.xpose.msra.mxu0 0.0
    %953 = vmatprep.subr.mxu0 0.0
    %954 = vmatpush1.xpose.msra.mxu0 0.0
    %955 = vmatprep.subr.mxu0 0.0
    %956 = vmatpush1.xpose.msra.mxu0 0.0
    %957 = vmatprep.subr.mxu0 0.0
    %958 = vmatpush1.xpose.msra.mxu0 0.0
    %959 = vmatprep.subr.mxu0 0.0
    %960 = vmatpush1.xpose.msra.mxu0 0.0
    %961 = vmatprep.subr.mxu0 0.0
    %962 = vmatpush1.xpose.msra.mxu0 0.0
    %963 = vmatprep.subr.mxu0 0.0
    %964 = vmatpush1.xpose.msra.mxu0 0.0
    %965 = vmatprep.subr.mxu0 0.0
    %966 = vmatpush1.xpose.msra.mxu0 0.0
    %967 = vmatprep.subr.mxu0 0.0
    %968 = vmatpush1.xpose.msra.mxu0 0.0
    %969 = vmatprep.subr.mxu0 0.0
    %970 = vmatpush1.xpose.msra.mxu0 0.0
    %971 = vmatprep.subr.mxu0 0.0
    %972 = vmatpush1.xpose.msra.mxu0 0.0
    %973 = vmatprep.subr.mxu0 0.0
    %974 = vmatpush1.xpose.msra.mxu0 0.0
    %975 = vmatprep.subr.mxu0 0.0
    %976 = vmatpush1.xpose.msra.mxu0 0.0
    %977 = vmatprep.subr.mxu0 0.0
    %978 = vmatpush1.xpose.msra.mxu0 0.0
    %979 = vmatprep.subr.mxu0 0.0
    %980 = vmatpush1.xpose.msra.mxu0 0.0
    %981 = vmatprep.subr.mxu0 0.0
    %982 = vmatpush1.xpose.msra.mxu0 0.0
    %983 = vmatprep.subr.mxu0 0.0
    %984 = vmatpush1.xpose.msra.mxu0 0.0
    %985 = vmatprep.subr.mxu0 0.0
    %986 = vmatpush1.xpose.msra.mxu0 0.0
    %987 = vmatprep.subr.mxu0 0.0
    %988 = vmatpush1.xpose.msra.mxu0 0.0
    %989 = vmatprep.subr.mxu0 0.0
    %990 = vmatpush1.xpose.msra.mxu0 0.0
    %991 = vmatprep.subr.mxu0 0.0
    %992 = vmatpush1.xpose.msra.mxu0 0.0
    %993 = vmatprep.subr.mxu0 0.0
    %994 = vmatpush1.xpose.msra.mxu0 0.0
    %995 = vmatprep.mubr.f32.mxu0 0.0
    %996 = vmatmul.mubr.f32.gmra.mrb[0].mxu0 %v923
    %v997 = vpop.f32.mrb[0].mxu0
    %v998 = vadd.f32 %v32, %v997
    %v999 = vpop.f32.mrb[0].mxu0
    %1000 = vmatprep.mubr.f32.mxu0 0.0
    %1001 = vmatmul.mubr.f32.gmra.mrb[0].mxu0 %v925
    %v1002 = vpop.f32.mrb[0].mxu0
    %v1003 = vadd.f32 %v33, %v1002
    %v1004 = vpop.f32.mrb[0].mxu0
    %1005 = vdwg.mxu0
    %v1006 = vsel %vm409, %v998, -inf
    %1007 = vmax.xlane.f32.xlu0 %v1006
    %v1008 = vpop.xlane.xlu0 %1007
    %v1009 = vsel %vm409, %v1003, -inf
    %1010 = vmax.xlane.f32.xlu0 %v1009
    %v1011 = vpop.xlane.xlu0 %1010
    %v1012 = vsub.f32 %v998, %v1008
    %v1013 = vsub.f32 %v1003, %v1011
    %v1014 = vmul.f32 %v1012, 1.442695
    %v1015 = vpow.pop %v1014
    %v1016 = vmul.f32 %v1013, 1.442695
    %v1017 = vpow.pop %v1016
    %v1018 = vsel %vm409, %v1015, 0.0
    %1019 = vadd.xlane.f32.xlu0 %v1018
    %v1020 = vpop.xlane.xlu0 %1019
    %v1021 = vsel %vm409, %v1017, 0.0
    %1022 = vadd.xlane.f32.xlu0 %v1021
    %v1023 = vpop.xlane.xlu0 %1022
    %v1024 = vrcp.pop %v1020
    %v1025 = vrcp.pop %v1023
    %v1026 = vmul.f32 %v1015, %v1024
    %v1027 = vmul.f32 %v1017, %v1025
    %1028 = vrot.lane.b32.xlu0 %v313, 104
    %v1029 = vpop.permute.xlu0 %1028
    %1030 = vrot.lane.b32.xlu0 %v318, 104
    %v1031 = vpop.permute.xlu0 %1030
    %v1035 = vsel %vm409, %v1026, 0
    %v1038 = vsel %vm409, %v1027, 0
    %1040 = vmatprep.subr.mxu0 0.0
    %1041 = vmatpush1.msra.mxu0 %v1029
    %1042 = vmatprep.subr.mxu0 0.0
    %1043 = vmatpush1.msra.mxu0 %v1031
    %1044 = vmatprep.subr.mxu0 0.0
    %1045 = vmatpush1.msra.mxu0 0.0
    %1046 = vmatprep.subr.mxu0 0.0
    %1047 = vmatpush1.msra.mxu0 0.0
    %1048 = vmatprep.subr.mxu0 0.0
    %1049 = vmatpush1.msra.mxu0 0.0
    %1050 = vmatprep.subr.mxu0 0.0
    %1051 = vmatpush1.msra.mxu0 0.0
    %1052 = vmatprep.subr.mxu0 0.0
    %1053 = vmatpush1.msra.mxu0 0.0
    %1054 = vmatprep.subr.mxu0 0.0
    %1055 = vmatpush1.msra.mxu0 0.0
    %1056 = vmatprep.subr.mxu0 0.0
    %1057 = vmatpush1.msra.mxu0 0.0
    %1058 = vmatprep.subr.mxu0 0.0
    %1059 = vmatpush1.msra.mxu0 0.0
    %1060 = vmatprep.subr.mxu0 0.0
    %1061 = vmatpush1.msra.mxu0 0.0
    %1062 = vmatprep.subr.mxu0 0.0
    %1063 = vmatpush1.msra.mxu0 0.0
    %1064 = vmatprep.subr.mxu0 0.0
    %1065 = vmatpush1.msra.mxu0 0.0
    %1066 = vmatprep.subr.mxu0 0.0
    %1067 = vmatpush1.msra.mxu0 0.0
    %1068 = vmatprep.subr.mxu0 0.0
    %1069 = vmatpush1.msra.mxu0 0.0
    %1070 = vmatprep.subr.mxu0 0.0
    %1071 = vmatpush1.msra.mxu0 0.0
    %1072 = vmatprep.subr.mxu0 0.0
    %1073 = vmatpush1.msra.mxu0 0.0
    %1074 = vmatprep.subr.mxu0 0.0
    %1075 = vmatpush1.msra.mxu0 0.0
    %1076 = vmatprep.subr.mxu0 0.0
    %1077 = vmatpush1.msra.mxu0 0.0
    %1078 = vmatprep.subr.mxu0 0.0
    %1079 = vmatpush1.msra.mxu0 0.0
    %1080 = vmatprep.subr.mxu0 0.0
    %1081 = vmatpush1.msra.mxu0 0.0
    %1082 = vmatprep.subr.mxu0 0.0
    %1083 = vmatpush1.msra.mxu0 0.0
    %1084 = vmatprep.subr.mxu0 0.0
    %1085 = vmatpush1.msra.mxu0 0.0
    %1086 = vmatprep.subr.mxu0 0.0
    %1087 = vmatpush1.msra.mxu0 0.0
    %1088 = vmatprep.subr.mxu0 0.0
    %1089 = vmatpush1.msra.mxu0 0.0
    %1090 = vmatprep.subr.mxu0 0.0
    %1091 = vmatpush1.msra.mxu0 0.0
    %1092 = vmatprep.subr.mxu0 0.0
    %1093 = vmatpush1.msra.mxu0 0.0
    %1094 = vmatprep.subr.mxu0 0.0
    %1095 = vmatpush1.msra.mxu0 0.0
    %1096 = vmatprep.subr.mxu0 0.0
    %1097 = vmatpush1.msra.mxu0 0.0
    %1098 = vmatprep.subr.mxu0 0.0
    %1099 = vmatpush1.msra.mxu0 0.0
    %1100 = vmatprep.subr.mxu0 0.0
    %1101 = vmatpush1.msra.mxu0 0.0
    %1102 = vmatprep.subr.mxu0 0.0
    %1103 = vmatpush1.msra.mxu0 0.0
    %1104 = vmatprep.mubr.f32.mxu0 0.0
    %1105 = vmatmul.mubr.f32.gmra.mrb[0].mxu0 %v1035
    %v1106 = vpop.f32.mrb[0].mxu0
    %v1107 = vadd.f32 0.0, %v1106
    %v1108 = vpop.f32.mrb[0].mxu0
    %1109 = vmatprep.mubr.f32.mxu0 0.0
    %1110 = vmatmul.mubr.f32.gmra.mrb[0].mxu0 %v1038
    %v1111 = vpop.f32.mrb[0].mxu0
    %v1112 = vadd.f32 0.0, %v1111
    %v1113 = vpop.f32.mrb[0].mxu0
    %1114 = vdwg.mxu0
    %1117 = vrot.lane.b32.xlu0 %v707, 8
    %v1118 = vpop.permute.xlu0 %1117
    %1119 = vrot.lane.b32.xlu0 %v712, 8
    %v1120 = vpop.permute.xlu0 %1119
    %1125 = vrot.lane.b32.xlu0 %v907, 16
    %v1126 = vpop.permute.xlu0 %1125
    %1127 = vrot.lane.b32.xlu0 %v912, 16
    %v1128 = vpop.permute.xlu0 %1127
    %1133 = vrot.lane.b32.xlu0 %v1107, 24
    %v1134 = vpop.permute.xlu0 %1133
    %1135 = vrot.lane.b32.xlu0 %v1112, 24
    %v1136 = vpop.permute.xlu0 %1135
    %v1139 = vsel %vm321, %v505, %v1118
    %v1140 = vsel %vm321, %v510, %v1120
    %v1141 = vsel %vm409, %v1139, %v1126
    %v1142 = vsel %vm409, %v1140, %v1128
    %vm1143 = vcmask 195584
    %v1144 = vsel %vm1143, %v1141, %v1134
    %v1145 = vsel %vm1143, %v1142, %v1136
    %s1146 = scalar_lea.vmem %s3, 96
    %v1147 = vld [vmem:[%s1146] sm:$0xff]
    %v1148 = vld [vmem:[%s1146 + $0x8] sm:$0xff]
    %v1149 = vld [vmem:[%s1146 + $0x10] sm:$0xff]
    %v1150 = vld [vmem:[%s1146 + $0x18] sm:$0xff]
    %v1152 = vsel %vm36, %v1144, 0
    %v1155 = vsel %vm36, %v1145, 0
    %1157 = vmatprep.subr.mxu0 0.0
    %1158 = vmatpush1.msra.mxu0 %v1147
    %1159 = vmatprep.subr.mxu0 0.0
    %1160 = vmatpush1.msra.mxu0 %v1148
    %1161 = vmatprep.subr.mxu0 0.0
    %1162 = vmatpush1.msra.mxu0 %v1149
    %1163 = vmatprep.subr.mxu0 0.0
    %1164 = vmatpush1.msra.mxu0 %v1150
    %1165 = vmatprep.subr.mxu0 0.0
    %1166 = vmatpush1.msra.mxu0 0.0
    %1167 = vmatprep.subr.mxu0 0.0
    %1168 = vmatpush1.msra.mxu0 0.0
    %1169 = vmatprep.subr.mxu0 0.0
    %1170 = vmatpush1.msra.mxu0 0.0
    %1171 = vmatprep.subr.mxu0 0.0
    %1172 = vmatpush1.msra.mxu0 0.0
    %1173 = vmatprep.subr.mxu0 0.0
    %1174 = vmatpush1.msra.mxu0 0.0
    %1175 = vmatprep.subr.mxu0 0.0
    %1176 = vmatpush1.msra.mxu0 0.0
    %1177 = vmatprep.subr.mxu0 0.0
    %1178 = vmatpush1.msra.mxu0 0.0
    %1179 = vmatprep.subr.mxu0 0.0
    %1180 = vmatpush1.msra.mxu0 0.0
    %1181 = vmatprep.subr.mxu0 0.0
    %1182 = vmatpush1.msra.mxu0 0.0
    %1183 = vmatprep.subr.mxu0 0.0
    %1184 = vmatpush1.msra.mxu0 0.0
    %1185 = vmatprep.subr.mxu0 0.0
    %1186 = vmatpush1.msra.mxu0 0.0
    %1187 = vmatprep.subr.mxu0 0.0
    %1188 = vmatpush1.msra.mxu0 0.0
    %1189 = vmatprep.subr.mxu0 0.0
    %1190 = vmatpush1.msra.mxu0 0.0
    %1191 = vmatprep.subr.mxu0 0.0
    %1192 = vmatpush1.msra.mxu0 0.0
    %1193 = vmatprep.subr.mxu0 0.0
    %1194 = vmatpush1.msra.mxu0 0.0
    %1195 = vmatprep.subr.mxu0 0.0
    %1196 = vmatpush1.msra.mxu0 0.0
    %1197 = vmatprep.subr.mxu0 0.0
    %1198 = vmatpush1.msra.mxu0 0.0
    %1199 = vmatprep.subr.mxu0 0.0
    %1200 = vmatpush1.msra.mxu0 0.0
    %1201 = vmatprep.subr.mxu0 0.0
    %1202 = vmatpush1.msra.mxu0 0.0
    %1203 = vmatprep.subr.mxu0 0.0
    %1204 = vmatpush1.msra.mxu0 0.0
    %1205 = vmatprep.subr.mxu0 0.0
    %1206 = vmatpush1.msra.mxu0 0.0
    %1207 = vmatprep.subr.mxu0 0.0
    %1208 = vmatpush1.msra.mxu0 0.0
    %1209 = vmatprep.subr.mxu0 0.0
    %1210 = vmatpush1.msra.mxu0 0.0
    %1211 = vmatprep.subr.mxu0 0.0
    %1212 = vmatpush1.msra.mxu0 0.0
    %1213 = vmatprep.subr.mxu0 0.0
    %1214 = vmatpush1.msra.mxu0 0.0
    %1215 = vmatprep.subr.mxu0 0.0
    %1216 = vmatpush1.msra.mxu0 0.0
    %1217 = vmatprep.subr.mxu0 0.0
    %1218 = vmatpush1.msra.mxu0 0.0
    %1219 = vmatprep.subr.mxu0 0.0
    %1220 = vmatpush1.msra.mxu0 0.0
    %1221 = vmatprep.mubr.f32.mxu0 0.0
    %1222 = vmatmul.mubr.f32.gmra.mrb[0].mxu0 %v1152
    %v1223 = vpop.f32.mrb[0].mxu0
    %v1224 = vadd.f32 0.0, %v1223
    %v1225 = vpop.f32.mrb[0].mxu0
    %1226 = vmatprep.mubr.f32.mxu0 0.0
    %1227 = vmatmul.mubr.f32.gmra.mrb[0].mxu0 %v1155
    %v1228 = vpop.f32.mrb[0].mxu0
    %v1229 = vadd.f32 0.0, %v1228
    %v1230 = vpop.f32.mrb[0].mxu0
    %1231 = vdwg.mxu0
    %v1232 = vadd.f32 %v30, %v1224
    %v1233 = vadd.f32 %v31, %v1229
    %v1234 = vld [vmem:[%s2 + $0x2] sm:$0x1]
    %v1235 = vld [vmem:[%s2 + $0x3] sm:$0x1]
    %v1236 = vsel %vm36, %v1232, 0.0
    %1237 = vadd.xlane.f32.xlu0 %v1236
    %v1238 = vpop.xlane.xlu0 %1237
    %v1239 = vsel %vm36, %v1233, 0.0
    %1240 = vadd.xlane.f32.xlu0 %v1239
    %v1241 = vpop.xlane.xlu0 %1240
    %v1242 = vmul.f32 %v1238, %v43
    %v1243 = vmul.f32 %v1241, %v43
    %v1244 = vsub.f32 %v1232, %v1242
    %v1245 = vsub.f32 %v1233, %v1243
    %v1246 = vmul.f32 %v1244, %v1244
    %v1247 = vmul.f32 %v1245, %v1245
    %v1248 = vsel %vm36, %v1246, 0.0
    %1249 = vadd.xlane.f32.xlu0 %v1248
    %v1250 = vpop.xlane.xlu0 %1249
    %v1251 = vsel %vm36, %v1247, 0.0
    %1252 = vadd.xlane.f32.xlu0 %v1251
    %v1253 = vpop.xlane.xlu0 %1252
    %v1254 = vmul.f32 %v1250, %v43
    %v1255 = vmul.f32 %v1253, %v43
    %v1256 = vadd.f32 %v1254, 1e-05
    %v1257 = vadd.f32 %v1255, 1e-05
    %v1258 = vrsqrt.pop %v1256
    %v1259 = vrsqrt.pop %v1257
    %v1260 = vmul.f32 %v1244, %v1258
    %v1261 = vmul.f32 %v1245, %v1259
    %v1262 = vlaneseq
    %v1263 = vshrl.u32 %v1262, 7
    %v1264 = vsub.s32 0, %v1263
    %v1265 = vrot.slane %v1234, %v1264
    %v1266 = vmul.f32 %v1260, %v1265
    %v1267 = vmul.f32 %v1261, %v1265
    %v1268 = vlaneseq
    %v1269 = vshrl.u32 %v1268, 7
    %v1270 = vsub.s32 0, %v1269
    %v1271 = vrot.slane %v1235, %v1270
    %v1272 = vadd.f32 %v1266, %v1271
    %v1273 = vadd.f32 %v1267, %v1271
    %v1274 = vld [vmem:[%s6] sm:$0x3]
    %v1275 = vld [vmem:[%s4] sm:$0xff]
    %v1276 = vld [vmem:[%s4 + $0x8] sm:$0xff]
    %v1277 = vld [vmem:[%s4 + $0x10] sm:$0xff]
    %v1278 = vld [vmem:[%s4 + $0x18] sm:$0xff]
    %v1279 = vlaneseq
    %v1280 = vshrl.u32 %v1279, 7
    %v1281 = vsub.s32 0, %v1280
    %v1282 = vrot.slane %v1274, %v1281
    %v1284 = vsel %vm36, %v1272, 0
    %v1287 = vsel %vm36, %v1273, 0
    %1289 = vmatprep.subr.mxu0 0.0
    %1290 = vmatpush1.msra.mxu0 %v1275
    %1291 = vmatprep.subr.mxu0 0.0
    %1292 = vmatpush1.msra.mxu0 %v1276
    %1293 = vmatprep.subr.mxu0 0.0
    %1294 = vmatpush1.msra.mxu0 %v1277
    %1295 = vmatprep.subr.mxu0 0.0
    %1296 = vmatpush1.msra.mxu0 %v1278
    %1297 = vmatprep.subr.mxu0 0.0
    %1298 = vmatpush1.msra.mxu0 0.0
    %1299 = vmatprep.subr.mxu0 0.0
    %1300 = vmatpush1.msra.mxu0 0.0
    %1301 = vmatprep.subr.mxu0 0.0
    %1302 = vmatpush1.msra.mxu0 0.0
    %1303 = vmatprep.subr.mxu0 0.0
    %1304 = vmatpush1.msra.mxu0 0.0
    %1305 = vmatprep.subr.mxu0 0.0
    %1306 = vmatpush1.msra.mxu0 0.0
    %1307 = vmatprep.subr.mxu0 0.0
    %1308 = vmatpush1.msra.mxu0 0.0
    %1309 = vmatprep.subr.mxu0 0.0
    %1310 = vmatpush1.msra.mxu0 0.0
    %1311 = vmatprep.subr.mxu0 0.0
    %1312 = vmatpush1.msra.mxu0 0.0
    %1313 = vmatprep.subr.mxu0 0.0
    %1314 = vmatpush1.msra.mxu0 0.0
    %1315 = vmatprep.subr.mxu0 0.0
    %1316 = vmatpush1.msra.mxu0 0.0
    %1317 = vmatprep.subr.mxu0 0.0
    %1318 = vmatpush1.msra.mxu0 0.0
    %1319 = vmatprep.subr.mxu0 0.0
    %1320 = vmatpush1.msra.mxu0 0.0
    %1321 = vmatprep.subr.mxu0 0.0
    %1322 = vmatpush1.msra.mxu0 0.0
    %1323 = vmatprep.subr.mxu0 0.0
    %1324 = vmatpush1.msra.mxu0 0.0
    %1325 = vmatprep.subr.mxu0 0.0
    %1326 = vmatpush1.msra.mxu0 0.0
    %1327 = vmatprep.subr.mxu0 0.0
    %1328 = vmatpush1.msra.mxu0 0.0
    %1329 = vmatprep.subr.mxu0 0.0
    %1330 = vmatpush1.msra.mxu0 0.0
    %1331 = vmatprep.subr.mxu0 0.0
    %1332 = vmatpush1.msra.mxu0 0.0
    %1333 = vmatprep.subr.mxu0 0.0
    %1334 = vmatpush1.msra.mxu0 0.0
    %1335 = vmatprep.subr.mxu0 0.0
    %1336 = vmatpush1.msra.mxu0 0.0
    %1337 = vmatprep.subr.mxu0 0.0
    %1338 = vmatpush1.msra.mxu0 0.0
    %1339 = vmatprep.subr.mxu0 0.0
    %1340 = vmatpush1.msra.mxu0 0.0
    %1341 = vmatprep.subr.mxu0 0.0
    %1342 = vmatpush1.msra.mxu0 0.0
    %1343 = vmatprep.subr.mxu0 0.0
    %1344 = vmatpush1.msra.mxu0 0.0
    %1345 = vmatprep.subr.mxu0 0.0
    %1346 = vmatpush1.msra.mxu0 0.0
    %1347 = vmatprep.subr.mxu0 0.0
    %1348 = vmatpush1.msra.mxu0 0.0
    %1349 = vmatprep.subr.mxu0 0.0
    %1350 = vmatpush1.msra.mxu0 0.0
    %1351 = vmatprep.subr.mxu0 0.0
    %1352 = vmatpush1.msra.mxu0 0.0
    %1353 = vmatprep.mubr.f32.mxu0 0.0
    %1354 = vmatmul.mubr.f32.gmra.mrb[0].mxu0 %v1284
    %v1355 = vpop.f32.mrb[0].mxu0
    %v1356 = vadd.f32 %v1282, %v1355
    %v1357 = vpop.f32.mrb[0].mxu0
    %1358 = vmatprep.mubr.f32.mxu0 0.0
    %1359 = vmatmul.mubr.f32.gmra.mrb[0].mxu0 %v1287
    %v1360 = vpop.f32.mrb[0].mxu0
    %v1361 = vadd.f32 %v1282, %v1360
    %v1362 = vpop.f32.mrb[0].mxu0
    %1363 = vdwg.mxu0
    %v1364 = vmax.f32 %v1356, 0.0
    %v1365 = vmax.f32 %v1361, 0.0
    %v1366 = vld [vmem:[%s5] sm:$0xff]
    %v1367 = vld [vmem:[%s5 + $0x8] sm:$0xff]
    %v1368 = vld [vmem:[%s5 + $0x10] sm:$0xff]
    %v1369 = vld [vmem:[%s5 + $0x18] sm:$0xff]
    %v1370 = vld [vmem:[%s5 + $0x20] sm:$0xff]
    %v1371 = vld [vmem:[%s5 + $0x28] sm:$0xff]
    %v1372 = vld [vmem:[%s5 + $0x30] sm:$0xff]
    %v1373 = vld [vmem:[%s5 + $0x38] sm:$0xff]
    %v1374 = vld [vmem:[%s5 + $0x40] sm:$0xff]
    %v1375 = vld [vmem:[%s5 + $0x48] sm:$0xff]
    %v1376 = vld [vmem:[%s5 + $0x50] sm:$0xff]
    %v1377 = vld [vmem:[%s5 + $0x58] sm:$0xff]
    %v1378 = vld [vmem:[%s5 + $0x60] sm:$0xff]
    %v1379 = vld [vmem:[%s5 + $0x68] sm:$0xff]
    %v1380 = vld [vmem:[%s5 + $0x70] sm:$0xff]
    %v1381 = vld [vmem:[%s5 + $0x78] sm:$0xff]
    %v1382 = vlaneseq
    %v1383 = vshrl.u32 %v1382, 7
    %v1384 = vsub.s32 1, %v1383
    %v1385 = vrot.slane %v1274, %v1384
    %1386 = vmatprep.subr.mxu0 0.0
    %1387 = vmatpush1.msra.mxu0 %v1366
    %1388 = vmatprep.subr.mxu0 0.0
    %1389 = vmatpush1.msra.mxu0 %v1367
    %1390 = vmatprep.subr.mxu0 0.0
    %1391 = vmatpush1.msra.mxu0 %v1368
    %1392 = vmatprep.subr.mxu0 0.0
    %1393 = vmatpush1.msra.mxu0 %v1369
    %1394 = vmatprep.subr.mxu0 0.0
    %1395 = vmatpush1.msra.mxu0 %v1370
    %1396 = vmatprep.subr.mxu0 0.0
    %1397 = vmatpush1.msra.mxu0 %v1371
    %1398 = vmatprep.subr.mxu0 0.0
    %1399 = vmatpush1.msra.mxu0 %v1372
    %1400 = vmatprep.subr.mxu0 0.0
    %1401 = vmatpush1.msra.mxu0 %v1373
    %1402 = vmatprep.subr.mxu0 0.0
    %1403 = vmatpush1.msra.mxu0 %v1374
    %1404 = vmatprep.subr.mxu0 0.0
    %1405 = vmatpush1.msra.mxu0 %v1375
    %1406 = vmatprep.subr.mxu0 0.0
    %1407 = vmatpush1.msra.mxu0 %v1376
    %1408 = vmatprep.subr.mxu0 0.0
    %1409 = vmatpush1.msra.mxu0 %v1377
    %1410 = vmatprep.subr.mxu0 0.0
    %1411 = vmatpush1.msra.mxu0 %v1378
    %1412 = vmatprep.subr.mxu0 0.0
    %1413 = vmatpush1.msra.mxu0 %v1379
    %1414 = vmatprep.subr.mxu0 0.0
    %1415 = vmatpush1.msra.mxu0 %v1380
    %1416 = vmatprep.subr.mxu0 0.0
    %1417 = vmatpush1.msra.mxu0 %v1381
    %1418 = vmatprep.subr.mxu0 0.0
    %1419 = vmatpush1.msra.mxu0 0.0
    %1420 = vmatprep.subr.mxu0 0.0
    %1421 = vmatpush1.msra.mxu0 0.0
    %1422 = vmatprep.subr.mxu0 0.0
    %1423 = vmatpush1.msra.mxu0 0.0
    %1424 = vmatprep.subr.mxu0 0.0
    %1425 = vmatpush1.msra.mxu0 0.0
    %1426 = vmatprep.subr.mxu0 0.0
    %1427 = vmatpush1.msra.mxu0 0.0
    %1428 = vmatprep.subr.mxu0 0.0
    %1429 = vmatpush1.msra.mxu0 0.0
    %1430 = vmatprep.subr.mxu0 0.0
    %1431 = vmatpush1.msra.mxu0 0.0
    %1432 = vmatprep.subr.mxu0 0.0
    %1433 = vmatpush1.msra.mxu0 0.0
    %1434 = vmatprep.subr.mxu0 0.0
    %1435 = vmatpush1.msra.mxu0 0.0
    %1436 = vmatprep.subr.mxu0 0.0
    %1437 = vmatpush1.msra.mxu0 0.0
    %1438 = vmatprep.subr.mxu0 0.0
    %1439 = vmatpush1.msra.mxu0 0.0
    %1440 = vmatprep.subr.mxu0 0.0
    %1441 = vmatpush1.msra.mxu0 0.0
    %1442 = vmatprep.subr.mxu0 0.0
    %1443 = vmatpush1.msra.mxu0 0.0
    %1444 = vmatprep.subr.mxu0 0.0
    %1445 = vmatpush1.msra.mxu0 0.0
    %1446 = vmatprep.subr.mxu0 0.0
    %1447 = vmatpush1.msra.mxu0 0.0
    %1448 = vmatprep.subr.mxu0 0.0
    %1449 = vmatpush1.msra.mxu0 0.0
    %1450 = vmatprep.mubr.f32.mxu0 0.0
    %1451 = vmatmul.mubr.f32.gmra.mrb[0].mxu0 %v1364
    %v1452 = vpop.f32.mrb[0].mxu0
    %v1453 = vadd.f32 %v1385, %v1452
    %v1454 = vpop.f32.mrb[0].mxu0
    %1455 = vmatprep.mubr.f32.mxu0 0.0
    %1456 = vmatmul.mubr.f32.gmra.mrb[0].mxu0 %v1365
    %v1457 = vpop.f32.mrb[0].mxu0
    %v1458 = vadd.f32 %v1385, %v1457
    %v1459 = vpop.f32.mrb[0].mxu0
    %1460 = vdwg.mxu0
    %v1461 = vadd.f32 %v1232, %v1453
    %v1462 = vadd.f32 %v1233, %v1458
    %v1463 = vld [vmem:[%s2 + $0x4] sm:$0x1]
    %v1464 = vld [vmem:[%s2 + $0x5] sm:$0x1]
    %v1465 = vsel %vm36, %v1461, 0.0
    %1466 = vadd.xlane.f32.xlu0 %v1465
    %v1467 = vpop.xlane.xlu0 %1466
    %v1468 = vsel %vm36, %v1462, 0.0
    %1469 = vadd.xlane.f32.xlu0 %v1468
    %v1470 = vpop.xlane.xlu0 %1469
    %v1471 = vmul.f32 %v1467, %v43
    %v1472 = vmul.f32 %v1470, %v43
    %v1473 = vsub.f32 %v1461, %v1471
    %v1474 = vsub.f32 %v1462, %v1472
    %v1475 = vmul.f32 %v1473, %v1473
    %v1476 = vmul.f32 %v1474, %v1474
    %v1477 = vsel %vm36, %v1475, 0.0
    %1478 = vadd.xlane.f32.xlu0 %v1477
    %v1479 = vpop.xlane.xlu0 %1478
    %v1480 = vsel %vm36, %v1476, 0.0
    %1481 = vadd.xlane.f32.xlu0 %v1480
    %v1482 = vpop.xlane.xlu0 %1481
    %v1483 = vmul.f32 %v1479, %v43
    %v1484 = vmul.f32 %v1482, %v43
    %v1485 = vadd.f32 %v1483, 1e-05
    %v1486 = vadd.f32 %v1484, 1e-05
    %v1487 = vrsqrt.pop %v1485
    %v1488 = vrsqrt.pop %v1486
    %v1489 = vmul.f32 %v1473, %v1487
    %v1490 = vmul.f32 %v1474, %v1488
    %v1491 = vlaneseq
    %v1492 = vshrl.u32 %v1491, 7
    %v1493 = vsub.s32 0, %v1492
    %v1494 = vrot.slane %v1463, %v1493
    %v1495 = vmul.f32 %v1489, %v1494
    %v1496 = vmul.f32 %v1490, %v1494
    %v1497 = vlaneseq
    %v1498 = vshrl.u32 %v1497, 7
    %v1499 = vsub.s32 0, %v1498
    %v1500 = vrot.slane %v1464, %v1499
    %v1501 = vadd.f32 %v1495, %v1500
    %v1502 = vadd.f32 %v1496, %v1500
    %s1503 = scalar_lea.vmem %s3, 128
    %v1504 = vld [vmem:[%s1503] sm:$0xff]
    %v1505 = vld [vmem:[%s1503 + $0x8] sm:$0xff]
    %v1506 = vld [vmem:[%s1503 + $0x10] sm:$0xff]
    %v1507 = vld [vmem:[%s1503 + $0x18] sm:$0xff]
    %v1509 = vsel %vm36, %v1501, 0
    %v1512 = vsel %vm36, %v1502, 0
    %1514 = vmatprep.subr.mxu0 0.0
    %1515 = vmatpush1.msra.mxu0 %v1504
    %1516 = vmatprep.subr.mxu0 0.0
    %1517 = vmatpush1.msra.mxu0 %v1505
    %1518 = vmatprep.subr.mxu0 0.0
    %1519 = vmatpush1.msra.mxu0 %v1506
    %1520 = vmatprep.subr.mxu0 0.0
    %1521 = vmatpush1.msra.mxu0 %v1507
    %1522 = vmatprep.subr.mxu0 0.0
    %1523 = vmatpush1.msra.mxu0 0.0
    %1524 = vmatprep.subr.mxu0 0.0
    %1525 = vmatpush1.msra.mxu0 0.0
    %1526 = vmatprep.subr.mxu0 0.0
    %1527 = vmatpush1.msra.mxu0 0.0
    %1528 = vmatprep.subr.mxu0 0.0
    %1529 = vmatpush1.msra.mxu0 0.0
    %1530 = vmatprep.subr.mxu0 0.0
    %1531 = vmatpush1.msra.mxu0 0.0
    %1532 = vmatprep.subr.mxu0 0.0
    %1533 = vmatpush1.msra.mxu0 0.0
    %1534 = vmatprep.subr.mxu0 0.0
    %1535 = vmatpush1.msra.mxu0 0.0
    %1536 = vmatprep.subr.mxu0 0.0
    %1537 = vmatpush1.msra.mxu0 0.0
    %1538 = vmatprep.subr.mxu0 0.0
    %1539 = vmatpush1.msra.mxu0 0.0
    %1540 = vmatprep.subr.mxu0 0.0
    %1541 = vmatpush1.msra.mxu0 0.0
    %1542 = vmatprep.subr.mxu0 0.0
    %1543 = vmatpush1.msra.mxu0 0.0
    %1544 = vmatprep.subr.mxu0 0.0
    %1545 = vmatpush1.msra.mxu0 0.0
    %1546 = vmatprep.subr.mxu0 0.0
    %1547 = vmatpush1.msra.mxu0 0.0
    %1548 = vmatprep.subr.mxu0 0.0
    %1549 = vmatpush1.msra.mxu0 0.0
    %1550 = vmatprep.subr.mxu0 0.0
    %1551 = vmatpush1.msra.mxu0 0.0
    %1552 = vmatprep.subr.mxu0 0.0
    %1553 = vmatpush1.msra.mxu0 0.0
    %1554 = vmatprep.subr.mxu0 0.0
    %1555 = vmatpush1.msra.mxu0 0.0
    %1556 = vmatprep.subr.mxu0 0.0
    %1557 = vmatpush1.msra.mxu0 0.0
    %1558 = vmatprep.subr.mxu0 0.0
    %1559 = vmatpush1.msra.mxu0 0.0
    %1560 = vmatprep.subr.mxu0 0.0
    %1561 = vmatpush1.msra.mxu0 0.0
    %1562 = vmatprep.subr.mxu0 0.0
    %1563 = vmatpush1.msra.mxu0 0.0
    %1564 = vmatprep.subr.mxu0 0.0
    %1565 = vmatpush1.msra.mxu0 0.0
    %1566 = vmatprep.subr.mxu0 0.0
    %1567 = vmatpush1.msra.mxu0 0.0
    %1568 = vmatprep.subr.mxu0 0.0
    %1569 = vmatpush1.msra.mxu0 0.0
    %1570 = vmatprep.subr.mxu0 0.0
    %1571 = vmatpush1.msra.mxu0 0.0
    %1572 = vmatprep.subr.mxu0 0.0
    %1573 = vmatpush1.msra.mxu0 0.0
    %1574 = vmatprep.subr.mxu0 0.0
    %1575 = vmatpush1.msra.mxu0 0.0
    %1576 = vmatprep.subr.mxu0 0.0
    %1577 = vmatpush1.msra.mxu0 0.0
    %1578 = vmatprep.mubr.f32.mxu0 0.0
    %1579 = vmatmul.mubr.f32.gmra.mrb[0].mxu0 %v1509
    %v1580 = vpop.f32.mrb[0].mxu0
    %v1581 = vadd.f32 0.0, %v1580
    %v1582 = vpop.f32.mrb[0].mxu0
    %1583 = vmatprep.mubr.f32.mxu0 0.0
    %1584 = vmatmul.mubr.f32.gmra.mrb[0].mxu0 %v1512
    %v1585 = vpop.f32.mrb[0].mxu0
    %v1586 = vadd.f32 0.0, %v1585
    %v1587 = vpop.f32.mrb[0].mxu0
    %1588 = vdwg.mxu0
    %s1589 = scalar_lea.vmem %s3, 160
    %v1590 = vld [vmem:[%s1589] sm:$0xff]
    %v1591 = vld [vmem:[%s1589 + $0x8] sm:$0xff]
    %v1592 = vld [vmem:[%s1589 + $0x10] sm:$0xff]
    %v1593 = vld [vmem:[%s1589 + $0x18] sm:$0xff]
    %1594 = vmatprep.subr.mxu0 0.0
    %1595 = vmatpush1.msra.mxu0 %v1590
    %1596 = vmatprep.subr.mxu0 0.0
    %1597 = vmatpush1.msra.mxu0 %v1591
    %1598 = vmatprep.subr.mxu0 0.0
    %1599 = vmatpush1.msra.mxu0 %v1592
    %1600 = vmatprep.subr.mxu0 0.0
    %1601 = vmatpush1.msra.mxu0 %v1593
    %1602 = vmatprep.subr.mxu0 0.0
    %1603 = vmatpush1.msra.mxu0 0.0
    %1604 = vmatprep.subr.mxu0 0.0
    %1605 = vmatpush1.msra.mxu0 0.0
    %1606 = vmatprep.subr.mxu0 0.0
    %1607 = vmatpush1.msra.mxu0 0.0
    %1608 = vmatprep.subr.mxu0 0.0
    %1609 = vmatpush1.msra.mxu0 0.0
    %1610 = vmatprep.subr.mxu0 0.0
    %1611 = vmatpush1.msra.mxu0 0.0
    %1612 = vmatprep.subr.mxu0 0.0
    %1613 = vmatpush1.msra.mxu0 0.0
    %1614 = vmatprep.subr.mxu0 0.0
    %1615 = vmatpush1.msra.mxu0 0.0
    %1616 = vmatprep.subr.mxu0 0.0
    %1617 = vmatpush1.msra.mxu0 0.0
    %1618 = vmatprep.subr.mxu0 0.0
    %1619 = vmatpush1.msra.mxu0 0.0
    %1620 = vmatprep.subr.mxu0 0.0
    %1621 = vmatpush1.msra.mxu0 0.0
    %1622 = vmatprep.subr.mxu0 0.0
    %1623 = vmatpush1.msra.mxu0 0.0
    %1624 = vmatprep.subr.mxu0 0.0
    %1625 = vmatpush1.msra.mxu0 0.0
    %1626 = vmatprep.subr.mxu0 0.0
    %1627 = vmatpush1.msra.mxu0 0.0
    %1628 = vmatprep.subr.mxu0 0.0
    %1629 = vmatpush1.msra.mxu0 0.0
    %1630 = vmatprep.subr.mxu0 0.0
    %1631 = vmatpush1.msra.mxu0 0.0
    %1632 = vmatprep.subr.mxu0 0.0
    %1633 = vmatpush1.msra.mxu0 0.0
    %1634 = vmatprep.subr.mxu0 0.0
    %1635 = vmatpush1.msra.mxu0 0.0
    %1636 = vmatprep.subr.mxu0 0.0
    %1637 = vmatpush1.msra.mxu0 0.0
    %1638 = vmatprep.subr.mxu0 0.0
    %1639 = vmatpush1.msra.mxu0 0.0
    %1640 = vmatprep.subr.mxu0 0.0
    %1641 = vmatpush1.msra.mxu0 0.0
    %1642 = vmatprep.subr.mxu0 0.0
    %1643 = vmatpush1.msra.mxu0 0.0
    %1644 = vmatprep.subr.mxu0 0.0
    %1645 = vmatpush1.msra.mxu0 0.0
    %1646 = vmatprep.subr.mxu0 0.0
    %1647 = vmatpush1.msra.mxu0 0.0
    %1648 = vmatprep.subr.mxu0 0.0
    %1649 = vmatpush1.msra.mxu0 0.0
    %1650 = vmatprep.subr.mxu0 0.0
    %1651 = vmatpush1.msra.mxu0 0.0
    %1652 = vmatprep.subr.mxu0 0.0
    %1653 = vmatpush1.msra.mxu0 0.0
    %1654 = vmatprep.subr.mxu0 0.0
    %1655 = vmatpush1.msra.mxu0 0.0
    %1656 = vmatprep.subr.mxu0 0.0
    %1657 = vmatpush1.msra.mxu0 0.0
    %1658 = vmatprep.mubr.f32.mxu0 0.0
    %1659 = vmatmul.mubr.f32.gmra.mrb[0].mxu0 %v1509
    %v1660 = vpop.f32.mrb[0].mxu0
    %v1661 = vadd.f32 0.0, %v1660
    %v1662 = vpop.f32.mrb[0].mxu0
    %1663 = vmatprep.mubr.f32.mxu0 0.0
    %1664 = vmatmul.mubr.f32.gmra.mrb[0].mxu0 %v1512
    %v1665 = vpop.f32.mrb[0].mxu0
    %v1666 = vadd.f32 0.0, %v1665
    %v1667 = vpop.f32.mrb[0].mxu0
    %1668 = vdwg.mxu0
    %s1669 = scalar_lea.vmem %s3, 192
    %v1670 = vld [vmem:[%s1669] sm:$0xff]
    %v1671 = vld [vmem:[%s1669 + $0x8] sm:$0xff]
    %v1672 = vld [vmem:[%s1669 + $0x10] sm:$0xff]
    %v1673 = vld [vmem:[%s1669 + $0x18] sm:$0xff]
    %1674 = vmatprep.subr.mxu0 0.0
    %1675 = vmatpush1.msra.mxu0 %v1670
    %1676 = vmatprep.subr.mxu0 0.0
    %1677 = vmatpush1.msra.mxu0 %v1671
    %1678 = vmatprep.subr.mxu0 0.0
    %1679 = vmatpush1.msra.mxu0 %v1672
    %1680 = vmatprep.subr.mxu0 0.0
    %1681 = vmatpush1.msra.mxu0 %v1673
    %1682 = vmatprep.subr.mxu0 0.0
    %1683 = vmatpush1.msra.mxu0 0.0
    %1684 = vmatprep.subr.mxu0 0.0
    %1685 = vmatpush1.msra.mxu0 0.0
    %1686 = vmatprep.subr.mxu0 0.0
    %1687 = vmatpush1.msra.mxu0 0.0
    %1688 = vmatprep.subr.mxu0 0.0
    %1689 = vmatpush1.msra.mxu0 0.0
    %1690 = vmatprep.subr.mxu0 0.0
    %1691 = vmatpush1.msra.mxu0 0.0
    %1692 = vmatprep.subr.mxu0 0.0
    %1693 = vmatpush1.msra.mxu0 0.0
    %1694 = vmatprep.subr.mxu0 0.0
    %1695 = vmatpush1.msra.mxu0 0.0
    %1696 = vmatprep.subr.mxu0 0.0
    %1697 = vmatpush1.msra.mxu0 0.0
    %1698 = vmatprep.subr.mxu0 0.0
    %1699 = vmatpush1.msra.mxu0 0.0
    %1700 = vmatprep.subr.mxu0 0.0
    %1701 = vmatpush1.msra.mxu0 0.0
    %1702 = vmatprep.subr.mxu0 0.0
    %1703 = vmatpush1.msra.mxu0 0.0
    %1704 = vmatprep.subr.mxu0 0.0
    %1705 = vmatpush1.msra.mxu0 0.0
    %1706 = vmatprep.subr.mxu0 0.0
    %1707 = vmatpush1.msra.mxu0 0.0
    %1708 = vmatprep.subr.mxu0 0.0
    %1709 = vmatpush1.msra.mxu0 0.0
    %1710 = vmatprep.subr.mxu0 0.0
    %1711 = vmatpush1.msra.mxu0 0.0
    %1712 = vmatprep.subr.mxu0 0.0
    %1713 = vmatpush1.msra.mxu0 0.0
    %1714 = vmatprep.subr.mxu0 0.0
    %1715 = vmatpush1.msra.mxu0 0.0
    %1716 = vmatprep.subr.mxu0 0.0
    %1717 = vmatpush1.msra.mxu0 0.0
    %1718 = vmatprep.subr.mxu0 0.0
    %1719 = vmatpush1.msra.mxu0 0.0
    %1720 = vmatprep.subr.mxu0 0.0
    %1721 = vmatpush1.msra.mxu0 0.0
    %1722 = vmatprep.subr.mxu0 0.0
    %1723 = vmatpush1.msra.mxu0 0.0
    %1724 = vmatprep.subr.mxu0 0.0
    %1725 = vmatpush1.msra.mxu0 0.0
    %1726 = vmatprep.subr.mxu0 0.0
    %1727 = vmatpush1.msra.mxu0 0.0
    %1728 = vmatprep.subr.mxu0 0.0
    %1729 = vmatpush1.msra.mxu0 0.0
    %1730 = vmatprep.subr.mxu0 0.0
    %1731 = vmatpush1.msra.mxu0 0.0
    %1732 = vmatprep.subr.mxu0 0.0
    %1733 = vmatpush1.msra.mxu0 0.0
    %1734 = vmatprep.subr.mxu0 0.0
    %1735 = vmatpush1.msra.mxu0 0.0
    %1736 = vmatprep.subr.mxu0 0.0
    %1737 = vmatpush1.msra.mxu0 0.0
    %1738 = vmatprep.mubr.f32.mxu0 0.0
    %1739 = vmatmul.mubr.f32.gmra.mrb[0].mxu0 %v1509
    %v1740 = vpop.f32.mrb[0].mxu0
    %v1741 = vadd.f32 0.0, %v1740
    %v1742 = vpop.f32.mrb[0].mxu0
    %1743 = vmatprep.mubr.f32.mxu0 0.0
    %1744 = vmatmul.mubr.f32.gmra.mrb[0].mxu0 %v1512
    %v1745 = vpop.f32.mrb[0].mxu0
    %v1746 = vadd.f32 0.0, %v1745
    %v1747 = vpop.f32.mrb[0].mxu0
    %1748 = vdwg.mxu0
    %v1750 = vsel %vm321, %v1581, 0
    %v1753 = vsel %vm321, %v1586, 0
    %v1756 = vsel %vm321, %v1661, 0
    %v1759 = vsel %vm321, %v1666, 0
    %1761 = vmatprep.subr.mxu0 0.0
    %1762 = vmatpush1.xpose.msra.mxu0 %v1756
    %1763 = vmatprep.subr.mxu0 0.0
    %1764 = vmatpush1.xpose.msra.mxu0 %v1759
    %1765 = vmatprep.subr.mxu0 0.0
    %1766 = vmatpush1.xpose.msra.mxu0 0.0
    %1767 = vmatprep.subr.mxu0 0.0
    %1768 = vmatpush1.xpose.msra.mxu0 0.0
    %1769 = vmatprep.subr.mxu0 0.0
    %1770 = vmatpush1.xpose.msra.mxu0 0.0
    %1771 = vmatprep.subr.mxu0 0.0
    %1772 = vmatpush1.xpose.msra.mxu0 0.0
    %1773 = vmatprep.subr.mxu0 0.0
    %1774 = vmatpush1.xpose.msra.mxu0 0.0
    %1775 = vmatprep.subr.mxu0 0.0
    %1776 = vmatpush1.xpose.msra.mxu0 0.0
    %1777 = vmatprep.subr.mxu0 0.0
    %1778 = vmatpush1.xpose.msra.mxu0 0.0
    %1779 = vmatprep.subr.mxu0 0.0
    %1780 = vmatpush1.xpose.msra.mxu0 0.0
    %1781 = vmatprep.subr.mxu0 0.0
    %1782 = vmatpush1.xpose.msra.mxu0 0.0
    %1783 = vmatprep.subr.mxu0 0.0
    %1784 = vmatpush1.xpose.msra.mxu0 0.0
    %1785 = vmatprep.subr.mxu0 0.0
    %1786 = vmatpush1.xpose.msra.mxu0 0.0
    %1787 = vmatprep.subr.mxu0 0.0
    %1788 = vmatpush1.xpose.msra.mxu0 0.0
    %1789 = vmatprep.subr.mxu0 0.0
    %1790 = vmatpush1.xpose.msra.mxu0 0.0
    %1791 = vmatprep.subr.mxu0 0.0
    %1792 = vmatpush1.xpose.msra.mxu0 0.0
    %1793 = vmatprep.subr.mxu0 0.0
    %1794 = vmatpush1.xpose.msra.mxu0 0.0
    %1795 = vmatprep.subr.mxu0 0.0
    %1796 = vmatpush1.xpose.msra.mxu0 0.0
    %1797 = vmatprep.subr.mxu0 0.0
    %1798 = vmatpush1.xpose.msra.mxu0 0.0
    %1799 = vmatprep.subr.mxu0 0.0
    %1800 = vmatpush1.xpose.msra.mxu0 0.0
    %1801 = vmatprep.subr.mxu0 0.0
    %1802 = vmatpush1.xpose.msra.mxu0 0.0
    %1803 = vmatprep.subr.mxu0 0.0
    %1804 = vmatpush1.xpose.msra.mxu0 0.0
    %1805 = vmatprep.subr.mxu0 0.0
    %1806 = vmatpush1.xpose.msra.mxu0 0.0
    %1807 = vmatprep.subr.mxu0 0.0
    %1808 = vmatpush1.xpose.msra.mxu0 0.0
    %1809 = vmatprep.subr.mxu0 0.0
    %1810 = vmatpush1.xpose.msra.mxu0 0.0
    %1811 = vmatprep.subr.mxu0 0.0
    %1812 = vmatpush1.xpose.msra.mxu0 0.0
    %1813 = vmatprep.subr.mxu0 0.0
    %1814 = vmatpush1.xpose.msra.mxu0 0.0
    %1815 = vmatprep.subr.mxu0 0.0
    %1816 = vmatpush1.xpose.msra.mxu0 0.0
    %1817 = vmatprep.subr.mxu0 0.0
    %1818 = vmatpush1.xpose.msra.mxu0 0.0
    %1819 = vmatprep.subr.mxu0 0.0
    %1820 = vmatpush1.xpose.msra.mxu0 0.0
    %1821 = vmatprep.subr.mxu0 0.0
    %1822 = vmatpush1.xpose.msra.mxu0 0.0
    %1823 = vmatprep.subr.mxu0 0.0
    %1824 = vmatpush1.xpose.msra.mxu0 0.0
    %1825 = vmatprep.mubr.f32.mxu0 0.0
    %1826 = vmatmul.mubr.f32.gmra.mrb[0].mxu0 %v1750
    %v1827 = vpop.f32.mrb[0].mxu0
    %v1828 = vadd.f32 %v32, %v1827
    %v1829 = vpop.f32.mrb[0].mxu0
    %1830 = vmatprep.mubr.f32.mxu0 0.0
    %1831 = vmatmul.mubr.f32.gmra.mrb[0].mxu0 %v1753
    %v1832 = vpop.f32.mrb[0].mxu0
    %v1833 = vadd.f32 %v33, %v1832
    %v1834 = vpop.f32.mrb[0].mxu0
    %1835 = vdwg.mxu0
    %v1836 = vsel %vm409, %v1828, -inf
    %1837 = vmax.xlane.f32.xlu0 %v1836
    %v1838 = vpop.xlane.xlu0 %1837
    %v1839 = vsel %vm409, %v1833, -inf
    %1840 = vmax.xlane.f32.xlu0 %v1839
    %v1841 = vpop.xlane.xlu0 %1840
    %v1842 = vsub.f32 %v1828, %v1838
    %v1843 = vsub.f32 %v1833, %v1841
    %v1844 = vmul.f32 %v1842, 1.442695
    %v1845 = vpow.pop %v1844
    %v1846 = vmul.f32 %v1843, 1.442695
    %v1847 = vpow.pop %v1846
    %v1848 = vsel %vm409, %v1845, 0.0
    %1849 = vadd.xlane.f32.xlu0 %v1848
    %v1850 = vpop.xlane.xlu0 %1849
    %v1851 = vsel %vm409, %v1847, 0.0
    %1852 = vadd.xlane.f32.xlu0 %v1851
    %v1853 = vpop.xlane.xlu0 %1852
    %v1854 = vrcp.pop %v1850
    %v1855 = vrcp.pop %v1853
    %v1856 = vmul.f32 %v1845, %v1854
    %v1857 = vmul.f32 %v1847, %v1855
    %v1859 = vsel %vm409, %v1856, 0
    %v1862 = vsel %vm409, %v1857, 0
    %1864 = vmatprep.subr.mxu0 0.0
    %1865 = vmatpush1.msra.mxu0 %v1741
    %1866 = vmatprep.subr.mxu0 0.0
    %1867 = vmatpush1.msra.mxu0 %v1746
    %1868 = vmatprep.subr.mxu0 0.0
    %1869 = vmatpush1.msra.mxu0 0.0
    %1870 = vmatprep.subr.mxu0 0.0
    %1871 = vmatpush1.msra.mxu0 0.0
    %1872 = vmatprep.subr.mxu0 0.0
    %1873 = vmatpush1.msra.mxu0 0.0
    %1874 = vmatprep.subr.mxu0 0.0
    %1875 = vmatpush1.msra.mxu0 0.0
    %1876 = vmatprep.subr.mxu0 0.0
    %1877 = vmatpush1.msra.mxu0 0.0
    %1878 = vmatprep.subr.mxu0 0.0
    %1879 = vmatpush1.msra.mxu0 0.0
    %1880 = vmatprep.subr.mxu0 0.0
    %1881 = vmatpush1.msra.mxu0 0.0
    %1882 = vmatprep.subr.mxu0 0.0
    %1883 = vmatpush1.msra.mxu0 0.0
    %1884 = vmatprep.subr.mxu0 0.0
    %1885 = vmatpush1.msra.mxu0 0.0
    %1886 = vmatprep.subr.mxu0 0.0
    %1887 = vmatpush1.msra.mxu0 0.0
    %1888 = vmatprep.subr.mxu0 0.0
    %1889 = vmatpush1.msra.mxu0 0.0
    %1890 = vmatprep.subr.mxu0 0.0
    %1891 = vmatpush1.msra.mxu0 0.0
    %1892 = vmatprep.subr.mxu0 0.0
    %1893 = vmatpush1.msra.mxu0 0.0
    %1894 = vmatprep.subr.mxu0 0.0
    %1895 = vmatpush1.msra.mxu0 0.0
    %1896 = vmatprep.subr.mxu0 0.0
    %1897 = vmatpush1.msra.mxu0 0.0
    %1898 = vmatprep.subr.mxu0 0.0
    %1899 = vmatpush1.msra.mxu0 0.0
    %1900 = vmatprep.subr.mxu0 0.0
    %1901 = vmatpush1.msra.mxu0 0.0
    %1902 = vmatprep.subr.mxu0 0.0
    %1903 = vmatpush1.msra.mxu0 0.0
    %1904 = vmatprep.subr.mxu0 0.0
    %1905 = vmatpush1.msra.mxu0 0.0
    %1906 = vmatprep.subr.mxu0 0.0
    %1907 = vmatpush1.msra.mxu0 0.0
    %1908 = vmatprep.subr.mxu0 0.0
    %1909 = vmatpush1.msra.mxu0 0.0
    %1910 = vmatprep.subr.mxu0 0.0
    %1911 = vmatpush1.msra.mxu0 0.0
    %1912 = vmatprep.subr.mxu0 0.0
    %1913 = vmatpush1.msra.mxu0 0.0
    %1914 = vmatprep.subr.mxu0 0.0
    %1915 = vmatpush1.msra.mxu0 0.0
    %1916 = vmatprep.subr.mxu0 0.0
    %1917 = vmatpush1.msra.mxu0 0.0
    %1918 = vmatprep.subr.mxu0 0.0
    %1919 = vmatpush1.msra.mxu0 0.0
    %1920 = vmatprep.subr.mxu0 0.0
    %1921 = vmatpush1.msra.mxu0 0.0
    %1922 = vmatprep.subr.mxu0 0.0
    %1923 = vmatpush1.msra.mxu0 0.0
    %1924 = vmatprep.subr.mxu0 0.0
    %1925 = vmatpush1.msra.mxu0 0.0
    %1926 = vmatprep.subr.mxu0 0.0
    %1927 = vmatpush1.msra.mxu0 0.0
    %1928 = vmatprep.mubr.f32.mxu0 0.0
    %1929 = vmatmul.mubr.f32.gmra.mrb[0].mxu0 %v1859
    %v1930 = vpop.f32.mrb[0].mxu0
    %v1931 = vadd.f32 0.0, %v1930
    %v1932 = vpop.f32.mrb[0].mxu0
    %1933 = vmatprep.mubr.f32.mxu0 0.0
    %1934 = vmatmul.mubr.f32.gmra.mrb[0].mxu0 %v1862
    %v1935 = vpop.f32.mrb[0].mxu0
    %v1936 = vadd.f32 0.0, %v1935
    %v1937 = vpop.f32.mrb[0].mxu0
    %1938 = vdwg.mxu0
    %1939 = vrot.lane.b32.xlu0 %v1581, 120
    %v1940 = vpop.permute.xlu0 %1939
    %1941 = vrot.lane.b32.xlu0 %v1586, 120
    %v1942 = vpop.permute.xlu0 %1941
    %1943 = vrot.lane.b32.xlu0 %v1661, 120
    %v1944 = vpop.permute.xlu0 %1943
    %1945 = vrot.lane.b32.xlu0 %v1666, 120
    %v1946 = vpop.permute.xlu0 %1945
    %v1947 = vsel %vm321, %v1940, 0
    %v1949 = vsel %vm321, %v1942, 0
    %v1951 = vsel %vm321, %v1944, 0
    %v1953 = vsel %vm321, %v1946, 0
    %1955 = vmatprep.subr.mxu0 0.0
    %1956 = vmatpush1.xpose.msra.mxu0 %v1951
    %1957 = vmatprep.subr.mxu0 0.0
    %1958 = vmatpush1.xpose.msra.mxu0 %v1953
    %1959 = vmatprep.subr.mxu0 0.0
    %1960 = vmatpush1.xpose.msra.mxu0 0.0
    %1961 = vmatprep.subr.mxu0 0.0
    %1962 = vmatpush1.xpose.msra.mxu0 0.0
    %1963 = vmatprep.subr.mxu0 0.0
    %1964 = vmatpush1.xpose.msra.mxu0 0.0
    %1965 = vmatprep.subr.mxu0 0.0
    %1966 = vmatpush1.xpose.msra.mxu0 0.0
    %1967 = vmatprep.subr.mxu0 0.0
    %1968 = vmatpush1.xpose.msra.mxu0 0.0
    %1969 = vmatprep.subr.mxu0 0.0
    %1970 = vmatpush1.xpose.msra.mxu0 0.0
    %1971 = vmatprep.subr.mxu0 0.0
    %1972 = vmatpush1.xpose.msra.mxu0 0.0
    %1973 = vmatprep.subr.mxu0 0.0
    %1974 = vmatpush1.xpose.msra.mxu0 0.0
    %1975 = vmatprep.subr.mxu0 0.0
    %1976 = vmatpush1.xpose.msra.mxu0 0.0
    %1977 = vmatprep.subr.mxu0 0.0
    %1978 = vmatpush1.xpose.msra.mxu0 0.0
    %1979 = vmatprep.subr.mxu0 0.0
    %1980 = vmatpush1.xpose.msra.mxu0 0.0
    %1981 = vmatprep.subr.mxu0 0.0
    %1982 = vmatpush1.xpose.msra.mxu0 0.0
    %1983 = vmatprep.subr.mxu0 0.0
    %1984 = vmatpush1.xpose.msra.mxu0 0.0
    %1985 = vmatprep.subr.mxu0 0.0
    %1986 = vmatpush1.xpose.msra.mxu0 0.0
    %1987 = vmatprep.subr.mxu0 0.0
    %1988 = vmatpush1.xpose.msra.mxu0 0.0
    %1989 = vmatprep.subr.mxu0 0.0
    %1990 = vmatpush1.xpose.msra.mxu0 0.0
    %1991 = vmatprep.subr.mxu0 0.0
    %1992 = vmatpush1.xpose.msra.mxu0 0.0
    %1993 = vmatprep.subr.mxu0 0.0
    %1994 = vmatpush1.xpose.msra.mxu0 0.0
    %1995 = vmatprep.subr.mxu0 0.0
    %1996 = vmatpush1.xpose.msra.mxu0 0.0
    %1997 = vmatprep.subr.mxu0 0.0
    %1998 = vmatpush1.xpose.msra.mxu0 0.0
    %1999 = vmatprep.subr.mxu0 0.0
    %2000 = vmatpush1.xpose.msra.mxu0 0.0
    %2001 = vmatprep.subr.mxu0 0.0
    %2002 = vmatpush1.xpose.msra.mxu0 0.0
    %2003 = vmatprep.subr.mxu0 0.0
    %2004 = vmatpush1.xpose.msra.mxu0 0.0
    %2005 = vmatprep.subr.mxu0 0.0
    %2006 = vmatpush1.xpose.msra.mxu0 0.0
    %2007 = vmatprep.subr.mxu0 0.0
    %2008 = vmatpush1.xpose.msra.mxu0 0.0
    %2009 = vmatprep.subr.mxu0 0.0
    %2010 = vmatpush1.xpose.msra.mxu0 0.0
    %2011 = vmatprep.subr.mxu0 0.0
    %2012 = vmatpush1.xpose.msra.mxu0 0.0
    %2013 = vmatprep.subr.mxu0 0.0
    %2014 = vmatpush1.xpose.msra.mxu0 0.0
    %2015 = vmatprep.subr.mxu0 0.0
    %2016 = vmatpush1.xpose.msra.mxu0 0.0
    %2017 = vmatprep.subr.mxu0 0.0
    %2018 = vmatpush1.xpose.msra.mxu0 0.0
    %2019 = vmatprep.mubr.f32.mxu0 0.0
    %2020 = vmatmul.mubr.f32.gmra.mrb[0].mxu0 %v1947
    %v2021 = vpop.f32.mrb[0].mxu0
    %v2022 = vadd.f32 %v32, %v2021
    %v2023 = vpop.f32.mrb[0].mxu0
    %2024 = vmatprep.mubr.f32.mxu0 0.0
    %2025 = vmatmul.mubr.f32.gmra.mrb[0].mxu0 %v1949
    %v2026 = vpop.f32.mrb[0].mxu0
    %v2027 = vadd.f32 %v33, %v2026
    %v2028 = vpop.f32.mrb[0].mxu0
    %2029 = vdwg.mxu0
    %v2030 = vsel %vm409, %v2022, -inf
    %2031 = vmax.xlane.f32.xlu0 %v2030
    %v2032 = vpop.xlane.xlu0 %2031
    %v2033 = vsel %vm409, %v2027, -inf
    %2034 = vmax.xlane.f32.xlu0 %v2033
    %v2035 = vpop.xlane.xlu0 %2034
    %v2036 = vsub.f32 %v2022, %v2032
    %v2037 = vsub.f32 %v2027, %v2035
    %v2038 = vmul.f32 %v2036, 1.442695
    %v2039 = vpow.pop %v2038
    %v2040 = vmul.f32 %v2037, 1.442695
    %v2041 = vpow.pop %v2040
    %v2042 = vsel %vm409, %v2039, 0.0
    %2043 = vadd.xlane.f32.xlu0 %v2042
    %v2044 = vpop.xlane.xlu0 %2043
    %v2045 = vsel %vm409, %v2041, 0.0
    %2046 = vadd.xlane.f32.xlu0 %v2045
    %v2047 = vpop.xlane.xlu0 %2046
    %v2048 = vrcp.pop %v2044
    %v2049 = vrcp.pop %v2047
    %v2050 = vmul.f32 %v2039, %v2048
    %v2051 = vmul.f32 %v2041, %v2049
    %2054 = vrot.lane.b32.xlu0 %v1741, 120
    %v2055 = vpop.permute.xlu0 %2054
    %2056 = vrot.lane.b32.xlu0 %v1746, 120
    %v2057 = vpop.permute.xlu0 %2056
    %v2061 = vsel %vm409, %v2050, 0
    %v2064 = vsel %vm409, %v2051, 0
    %2066 = vmatprep.subr.mxu0 0.0
    %2067 = vmatpush1.msra.mxu0 %v2055
    %2068 = vmatprep.subr.mxu0 0.0
    %2069 = vmatpush1.msra.mxu0 %v2057
    %2070 = vmatprep.subr.mxu0 0.0
    %2071 = vmatpush1.msra.mxu0 0.0
    %2072 = vmatprep.subr.mxu0 0.0
    %2073 = vmatpush1.msra.mxu0 0.0
    %2074 = vmatprep.subr.mxu0 0.0
    %2075 = vmatpush1.msra.mxu0 0.0
    %2076 = vmatprep.subr.mxu0 0.0
    %2077 = vmatpush1.msra.mxu0 0.0
    %2078 = vmatprep.subr.mxu0 0.0
    %2079 = vmatpush1.msra.mxu0 0.0
    %2080 = vmatprep.subr.mxu0 0.0
    %2081 = vmatpush1.msra.mxu0 0.0
    %2082 = vmatprep.subr.mxu0 0.0
    %2083 = vmatpush1.msra.mxu0 0.0
    %2084 = vmatprep.subr.mxu0 0.0
    %2085 = vmatpush1.msra.mxu0 0.0
    %2086 = vmatprep.subr.mxu0 0.0
    %2087 = vmatpush1.msra.mxu0 0.0
    %2088 = vmatprep.subr.mxu0 0.0
    %2089 = vmatpush1.msra.mxu0 0.0
    %2090 = vmatprep.subr.mxu0 0.0
    %2091 = vmatpush1.msra.mxu0 0.0
    %2092 = vmatprep.subr.mxu0 0.0
    %2093 = vmatpush1.msra.mxu0 0.0
    %2094 = vmatprep.subr.mxu0 0.0
    %2095 = vmatpush1.msra.mxu0 0.0
    %2096 = vmatprep.subr.mxu0 0.0
    %2097 = vmatpush1.msra.mxu0 0.0
    %2098 = vmatprep.subr.mxu0 0.0
    %2099 = vmatpush1.msra.mxu0 0.0
    %2100 = vmatprep.subr.mxu0 0.0
    %2101 = vmatpush1.msra.mxu0 0.0
    %2102 = vmatprep.subr.mxu0 0.0
    %2103 = vmatpush1.msra.mxu0 0.0
    %2104 = vmatprep.subr.mxu0 0.0
    %2105 = vmatpush1.msra.mxu0 0.0
    %2106 = vmatprep.subr.mxu0 0.0
    %2107 = vmatpush1.msra.mxu0 0.0
    %2108 = vmatprep.subr.mxu0 0.0
    %2109 = vmatpush1.msra.mxu0 0.0
    %2110 = vmatprep.subr.mxu0 0.0
    %2111 = vmatpush1.msra.mxu0 0.0
    %2112 = vmatprep.subr.mxu0 0.0
    %2113 = vmatpush1.msra.mxu0 0.0
    %2114 = vmatprep.subr.mxu0 0.0
    %2115 = vmatpush1.msra.mxu0 0.0
    %2116 = vmatprep.subr.mxu0 0.0
    %2117 = vmatpush1.msra.mxu0 0.0
    %2118 = vmatprep.subr.mxu0 0.0
    %2119 = vmatpush1.msra.mxu0 0.0
    %2120 = vmatprep.subr.mxu0 0.0
    %2121 = vmatpush1.msra.mxu0 0.0
    %2122 = vmatprep.subr.mxu0 0.0
    %2123 = vmatpush1.msra.mxu0 0.0
    %2124 = vmatprep.subr.mxu0 0.0
    %2125 = vmatpush1.msra.mxu0 0.0
    %2126 = vmatprep.subr.mxu0 0.0
    %2127 = vmatpush1.msra.mxu0 0.0
    %2128 = vmatprep.subr.mxu0 0.0
    %2129 = vmatpush1.msra.mxu0 0.0
    %2130 = vmatprep.mubr.f32.mxu0 0.0
    %2131 = vmatmul.mubr.f32.gmra.mrb[0].mxu0 %v2061
    %v2132 = vpop.f32.mrb[0].mxu0
    %v2133 = vadd.f32 0.0, %v2132
    %v2134 = vpop.f32.mrb[0].mxu0
    %2135 = vmatprep.mubr.f32.mxu0 0.0
    %2136 = vmatmul.mubr.f32.gmra.mrb[0].mxu0 %v2064
    %v2137 = vpop.f32.mrb[0].mxu0
    %v2138 = vadd.f32 0.0, %v2137
    %v2139 = vpop.f32.mrb[0].mxu0
    %2140 = vdwg.mxu0
    %2141 = vrot.lane.b32.xlu0 %v1581, 112
    %v2142 = vpop.permute.xlu0 %2141
    %2143 = vrot.lane.b32.xlu0 %v1586, 112
    %v2144 = vpop.permute.xlu0 %2143
    %2145 = vrot.lane.b32.xlu0 %v1661, 112
    %v2146 = vpop.permute.xlu0 %2145
    %2147 = vrot.lane.b32.xlu0 %v1666, 112
    %v2148 = vpop.permute.xlu0 %2147
    %v2149 = vsel %vm321, %v2142, 0
    %v2151 = vsel %vm321, %v2144, 0
    %v2153 = vsel %vm321, %v2146, 0
    %v2155 = vsel %vm321, %v2148, 0
    %2157 = vmatprep.subr.mxu0 0.0
    %2158 = vmatpush1.xpose.msra.mxu0 %v2153
    %2159 = vmatprep.subr.mxu0 0.0
    %2160 = vmatpush1.xpose.msra.mxu0 %v2155
    %2161 = vmatprep.subr.mxu0 0.0
    %2162 = vmatpush1.xpose.msra.mxu0 0.0
    %2163 = vmatprep.subr.mxu0 0.0
    %2164 = vmatpush1.xpose.msra.mxu0 0.0
    %2165 = vmatprep.subr.mxu0 0.0
    %2166 = vmatpush1.xpose.msra.mxu0 0.0
    %2167 = vmatprep.subr.mxu0 0.0
    %2168 = vmatpush1.xpose.msra.mxu0 0.0
    %2169 = vmatprep.subr.mxu0 0.0
    %2170 = vmatpush1.xpose.msra.mxu0 0.0
    %2171 = vmatprep.subr.mxu0 0.0
    %2172 = vmatpush1.xpose.msra.mxu0 0.0
    %2173 = vmatprep.subr.mxu0 0.0
    %2174 = vmatpush1.xpose.msra.mxu0 0.0
    %2175 = vmatprep.subr.mxu0 0.0
    %2176 = vmatpush1.xpose.msra.mxu0 0.0
    %2177 = vmatprep.subr.mxu0 0.0
    %2178 = vmatpush1.xpose.msra.mxu0 0.0
    %2179 = vmatprep.subr.mxu0 0.0
    %2180 = vmatpush1.xpose.msra.mxu0 0.0
    %2181 = vmatprep.subr.mxu0 0.0
    %2182 = vmatpush1.xpose.msra.mxu0 0.0
    %2183 = vmatprep.subr.mxu0 0.0
    %2184 = vmatpush1.xpose.msra.mxu0 0.0
    %2185 = vmatprep.subr.mxu0 0.0
    %2186 = vmatpush1.xpose.msra.mxu0 0.0
    %2187 = vmatprep.subr.mxu0 0.0
    %2188 = vmatpush1.xpose.msra.mxu0 0.0
    %2189 = vmatprep.subr.mxu0 0.0
    %2190 = vmatpush1.xpose.msra.mxu0 0.0
    %2191 = vmatprep.subr.mxu0 0.0
    %2192 = vmatpush1.xpose.msra.mxu0 0.0
    %2193 = vmatprep.subr.mxu0 0.0
    %2194 = vmatpush1.xpose.msra.mxu0 0.0
    %2195 = vmatprep.subr.mxu0 0.0
    %2196 = vmatpush1.xpose.msra.mxu0 0.0
    %2197 = vmatprep.subr.mxu0 0.0
    %2198 = vmatpush1.xpose.msra.mxu0 0.0
    %2199 = vmatprep.subr.mxu0 0.0
    %2200 = vmatpush1.xpose.msra.mxu0 0.0
    %2201 = vmatprep.subr.mxu0 0.0
    %2202 = vmatpush1.xpose.msra.mxu0 0.0
    %2203 = vmatprep.subr.mxu0 0.0
    %2204 = vmatpush1.xpose.msra.mxu0 0.0
    %2205 = vmatprep.subr.mxu0 0.0
    %2206 = vmatpush1.xpose.msra.mxu0 0.0
    %2207 = vmatprep.subr.mxu0 0.0
    %2208 = vmatpush1.xpose.msra.mxu0 0.0
    %2209 = vmatprep.subr.mxu0 0.0
    %2210 = vmatpush1.xpose.msra.mxu0 0.0
    %2211 = vmatprep.subr.mxu0 0.0
    %2212 = vmatpush1.xpose.msra.mxu0 0.0
    %2213 = vmatprep.subr.mxu0 0.0
    %2214 = vmatpush1.xpose.msra.mxu0 0.0
    %2215 = vmatprep.subr.mxu0 0.0
    %2216 = vmatpush1.xpose.msra.mxu0 0.0
    %2217 = vmatprep.subr.mxu0 0.0
    %2218 = vmatpush1.xpose.msra.mxu0 0.0
    %2219 = vmatprep.subr.mxu0 0.0
    %2220 = vmatpush1.xpose.msra.mxu0 0.0
    %2221 = vmatprep.mubr.f32.mxu0 0.0
    %2222 = vmatmul.mubr.f32.gmra.mrb[0].mxu0 %v2149
    %v2223 = vpop.f32.mrb[0].mxu0
    %v2224 = vadd.f32 %v32, %v2223
    %v2225 = vpop.f32.mrb[0].mxu0
    %2226 = vmatprep.mubr.f32.mxu0 0.0
    %2227 = vmatmul.mubr.f32.gmra.mrb[0].mxu0 %v2151
    %v2228 = vpop.f32.mrb[0].mxu0
    %v2229 = vadd.f32 %v33, %v2228
    %v2230 = vpop.f32.mrb[0].mxu0
    %2231 = vdwg.mxu0
    %v2232 = vsel %vm409, %v2224, -inf
    %2233 = vmax.xlane.f32.xlu0 %v2232
    %v2234 = vpop.xlane.xlu0 %2233
    %v2235 = vsel %vm409, %v2229, -inf
    %2236 = vmax.xlane.f32.xlu0 %v2235
    %v2237 = vpop.xlane.xlu0 %2236
    %v2238 = vsub.f32 %v2224, %v2234
    %v2239 = vsub.f32 %v2229, %v2237
    %v2240 = vmul.f32 %v2238, 1.442695
    %v2241 = vpow.pop %v2240
    %v2242 = vmul.f32 %v2239, 1.442695
    %v2243 = vpow.pop %v2242
    %v2244 = vsel %vm409, %v2241, 0.0
    %2245 = vadd.xlane.f32.xlu0 %v2244
    %v2246 = vpop.xlane.xlu0 %2245
    %v2247 = vsel %vm409, %v2243, 0.0
    %2248 = vadd.xlane.f32.xlu0 %v2247
    %v2249 = vpop.xlane.xlu0 %2248
    %v2250 = vrcp.pop %v2246
    %v2251 = vrcp.pop %v2249
    %v2252 = vmul.f32 %v2241, %v2250
    %v2253 = vmul.f32 %v2243, %v2251
    %2254 = vrot.lane.b32.xlu0 %v1741, 112
    %v2255 = vpop.permute.xlu0 %2254
    %2256 = vrot.lane.b32.xlu0 %v1746, 112
    %v2257 = vpop.permute.xlu0 %2256
    %v2261 = vsel %vm409, %v2252, 0
    %v2264 = vsel %vm409, %v2253, 0
    %2266 = vmatprep.subr.mxu0 0.0
    %2267 = vmatpush1.msra.mxu0 %v2255
    %2268 = vmatprep.subr.mxu0 0.0
    %2269 = vmatpush1.msra.mxu0 %v2257
    %2270 = vmatprep.subr.mxu0 0.0
    %2271 = vmatpush1.msra.mxu0 0.0
    %2272 = vmatprep.subr.mxu0 0.0
    %2273 = vmatpush1.msra.mxu0 0.0
    %2274 = vmatprep.subr.mxu0 0.0
    %2275 = vmatpush1.msra.mxu0 0.0
    %2276 = vmatprep.subr.mxu0 0.0
    %2277 = vmatpush1.msra.mxu0 0.0
    %2278 = vmatprep.subr.mxu0 0.0
    %2279 = vmatpush1.msra.mxu0 0.0
    %2280 = vmatprep.subr.mxu0 0.0
    %2281 = vmatpush1.msra.mxu0 0.0
    %2282 = vmatprep.subr.mxu0 0.0
    %2283 = vmatpush1.msra.mxu0 0.0
    %2284 = vmatprep.subr.mxu0 0.0
    %2285 = vmatpush1.msra.mxu0 0.0
    %2286 = vmatprep.subr.mxu0 0.0
    %2287 = vmatpush1.msra.mxu0 0.0
    %2288 = vmatprep.subr.mxu0 0.0
    %2289 = vmatpush1.msra.mxu0 0.0
    %2290 = vmatprep.subr.mxu0 0.0
    %2291 = vmatpush1.msra.mxu0 0.0
    %2292 = vmatprep.subr.mxu0 0.0
    %2293 = vmatpush1.msra.mxu0 0.0
    %2294 = vmatprep.subr.mxu0 0.0
    %2295 = vmatpush1.msra.mxu0 0.0
    %2296 = vmatprep.subr.mxu0 0.0
    %2297 = vmatpush1.msra.mxu0 0.0
    %2298 = vmatprep.subr.mxu0 0.0
    %2299 = vmatpush1.msra.mxu0 0.0
    %2300 = vmatprep.subr.mxu0 0.0
    %2301 = vmatpush1.msra.mxu0 0.0
    %2302 = vmatprep.subr.mxu0 0.0
    %2303 = vmatpush1.msra.mxu0 0.0
    %2304 = vmatprep.subr.mxu0 0.0
    %2305 = vmatpush1.msra.mxu0 0.0
    %2306 = vmatprep.subr.mxu0 0.0
    %2307 = vmatpush1.msra.mxu0 0.0
    %2308 = vmatprep.subr.mxu0 0.0
    %2309 = vmatpush1.msra.mxu0 0.0
    %2310 = vmatprep.subr.mxu0 0.0
    %2311 = vmatpush1.msra.mxu0 0.0
    %2312 = vmatprep.subr.mxu0 0.0
    %2313 = vmatpush1.msra.mxu0 0.0
    %2314 = vmatprep.subr.mxu0 0.0
    %2315 = vmatpush1.msra.mxu0 0.0
    %2316 = vmatprep.subr.mxu0 0.0
    %2317 = vmatpush1.msra.mxu0 0.0
    %2318 = vmatprep.subr.mxu0 0.0
    %2319 = vmatpush1.msra.mxu0 0.0
    %2320 = vmatprep.subr.mxu0 0.0
    %2321 = vmatpush1.msra.mxu0 0.0
    %2322 = vmatprep.subr.mxu0 0.0
    %2323 = vmatpush1.msra.mxu0 0.0
    %2324 = vmatprep.subr.mxu0 0.0
    %2325 = vmatpush1.msra.mxu0 0.0
    %2326 = vmatprep.subr.mxu0 0.0
    %2327 = vmatpush1.msra.mxu0 0.0
    %2328 = vmatprep.subr.mxu0 0.0
    %2329 = vmatpush1.msra.mxu0 0.0
    %2330 = vmatprep.mubr.f32.mxu0 0.0
    %2331 = vmatmul.mubr.f32.gmra.mrb[0].mxu0 %v2261
    %v2332 = vpop.f32.mrb[0].mxu0
    %v2333 = vadd.f32 0.0, %v2332
    %v2334 = vpop.f32.mrb[0].mxu0
    %2335 = vmatprep.mubr.f32.mxu0 0.0
    %2336 = vmatmul.mubr.f32.gmra.mrb[0].mxu0 %v2264
    %v2337 = vpop.f32.mrb[0].mxu0
    %v2338 = vadd.f32 0.0, %v2337
    %v2339 = vpop.f32.mrb[0].mxu0
    %2340 = vdwg.mxu0
    %2341 = vrot.lane.b32.xlu0 %v1581, 104
    %v2342 = vpop.permute.xlu0 %2341
    %2343 = vrot.lane.b32.xlu0 %v1586, 104
    %v2344 = vpop.permute.xlu0 %2343
    %2345 = vrot.lane.b32.xlu0 %v1661, 104
    %v2346 = vpop.permute.xlu0 %2345
    %2347 = vrot.lane.b32.xlu0 %v1666, 104
    %v2348 = vpop.permute.xlu0 %2347
    %v2349 = vsel %vm321, %v2342, 0
    %v2351 = vsel %vm321, %v2344, 0
    %v2353 = vsel %vm321, %v2346, 0
    %v2355 = vsel %vm321, %v2348, 0
    %2357 = vmatprep.subr.mxu0 0.0
    %2358 = vmatpush1.xpose.msra.mxu0 %v2353
    %2359 = vmatprep.subr.mxu0 0.0
    %2360 = vmatpush1.xpose.msra.mxu0 %v2355
    %2361 = vmatprep.subr.mxu0 0.0
    %2362 = vmatpush1.xpose.msra.mxu0 0.0
    %2363 = vmatprep.subr.mxu0 0.0
    %2364 = vmatpush1.xpose.msra.mxu0 0.0
    %2365 = vmatprep.subr.mxu0 0.0
    %2366 = vmatpush1.xpose.msra.mxu0 0.0
    %2367 = vmatprep.subr.mxu0 0.0
    %2368 = vmatpush1.xpose.msra.mxu0 0.0
    %2369 = vmatprep.subr.mxu0 0.0
    %2370 = vmatpush1.xpose.msra.mxu0 0.0
    %2371 = vmatprep.subr.mxu0 0.0
    %2372 = vmatpush1.xpose.msra.mxu0 0.0
    %2373 = vmatprep.subr.mxu0 0.0
    %2374 = vmatpush1.xpose.msra.mxu0 0.0
    %2375 = vmatprep.subr.mxu0 0.0
    %2376 = vmatpush1.xpose.msra.mxu0 0.0
    %2377 = vmatprep.subr.mxu0 0.0
    %2378 = vmatpush1.xpose.msra.mxu0 0.0
    %2379 = vmatprep.subr.mxu0 0.0
    %2380 = vmatpush1.xpose.msra.mxu0 0.0
    %2381 = vmatprep.subr.mxu0 0.0
    %2382 = vmatpush1.xpose.msra.mxu0 0.0
    %2383 = vmatprep.subr.mxu0 0.0
    %2384 = vmatpush1.xpose.msra.mxu0 0.0
    %2385 = vmatprep.subr.mxu0 0.0
    %2386 = vmatpush1.xpose.msra.mxu0 0.0
    %2387 = vmatprep.subr.mxu0 0.0
    %2388 = vmatpush1.xpose.msra.mxu0 0.0
    %2389 = vmatprep.subr.mxu0 0.0
    %2390 = vmatpush1.xpose.msra.mxu0 0.0
    %2391 = vmatprep.subr.mxu0 0.0
    %2392 = vmatpush1.xpose.msra.mxu0 0.0
    %2393 = vmatprep.subr.mxu0 0.0
    %2394 = vmatpush1.xpose.msra.mxu0 0.0
    %2395 = vmatprep.subr.mxu0 0.0
    %2396 = vmatpush1.xpose.msra.mxu0 0.0
    %2397 = vmatprep.subr.mxu0 0.0
    %2398 = vmatpush1.xpose.msra.mxu0 0.0
    %2399 = vmatprep.subr.mxu0 0.0
    %2400 = vmatpush1.xpose.msra.mxu0 0.0
    %2401 = vmatprep.subr.mxu0 0.0
    %2402 = vmatpush1.xpose.msra.mxu0 0.0
    %2403 = vmatprep.subr.mxu0 0.0
    %2404 = vmatpush1.xpose.msra.mxu0 0.0
    %2405 = vmatprep.subr.mxu0 0.0
    %2406 = vmatpush1.xpose.msra.mxu0 0.0
    %2407 = vmatprep.subr.mxu0 0.0
    %2408 = vmatpush1.xpose.msra.mxu0 0.0
    %2409 = vmatprep.subr.mxu0 0.0
    %2410 = vmatpush1.xpose.msra.mxu0 0.0
    %2411 = vmatprep.subr.mxu0 0.0
    %2412 = vmatpush1.xpose.msra.mxu0 0.0
    %2413 = vmatprep.subr.mxu0 0.0
    %2414 = vmatpush1.xpose.msra.mxu0 0.0
    %2415 = vmatprep.subr.mxu0 0.0
    %2416 = vmatpush1.xpose.msra.mxu0 0.0
    %2417 = vmatprep.subr.mxu0 0.0
    %2418 = vmatpush1.xpose.msra.mxu0 0.0
    %2419 = vmatprep.subr.mxu0 0.0
    %2420 = vmatpush1.xpose.msra.mxu0 0.0
    %2421 = vmatprep.mubr.f32.mxu0 0.0
    %2422 = vmatmul.mubr.f32.gmra.mrb[0].mxu0 %v2349
    %v2423 = vpop.f32.mrb[0].mxu0
    %v2424 = vadd.f32 %v32, %v2423
    %v2425 = vpop.f32.mrb[0].mxu0
    %2426 = vmatprep.mubr.f32.mxu0 0.0
    %2427 = vmatmul.mubr.f32.gmra.mrb[0].mxu0 %v2351
    %v2428 = vpop.f32.mrb[0].mxu0
    %v2429 = vadd.f32 %v33, %v2428
    %v2430 = vpop.f32.mrb[0].mxu0
    %2431 = vdwg.mxu0
    %v2432 = vsel %vm409, %v2424, -inf
    %2433 = vmax.xlane.f32.xlu0 %v2432
    %v2434 = vpop.xlane.xlu0 %2433
    %v2435 = vsel %vm409, %v2429, -inf
    %2436 = vmax.xlane.f32.xlu0 %v2435
    %v2437 = vpop.xlane.xlu0 %2436
    %v2438 = vsub.f32 %v2424, %v2434
    %v2439 = vsub.f32 %v2429, %v2437
    %v2440 = vmul.f32 %v2438, 1.442695
    %v2441 = vpow.pop %v2440
    %v2442 = vmul.f32 %v2439, 1.442695
    %v2443 = vpow.pop %v2442
    %v2444 = vsel %vm409, %v2441, 0.0
    %2445 = vadd.xlane.f32.xlu0 %v2444
    %v2446 = vpop.xlane.xlu0 %2445
    %v2447 = vsel %vm409, %v2443, 0.0
    %2448 = vadd.xlane.f32.xlu0 %v2447
    %v2449 = vpop.xlane.xlu0 %2448
    %v2450 = vrcp.pop %v2446
    %v2451 = vrcp.pop %v2449
    %v2452 = vmul.f32 %v2441, %v2450
    %v2453 = vmul.f32 %v2443, %v2451
    %2454 = vrot.lane.b32.xlu0 %v1741, 104
    %v2455 = vpop.permute.xlu0 %2454
    %2456 = vrot.lane.b32.xlu0 %v1746, 104
    %v2457 = vpop.permute.xlu0 %2456
    %v2461 = vsel %vm409, %v2452, 0
    %v2464 = vsel %vm409, %v2453, 0
    %2466 = vmatprep.subr.mxu0 0.0
    %2467 = vmatpush1.msra.mxu0 %v2455
    %2468 = vmatprep.subr.mxu0 0.0
    %2469 = vmatpush1.msra.mxu0 %v2457
    %2470 = vmatprep.subr.mxu0 0.0
    %2471 = vmatpush1.msra.mxu0 0.0
    %2472 = vmatprep.subr.mxu0 0.0
    %2473 = vmatpush1.msra.mxu0 0.0
    %2474 = vmatprep.subr.mxu0 0.0
    %2475 = vmatpush1.msra.mxu0 0.0
    %2476 = vmatprep.subr.mxu0 0.0
    %2477 = vmatpush1.msra.mxu0 0.0
    %2478 = vmatprep.subr.mxu0 0.0
    %2479 = vmatpush1.msra.mxu0 0.0
    %2480 = vmatprep.subr.mxu0 0.0
    %2481 = vmatpush1.msra.mxu0 0.0
    %2482 = vmatprep.subr.mxu0 0.0
    %2483 = vmatpush1.msra.mxu0 0.0
    %2484 = vmatprep.subr.mxu0 0.0
    %2485 = vmatpush1.msra.mxu0 0.0
    %2486 = vmatprep.subr.mxu0 0.0
    %2487 = vmatpush1.msra.mxu0 0.0
    %2488 = vmatprep.subr.mxu0 0.0
    %2489 = vmatpush1.msra.mxu0 0.0
    %2490 = vmatprep.subr.mxu0 0.0
    %2491 = vmatpush1.msra.mxu0 0.0
    %2492 = vmatprep.subr.mxu0 0.0
    %2493 = vmatpush1.msra.mxu0 0.0
    %2494 = vmatprep.subr.mxu0 0.0
    %2495 = vmatpush1.msra.mxu0 0.0
    %2496 = vmatprep.subr.mxu0 0.0
    %2497 = vmatpush1.msra.mxu0 0.0
    %2498 = vmatprep.subr.mxu0 0.0
    %2499 = vmatpush1.msra.mxu0 0.0
    %2500 = vmatprep.subr.mxu0 0.0
    %2501 = vmatpush1.msra.mxu0 0.0
    %2502 = vmatprep.subr.mxu0 0.0
    %2503 = vmatpush1.msra.mxu0 0.0
    %2504 = vmatprep.subr.mxu0 0.0
    %2505 = vmatpush1.msra.mxu0 0.0
    %2506 = vmatprep.subr.mxu0 0.0
    %2507 = vmatpush1.msra.mxu0 0.0
    %2508 = vmatprep.subr.mxu0 0.0
    %2509 = vmatpush1.msra.mxu0 0.0
    %2510 = vmatprep.subr.mxu0 0.0
    %2511 = vmatpush1.msra.mxu0 0.0
    %2512 = vmatprep.subr.mxu0 0.0
    %2513 = vmatpush1.msra.mxu0 0.0
    %2514 = vmatprep.subr.mxu0 0.0
    %2515 = vmatpush1.msra.mxu0 0.0
    %2516 = vmatprep.subr.mxu0 0.0
    %2517 = vmatpush1.msra.mxu0 0.0
    %2518 = vmatprep.subr.mxu0 0.0
    %2519 = vmatpush1.msra.mxu0 0.0
    %2520 = vmatprep.subr.mxu0 0.0
    %2521 = vmatpush1.msra.mxu0 0.0
    %2522 = vmatprep.subr.mxu0 0.0
    %2523 = vmatpush1.msra.mxu0 0.0
    %2524 = vmatprep.subr.mxu0 0.0
    %2525 = vmatpush1.msra.mxu0 0.0
    %2526 = vmatprep.subr.mxu0 0.0
    %2527 = vmatpush1.msra.mxu0 0.0
    %2528 = vmatprep.subr.mxu0 0.0
    %2529 = vmatpush1.msra.mxu0 0.0
    %2530 = vmatprep.mubr.f32.mxu0 0.0
    %2531 = vmatmul.mubr.f32.gmra.mrb[0].mxu0 %v2461
    %v2532 = vpop.f32.mrb[0].mxu0
    %v2533 = vadd.f32 0.0, %v2532
    %v2534 = vpop.f32.mrb[0].mxu0
    %2535 = vmatprep.mubr.f32.mxu0 0.0
    %2536 = vmatmul.mubr.f32.gmra.mrb[0].mxu0 %v2464
    %v2537 = vpop.f32.mrb[0].mxu0
    %v2538 = vadd.f32 0.0, %v2537
    %v2539 = vpop.f32.mrb[0].mxu0
    %2540 = vdwg.mxu0
    %2543 = vrot.lane.b32.xlu0 %v2133, 8
    %v2544 = vpop.permute.xlu0 %2543
    %2545 = vrot.lane.b32.xlu0 %v2138, 8
    %v2546 = vpop.permute.xlu0 %2545
    %2551 = vrot.lane.b32.xlu0 %v2333, 16
    %v2552 = vpop.permute.xlu0 %2551
    %2553 = vrot.lane.b32.xlu0 %v2338, 16
    %v2554 = vpop.permute.xlu0 %2553
    %2559 = vrot.lane.b32.xlu0 %v2533, 24
    %v2560 = vpop.permute.xlu0 %2559
    %2561 = vrot.lane.b32.xlu0 %v2538, 24
    %v2562 = vpop.permute.xlu0 %2561
    %v2565 = vsel %vm321, %v1931, %v2544
    %v2566 = vsel %vm321, %v1936, %v2546
    %v2567 = vsel %vm409, %v2565, %v2552
    %v2568 = vsel %vm409, %v2566, %v2554
    %v2569 = vsel %vm1143, %v2567, %v2560
    %v2570 = vsel %vm1143, %v2568, %v2562
    %s2571 = scalar_lea.vmem %s3, 224
    %v2572 = vld [vmem:[%s2571] sm:$0xff]
    %v2573 = vld [vmem:[%s2571 + $0x8] sm:$0xff]
    %v2574 = vld [vmem:[%s2571 + $0x10] sm:$0xff]
    %v2575 = vld [vmem:[%s2571 + $0x18] sm:$0xff]
    %v2577 = vsel %vm36, %v2569, 0
    %v2580 = vsel %vm36, %v2570, 0
    %2582 = vmatprep.subr.mxu0 0.0
    %2583 = vmatpush1.msra.mxu0 %v2572
    %2584 = vmatprep.subr.mxu0 0.0
    %2585 = vmatpush1.msra.mxu0 %v2573
    %2586 = vmatprep.subr.mxu0 0.0
    %2587 = vmatpush1.msra.mxu0 %v2574
    %2588 = vmatprep.subr.mxu0 0.0
    %2589 = vmatpush1.msra.mxu0 %v2575
    %2590 = vmatprep.subr.mxu0 0.0
    %2591 = vmatpush1.msra.mxu0 0.0
    %2592 = vmatprep.subr.mxu0 0.0
    %2593 = vmatpush1.msra.mxu0 0.0
    %2594 = vmatprep.subr.mxu0 0.0
    %2595 = vmatpush1.msra.mxu0 0.0
    %2596 = vmatprep.subr.mxu0 0.0
    %2597 = vmatpush1.msra.mxu0 0.0
    %2598 = vmatprep.subr.mxu0 0.0
    %2599 = vmatpush1.msra.mxu0 0.0
    %2600 = vmatprep.subr.mxu0 0.0
    %2601 = vmatpush1.msra.mxu0 0.0
    %2602 = vmatprep.subr.mxu0 0.0
    %2603 = vmatpush1.msra.mxu0 0.0
    %2604 = vmatprep.subr.mxu0 0.0
    %2605 = vmatpush1.msra.mxu0 0.0
    %2606 = vmatprep.subr.mxu0 0.0
    %2607 = vmatpush1.msra.mxu0 0.0
    %2608 = vmatprep.subr.mxu0 0.0
    %2609 = vmatpush1.msra.mxu0 0.0
    %2610 = vmatprep.subr.mxu0 0.0
    %2611 = vmatpush1.msra.mxu0 0.0
    %2612 = vmatprep.subr.mxu0 0.0
    %2613 = vmatpush1.msra.mxu0 0.0
    %2614 = vmatprep.subr.mxu0 0.0
    %2615 = vmatpush1.msra.mxu0 0.0
    %2616 = vmatprep.subr.mxu0 0.0
    %2617 = vmatpush1.msra.mxu0 0.0
    %2618 = vmatprep.subr.mxu0 0.0
    %2619 = vmatpush1.msra.mxu0 0.0
    %2620 = vmatprep.subr.mxu0 0.0
    %2621 = vmatpush1.msra.mxu0 0.0
    %2622 = vmatprep.subr.mxu0 0.0
    %2623 = vmatpush1.msra.mxu0 0.0
    %2624 = vmatprep.subr.mxu0 0.0
    %2625 = vmatpush1.msra.mxu0 0.0
    %2626 = vmatprep.subr.mxu0 0.0
    %2627 = vmatpush1.msra.mxu0 0.0
    %2628 = vmatprep.subr.mxu0 0.0
    %2629 = vmatpush1.msra.mxu0 0.0
    %2630 = vmatprep.subr.mxu0 0.0
    %2631 = vmatpush1.msra.mxu0 0.0
    %2632 = vmatprep.subr.mxu0 0.0
    %2633 = vmatpush1.msra.mxu0 0.0
    %2634 = vmatprep.subr.mxu0 0.0
    %2635 = vmatpush1.msra.mxu0 0.0
    %2636 = vmatprep.subr.mxu0 0.0
    %2637 = vmatpush1.msra.mxu0 0.0
    %2638 = vmatprep.subr.mxu0 0.0
    %2639 = vmatpush1.msra.mxu0 0.0
    %2640 = vmatprep.subr.mxu0 0.0
    %2641 = vmatpush1.msra.mxu0 0.0
    %2642 = vmatprep.subr.mxu0 0.0
    %2643 = vmatpush1.msra.mxu0 0.0
    %2644 = vmatprep.subr.mxu0 0.0
    %2645 = vmatpush1.msra.mxu0 0.0
    %2646 = vmatprep.mubr.f32.mxu0 0.0
    %2647 = vmatmul.mubr.f32.gmra.mrb[0].mxu0 %v2577
    %v2648 = vpop.f32.mrb[0].mxu0
    %v2649 = vadd.f32 0.0, %v2648
    %v2650 = vpop.f32.mrb[0].mxu0
    %2651 = vmatprep.mubr.f32.mxu0 0.0
    %2652 = vmatmul.mubr.f32.gmra.mrb[0].mxu0 %v2580
    %v2653 = vpop.f32.mrb[0].mxu0
    %v2654 = vadd.f32 0.0, %v2653
    %v2655 = vpop.f32.mrb[0].mxu0
    %2656 = vdwg.mxu0
    %v2657 = vadd.f32 %v1461, %v2649
    %v2658 = vadd.f32 %v1462, %v2654
    %v2659 = vld [vmem:[%s2 + $0x6] sm:$0x1]
    %v2660 = vld [vmem:[%s2 + $0x7] sm:$0x1]
    %v2661 = vsel %vm36, %v2657, 0.0
    %2662 = vadd.xlane.f32.xlu0 %v2661
    %v2663 = vpop.xlane.xlu0 %2662
    %v2664 = vsel %vm36, %v2658, 0.0
    %2665 = vadd.xlane.f32.xlu0 %v2664
    %v2666 = vpop.xlane.xlu0 %2665
    %v2667 = vmul.f32 %v2663, %v43
    %v2668 = vmul.f32 %v2666, %v43
    %v2669 = vsub.f32 %v2657, %v2667
    %v2670 = vsub.f32 %v2658, %v2668
    %v2671 = vmul.f32 %v2669, %v2669
    %v2672 = vmul.f32 %v2670, %v2670
    %v2673 = vsel %vm36, %v2671, 0.0
    %2674 = vadd.xlane.f32.xlu0 %v2673
    %v2675 = vpop.xlane.xlu0 %2674
    %v2676 = vsel %vm36, %v2672, 0.0
    %2677 = vadd.xlane.f32.xlu0 %v2676
    %v2678 = vpop.xlane.xlu0 %2677
    %v2679 = vmul.f32 %v2675, %v43
    %v2680 = vmul.f32 %v2678, %v43
    %v2681 = vadd.f32 %v2679, 1e-05
    %v2682 = vadd.f32 %v2680, 1e-05
    %v2683 = vrsqrt.pop %v2681
    %v2684 = vrsqrt.pop %v2682
    %v2685 = vmul.f32 %v2669, %v2683
    %v2686 = vmul.f32 %v2670, %v2684
    %v2687 = vlaneseq
    %v2688 = vshrl.u32 %v2687, 7
    %v2689 = vsub.s32 0, %v2688
    %v2690 = vrot.slane %v2659, %v2689
    %v2691 = vmul.f32 %v2685, %v2690
    %v2692 = vmul.f32 %v2686, %v2690
    %v2693 = vlaneseq
    %v2694 = vshrl.u32 %v2693, 7
    %v2695 = vsub.s32 0, %v2694
    %v2696 = vrot.slane %v2660, %v2695
    %v2697 = vadd.f32 %v2691, %v2696
    %v2698 = vadd.f32 %v2692, %v2696
    %s2699 = scalar_lea.vmem %s6, 2
    %v2700 = vld [vmem:[%s2699] sm:$0x3]
    %s2701 = scalar_lea.vmem %s4, 32
    %v2702 = vld [vmem:[%s2701] sm:$0xff]
    %v2703 = vld [vmem:[%s2701 + $0x8] sm:$0xff]
    %v2704 = vld [vmem:[%s2701 + $0x10] sm:$0xff]
    %v2705 = vld [vmem:[%s2701 + $0x18] sm:$0xff]
    %v2706 = vlaneseq
    %v2707 = vshrl.u32 %v2706, 7
    %v2708 = vsub.s32 0, %v2707
    %v2709 = vrot.slane %v2700, %v2708
    %v2711 = vsel %vm36, %v2697, 0
    %v2714 = vsel %vm36, %v2698, 0
    %2716 = vmatprep.subr.mxu0 0.0
    %2717 = vmatpush1.msra.mxu0 %v2702
    %2718 = vmatprep.subr.mxu0 0.0
    %2719 = vmatpush1.msra.mxu0 %v2703
    %2720 = vmatprep.subr.mxu0 0.0
    %2721 = vmatpush1.msra.mxu0 %v2704
    %2722 = vmatprep.subr.mxu0 0.0
    %2723 = vmatpush1.msra.mxu0 %v2705
    %2724 = vmatprep.subr.mxu0 0.0
    %2725 = vmatpush1.msra.mxu0 0.0
    %2726 = vmatprep.subr.mxu0 0.0
    %2727 = vmatpush1.msra.mxu0 0.0
    %2728 = vmatprep.subr.mxu0 0.0
    %2729 = vmatpush1.msra.mxu0 0.0
    %2730 = vmatprep.subr.mxu0 0.0
    %2731 = vmatpush1.msra.mxu0 0.0
    %2732 = vmatprep.subr.mxu0 0.0
    %2733 = vmatpush1.msra.mxu0 0.0
    %2734 = vmatprep.subr.mxu0 0.0
    %2735 = vmatpush1.msra.mxu0 0.0
    %2736 = vmatprep.subr.mxu0 0.0
    %2737 = vmatpush1.msra.mxu0 0.0
    %2738 = vmatprep.subr.mxu0 0.0
    %2739 = vmatpush1.msra.mxu0 0.0
    %2740 = vmatprep.subr.mxu0 0.0
    %2741 = vmatpush1.msra.mxu0 0.0
    %2742 = vmatprep.subr.mxu0 0.0
    %2743 = vmatpush1.msra.mxu0 0.0
    %2744 = vmatprep.subr.mxu0 0.0
    %2745 = vmatpush1.msra.mxu0 0.0
    %2746 = vmatprep.subr.mxu0 0.0
    %2747 = vmatpush1.msra.mxu0 0.0
    %2748 = vmatprep.subr.mxu0 0.0
    %2749 = vmatpush1.msra.mxu0 0.0
    %2750 = vmatprep.subr.mxu0 0.0
    %2751 = vmatpush1.msra.mxu0 0.0
    %2752 = vmatprep.subr.mxu0 0.0
    %2753 = vmatpush1.msra.mxu0 0.0
    %2754 = vmatprep.subr.mxu0 0.0
    %2755 = vmatpush1.msra.mxu0 0.0
    %2756 = vmatprep.subr.mxu0 0.0
    %2757 = vmatpush1.msra.mxu0 0.0
    %2758 = vmatprep.subr.mxu0 0.0
    %2759 = vmatpush1.msra.mxu0 0.0
    %2760 = vmatprep.subr.mxu0 0.0
    %2761 = vmatpush1.msra.mxu0 0.0
    %2762 = vmatprep.subr.mxu0 0.0
    %2763 = vmatpush1.msra.mxu0 0.0
    %2764 = vmatprep.subr.mxu0 0.0
    %2765 = vmatpush1.msra.mxu0 0.0
    %2766 = vmatprep.subr.mxu0 0.0
    %2767 = vmatpush1.msra.mxu0 0.0
    %2768 = vmatprep.subr.mxu0 0.0
    %2769 = vmatpush1.msra.mxu0 0.0
    %2770 = vmatprep.subr.mxu0 0.0
    %2771 = vmatpush1.msra.mxu0 0.0
    %2772 = vmatprep.subr.mxu0 0.0
    %2773 = vmatpush1.msra.mxu0 0.0
    %2774 = vmatprep.subr.mxu0 0.0
    %2775 = vmatpush1.msra.mxu0 0.0
    %2776 = vmatprep.subr.mxu0 0.0
    %2777 = vmatpush1.msra.mxu0 0.0
    %2778 = vmatprep.subr.mxu0 0.0
    %2779 = vmatpush1.msra.mxu0 0.0
    %2780 = vmatprep.mubr.f32.mxu0 0.0
    %2781 = vmatmul.mubr.f32.gmra.mrb[0].mxu0 %v2711
    %v2782 = vpop.f32.mrb[0].mxu0
    %v2783 = vadd.f32 %v2709, %v2782
    %v2784 = vpop.f32.mrb[0].mxu0
    %2785 = vmatprep.mubr.f32.mxu0 0.0
    %2786 = vmatmul.mubr.f32.gmra.mrb[0].mxu0 %v2714
    %v2787 = vpop.f32.mrb[0].mxu0
    %v2788 = vadd.f32 %v2709, %v2787
    %v2789 = vpop.f32.mrb[0].mxu0
    %2790 = vdwg.mxu0
    %v2791 = vmax.f32 %v2783, 0.0
    %v2792 = vmax.f32 %v2788, 0.0
    %s2793 = scalar_lea.vmem %s5, 128
    %v2794 = vld [vmem:[%s2793] sm:$0xff]
    %v2795 = vld [vmem:[%s2793 + $0x8] sm:$0xff]
    %v2796 = vld [vmem:[%s2793 + $0x10] sm:$0xff]
    %v2797 = vld [vmem:[%s2793 + $0x18] sm:$0xff]
    %v2798 = vld [vmem:[%s2793 + $0x20] sm:$0xff]
    %v2799 = vld [vmem:[%s2793 + $0x28] sm:$0xff]
    %v2800 = vld [vmem:[%s2793 + $0x30] sm:$0xff]
    %v2801 = vld [vmem:[%s2793 + $0x38] sm:$0xff]
    %v2802 = vld [vmem:[%s2793 + $0x40] sm:$0xff]
    %v2803 = vld [vmem:[%s2793 + $0x48] sm:$0xff]
    %v2804 = vld [vmem:[%s2793 + $0x50] sm:$0xff]
    %v2805 = vld [vmem:[%s2793 + $0x58] sm:$0xff]
    %v2806 = vld [vmem:[%s2793 + $0x60] sm:$0xff]
    %v2807 = vld [vmem:[%s2793 + $0x68] sm:$0xff]
    %v2808 = vld [vmem:[%s2793 + $0x70] sm:$0xff]
    %v2809 = vld [vmem:[%s2793 + $0x78] sm:$0xff]
    %v2810 = vlaneseq
    %v2811 = vshrl.u32 %v2810, 7
    %v2812 = vsub.s32 1, %v2811
    %v2813 = vrot.slane %v2700, %v2812
    %2814 = vmatprep.subr.mxu0 0.0
    %2815 = vmatpush1.msra.mxu0 %v2794
    %2816 = vmatprep.subr.mxu0 0.0
    %2817 = vmatpush1.msra.mxu0 %v2795
    %2818 = vmatprep.subr.mxu0 0.0
    %2819 = vmatpush1.msra.mxu0 %v2796
    %2820 = vmatprep.subr.mxu0 0.0
    %2821 = vmatpush1.msra.mxu0 %v2797
    %2822 = vmatprep.subr.mxu0 0.0
    %2823 = vmatpush1.msra.mxu0 %v2798
    %2824 = vmatprep.subr.mxu0 0.0
    %2825 = vmatpush1.msra.mxu0 %v2799
    %2826 = vmatprep.subr.mxu0 0.0
    %2827 = vmatpush1.msra.mxu0 %v2800
    %2828 = vmatprep.subr.mxu0 0.0
    %2829 = vmatpush1.msra.mxu0 %v2801
    %2830 = vmatprep.subr.mxu0 0.0
    %2831 = vmatpush1.msra.mxu0 %v2802
    %2832 = vmatprep.subr.mxu0 0.0
    %2833 = vmatpush1.msra.mxu0 %v2803
    %2834 = vmatprep.subr.mxu0 0.0
    %2835 = vmatpush1.msra.mxu0 %v2804
    %2836 = vmatprep.subr.mxu0 0.0
    %2837 = vmatpush1.msra.mxu0 %v2805
    %2838 = vmatprep.subr.mxu0 0.0
    %2839 = vmatpush1.msra.mxu0 %v2806
    %2840 = vmatprep.subr.mxu0 0.0
    %2841 = vmatpush1.msra.mxu0 %v2807
    %2842 = vmatprep.subr.mxu0 0.0
    %2843 = vmatpush1.msra.mxu0 %v2808
    %2844 = vmatprep.subr.mxu0 0.0
    %2845 = vmatpush1.msra.mxu0 %v2809
    %2846 = vmatprep.subr.mxu0 0.0
    %2847 = vmatpush1.msra.mxu0 0.0
    %2848 = vmatprep.subr.mxu0 0.0
    %2849 = vmatpush1.msra.mxu0 0.0
    %2850 = vmatprep.subr.mxu0 0.0
    %2851 = vmatpush1.msra.mxu0 0.0
    %2852 = vmatprep.subr.mxu0 0.0
    %2853 = vmatpush1.msra.mxu0 0.0
    %2854 = vmatprep.subr.mxu0 0.0
    %2855 = vmatpush1.msra.mxu0 0.0
    %2856 = vmatprep.subr.mxu0 0.0
    %2857 = vmatpush1.msra.mxu0 0.0
    %2858 = vmatprep.subr.mxu0 0.0
    %2859 = vmatpush1.msra.mxu0 0.0
    %2860 = vmatprep.subr.mxu0 0.0
    %2861 = vmatpush1.msra.mxu0 0.0
    %2862 = vmatprep.subr.mxu0 0.0
    %2863 = vmatpush1.msra.mxu0 0.0
    %2864 = vmatprep.subr.mxu0 0.0
    %2865 = vmatpush1.msra.mxu0 0.0
    %2866 = vmatprep.subr.mxu0 0.0
    %2867 = vmatpush1.msra.mxu0 0.0
    %2868 = vmatprep.subr.mxu0 0.0
    %2869 = vmatpush1.msra.mxu0 0.0
    %2870 = vmatprep.subr.mxu0 0.0
    %2871 = vmatpush1.msra.mxu0 0.0
    %2872 = vmatprep.subr.mxu0 0.0
    %2873 = vmatpush1.msra.mxu0 0.0
    %2874 = vmatprep.subr.mxu0 0.0
    %2875 = vmatpush1.msra.mxu0 0.0
    %2876 = vmatprep.subr.mxu0 0.0
    %2877 = vmatpush1.msra.mxu0 0.0
    %2878 = vmatprep.mubr.f32.mxu0 0.0
    %2879 = vmatmul.mubr.f32.gmra.mrb[0].mxu0 %v2791
    %v2880 = vpop.f32.mrb[0].mxu0
    %v2881 = vadd.f32 %v2813, %v2880
    %v2882 = vpop.f32.mrb[0].mxu0
    %2883 = vmatprep.mubr.f32.mxu0 0.0
    %2884 = vmatmul.mubr.f32.gmra.mrb[0].mxu0 %v2792
    %v2885 = vpop.f32.mrb[0].mxu0
    %v2886 = vadd.f32 %v2813, %v2885
    %v2887 = vpop.f32.mrb[0].mxu0
    %2888 = vdwg.mxu0
    %v2889 = vadd.f32 %v2657, %v2881
    %v2890 = vadd.f32 %v2658, %v2886
    %v2891 = vld [vmem:[%s2 + $0x8] sm:$0x1]
    %v2892 = vld [vmem:[%s2 + $0x9] sm:$0x1]
    %v2893 = vsel %vm36, %v2889, 0.0
    %2894 = vadd.xlane.f32.xlu0 %v2893
    %v2895 = vpop.xlane.xlu0 %2894
    %v2896 = vsel %vm36, %v2890, 0.0
    %2897 = vadd.xlane.f32.xlu0 %v2896
    %v2898 = vpop.xlane.xlu0 %2897
    %v2899 = vmul.f32 %v2895, %v43
    %v2900 = vmul.f32 %v2898, %v43
    %v2901 = vsub.f32 %v2889, %v2899
    %v2902 = vsub.f32 %v2890, %v2900
    %v2903 = vmul.f32 %v2901, %v2901
    %v2904 = vmul.f32 %v2902, %v2902
    %v2905 = vsel %vm36, %v2903, 0.0
    %2906 = vadd.xlane.f32.xlu0 %v2905
    %v2907 = vpop.xlane.xlu0 %2906
    %v2908 = vsel %vm36, %v2904, 0.0
    %2909 = vadd.xlane.f32.xlu0 %v2908
    %v2910 = vpop.xlane.xlu0 %2909
    %v2911 = vmul.f32 %v2907, %v43
    %v2912 = vmul.f32 %v2910, %v43
    %v2913 = vadd.f32 %v2911, 1e-05
    %v2914 = vadd.f32 %v2912, 1e-05
    %v2915 = vrsqrt.pop %v2913
    %v2916 = vrsqrt.pop %v2914
    %v2917 = vmul.f32 %v2901, %v2915
    %v2918 = vmul.f32 %v2902, %v2916
    %v2919 = vlaneseq
    %v2920 = vshrl.u32 %v2919, 7
    %v2921 = vsub.s32 0, %v2920
    %v2922 = vrot.slane %v2891, %v2921
    %v2923 = vmul.f32 %v2917, %v2922
    %v2924 = vmul.f32 %v2918, %v2922
    %v2925 = vlaneseq
    %v2926 = vshrl.u32 %v2925, 7
    %v2927 = vsub.s32 0, %v2926
    %v2928 = vrot.slane %v2892, %v2927
    %v2929 = vadd.f32 %v2923, %v2928
    %v2930 = vadd.f32 %v2924, %v2928
    %v2931 = vld [vmem:[%s7] sm:$0xff]
    %v2932 = vld [vmem:[%s7 + $0x8] sm:$0xff]
    %v2933 = vld [vmem:[%s7 + $0x10] sm:$0xff]
    %v2934 = vld [vmem:[%s7 + $0x18] sm:$0xff]
    %v2936 = vsel %vm36, %v2929, 0
    %v2939 = vsel %vm36, %v2930, 0
    %2941 = vmatprep.subr.mxu0 0.0
    %2942 = vmatpush1.msra.mxu0 %v2931
    %2943 = vmatprep.subr.mxu0 0.0
    %2944 = vmatpush1.msra.mxu0 %v2932
    %2945 = vmatprep.subr.mxu0 0.0
    %2946 = vmatpush1.msra.mxu0 %v2933
    %2947 = vmatprep.subr.mxu0 0.0
    %2948 = vmatpush1.msra.mxu0 %v2934
    %2949 = vmatprep.subr.mxu0 0.0
    %2950 = vmatpush1.msra.mxu0 0.0
    %2951 = vmatprep.subr.mxu0 0.0
    %2952 = vmatpush1.msra.mxu0 0.0
    %2953 = vmatprep.subr.mxu0 0.0
    %2954 = vmatpush1.msra.mxu0 0.0
    %2955 = vmatprep.subr.mxu0 0.0
    %2956 = vmatpush1.msra.mxu0 0.0
    %2957 = vmatprep.subr.mxu0 0.0
    %2958 = vmatpush1.msra.mxu0 0.0
    %2959 = vmatprep.subr.mxu0 0.0
    %2960 = vmatpush1.msra.mxu0 0.0
    %2961 = vmatprep.subr.mxu0 0.0
    %2962 = vmatpush1.msra.mxu0 0.0
    %2963 = vmatprep.subr.mxu0 0.0
    %2964 = vmatpush1.msra.mxu0 0.0
    %2965 = vmatprep.subr.mxu0 0.0
    %2966 = vmatpush1.msra.mxu0 0.0
    %2967 = vmatprep.subr.mxu0 0.0
    %2968 = vmatpush1.msra.mxu0 0.0
    %2969 = vmatprep.subr.mxu0 0.0
    %2970 = vmatpush1.msra.mxu0 0.0
    %2971 = vmatprep.subr.mxu0 0.0
    %2972 = vmatpush1.msra.mxu0 0.0
    %2973 = vmatprep.subr.mxu0 0.0
    %2974 = vmatpush1.msra.mxu0 0.0
    %2975 = vmatprep.subr.mxu0 0.0
    %2976 = vmatpush1.msra.mxu0 0.0
    %2977 = vmatprep.subr.mxu0 0.0
    %2978 = vmatpush1.msra.mxu0 0.0
    %2979 = vmatprep.subr.mxu0 0.0
    %2980 = vmatpush1.msra.mxu0 0.0
    %2981 = vmatprep.subr.mxu0 0.0
    %2982 = vmatpush1.msra.mxu0 0.0
    %2983 = vmatprep.subr.mxu0 0.0
    %2984 = vmatpush1.msra.mxu0 0.0
    %2985 = vmatprep.subr.mxu0 0.0
    %2986 = vmatpush1.msra.mxu0 0.0
    %2987 = vmatprep.subr.mxu0 0.0
    %2988 = vmatpush1.msra.mxu0 0.0
    %2989 = vmatprep.subr.mxu0 0.0
    %2990 = vmatpush1.msra.mxu0 0.0
    %2991 = vmatprep.subr.mxu0 0.0
    %2992 = vmatpush1.msra.mxu0 0.0
    %2993 = vmatprep.subr.mxu0 0.0
    %2994 = vmatpush1.msra.mxu0 0.0
    %2995 = vmatprep.subr.mxu0 0.0
    %2996 = vmatpush1.msra.mxu0 0.0
    %2997 = vmatprep.subr.mxu0 0.0
    %2998 = vmatpush1.msra.mxu0 0.0
    %2999 = vmatprep.subr.mxu0 0.0
    %3000 = vmatpush1.msra.mxu0 0.0
    %3001 = vmatprep.subr.mxu0 0.0
    %3002 = vmatpush1.msra.mxu0 0.0
    %3003 = vmatprep.subr.mxu0 0.0
    %3004 = vmatpush1.msra.mxu0 0.0
    %3005 = vmatprep.mubr.f32.mxu0 0.0
    %3006 = vmatmul.mubr.f32.gmra.mrb[0].mxu0 %v2936
    %v3007 = vpop.f32.mrb[0].mxu0
    %v3008 = vadd.f32 0.0, %v3007
    %v3009 = vpop.f32.mrb[0].mxu0
    %3010 = vmatprep.mubr.f32.mxu0 0.0
    %3011 = vmatmul.mubr.f32.gmra.mrb[0].mxu0 %v2939
    %v3012 = vpop.f32.mrb[0].mxu0
    %v3013 = vadd.f32 0.0, %v3012
    %v3014 = vpop.f32.mrb[0].mxu0
    %3015 = vdwg.mxu0
    %3016 = vst [vmem:[#allocation2] sm:$0xff] %v3008
    %3017 = vst [vmem:[#allocation2 + $0x8] sm:$0xff] %v3013
    // Predicated region
    $region34: #{transformer_forward.1} parent=1 // pred_check
      _
    $region35: #{transformer_forward.1} parent=1 // pred_check_branch
      %3019 = sbr.rel (0) target = $region37
    $region36: #{transformer_forward.1} parent=1 // pred_region
      %s3021 = ssub.s32 256, 256
      %3022 = vsyncadd [#allocation3], %s3021
      %s3023 = sshll.u32 [#allocation2], 4
      %s3024 = int_to_ptr.vmem [resolvable:$true] %s3023
      %3029 = dma.vmem_to_hbm [thread:$0]  %s3024, 256, %s8, [#allocation3], 128, 128, 8
    $region37: #{transformer_forward.1} parent=1 // pred_fallthru
      _
    // Predicated region
    $region38: #{transformer_forward.1} parent=1 // pred_check
      _
    $region39: #{transformer_forward.1} parent=1 // pred_check_branch
      %3031 = sbr.rel (0) target = $region41
    $region40: #{transformer_forward.1} parent=1 // pred_region
      %3032 = dma.done [#allocation3], 256
    $region41: #{transformer_forward.1} parent=1 // pred_fallthru
      _
    %3033 = vsyncpa [#allocation3], 1

</llo_original>
